<compile_context>
chip_gen: v6e
topology: v6e:2x2x1
jax: 0.10.0
libtpu: 0.0.40
codegen_flags: <defaults>
</compile_context>

<pallas_src>
import functools

import jax
import jax.numpy as jnp
from jax.experimental import pallas as pl
from jax.experimental.pallas import tpu as pltpu


def _round_up(x, m):
    return ((x + m - 1) // m) * m


# ---------------------------------------------------------------------------
# Pallas kernels
# ---------------------------------------------------------------------------
def _matmul_bias_act_kernel(a_ref, w_ref, b_ref, o_ref, *, act):
    """o[p] = act(a[p] @ w[p] + b); bf16 MXU operands, f32 accumulate/epilogue."""
    acc = jnp.dot(a_ref[0], w_ref[0], preferred_element_type=jnp.float32)
    acc = acc + b_ref[...]                       # (1, N) broadcast over (M, N)
    if act == "relu":
        acc = jnp.maximum(acc, 0.0)
    o_ref[0] = acc.astype(o_ref.dtype)


def _rowsum_bias_tanh_kernel(a_ref, w_ref, b_ref, o_ref):
    """Cout == 1 layer: o[p] = tanh(sum_k a[p] * w[p, 0, :] + b). VPU + XLU."""
    a = a_ref[0].astype(jnp.float32)             # (M, K), f32 epilogue math
    acc = jnp.sum(a * w_ref[0], axis=-1, keepdims=True)   # (M, 1)
    o_ref[0] = jnp.tanh(acc + b_ref[...])


# ---------------------------------------------------------------------------
# pallas_call wrappers (grid over the 4 sub-pixel phases)
# ---------------------------------------------------------------------------
def _phase_matmul(a, w, b, *, act, out_dtype):
    """a: (P, M, K) bf16, w: (P, K, N) bf16, b: (1, N) f32 -> (P, M, N)."""
    P, M, K = a.shape
    _, K2, N = w.shape
    assert K2 == K and b.shape == (1, N)
    return pl.pallas_call(
        functools.partial(_matmul_bias_act_kernel, act=act),
        out_shape=jax.ShapeDtypeStruct((P, M, N), out_dtype),
        grid_spec=pltpu.PrefetchScalarGridSpec(
            num_scalar_prefetch=0,
            grid=(P,),
            in_specs=[
                pl.BlockSpec((1, M, K), lambda p: (p, 0, 0)),
                pl.BlockSpec((1, K, N), lambda p: (p, 0, 0)),
                pl.BlockSpec((1, N), lambda p: (0, 0)),
            ],
            out_specs=pl.BlockSpec((1, M, N), lambda p: (p, 0, 0)),
        ),
        compiler_params=pltpu.CompilerParams(
            dimension_semantics=("parallel",),
        ),
    )(a, w, b)


def _phase_rowsum_tanh(a, w, b):
    """a: (P, M, K) bf16, w: (P, 1, K) f32, b: (1, 1) f32 -> (P, M, 1) f32."""
    P, M, K = a.shape
    assert w.shape == (P, 1, K) and b.shape == (1, 1)
    return pl.pallas_call(
        _rowsum_bias_tanh_kernel,
        out_shape=jax.ShapeDtypeStruct((P, M, 1), jnp.float32),
        grid_spec=pltpu.PrefetchScalarGridSpec(
            num_scalar_prefetch=0,
            grid=(P,),
            in_specs=[
                pl.BlockSpec((1, M, K), lambda p: (p, 0, 0)),
                pl.BlockSpec((1, 1, K), lambda p: (p, 0, 0)),
                pl.BlockSpec((1, 1), lambda p: (0, 0)),
            ],
            out_specs=pl.BlockSpec((1, M, 1), lambda p: (p, 0, 0)),
        ),
        compiler_params=pltpu.CompilerParams(
            dimension_semantics=("parallel",),
        ),
    )(a, w, b)


# ---------------------------------------------------------------------------
# Tiny NHWC glue (no dilated inputs, no NCHW shuffles, <= ~0.5 MiB per layer)
# ---------------------------------------------------------------------------
def _phase_im2col(y):
    """NHWC y:(B,H,W,C) -> per-phase patch matrices A:(4, B*H*W, 4*C)."""
    B, H, W, C = y.shape
    yp = jnp.pad(y, ((0, 0), (1, 1), (1, 1), (0, 0)))
    phases = []
    for ry in range(2):
        for rx in range(2):
            taps = [yp[:, ry + dy:ry + dy + H, rx + dx:rx + dx + W, :]
                    for dy in range(2) for dx in range(2)]
            phases.append(
                jnp.concatenate(taps, axis=-1).reshape(B * H * W, 4 * C))
    return jnp.stack(phases, axis=0)


def _interleave_phases(p, B, H, W):
    """(4, B*H*W, C) phase outputs -> NHWC (B, 2H, 2W, C)."""
    C = p.shape[-1]
    t = p.reshape(2, 2, B, H, W, C).transpose(2, 3, 0, 4, 1, 5)
    return t.reshape(B, 2 * H, 2 * W, C)


# ---------------------------------------------------------------------------
# One-time weight packing (phase-major, flipped, channel-padded, bf16)
# ---------------------------------------------------------------------------
def _pack_convt_weight(w, cout_pad):
    """PyTorch ConvTranspose2d weight (Cin, Cout, 4, 4) -> (4, 4*Cin, cout_pad).

    Phase p = 2*ry + rx; K index = (2*dy + dx)*Cin + ci; kernel tap
    (ky, kx) = (3 - ry - 2*dy, 3 - rx - 2*dx)."""
    cout = w.shape[1]
    phases = []
    for ry in range(2):
        for rx in range(2):
            taps = [w[:, :, 3 - ry - 2 * dy, 3 - rx - 2 * dx]
                    for dy in range(2) for dx in range(2)]
            phases.append(jnp.concatenate(taps, axis=0))        # (4*Cin, Cout)
    wp = jnp.stack(phases, axis=0)                              # (4, 4*Cin, Cout)
    if cout_pad > cout:
        wp = jnp.pad(wp, ((0, 0), (0, 0), (0, cout_pad - cout)))
    return wp


def pack_params(params):
    latent = params["fc_w"].shape[1]
    kp = _round_up(latent, 128)

    # fc: reorder output columns from (c, y, x) flatten to NHWC (y, x, c).
    fc_w = params["fc_w"].reshape(256, 4, 4, latent).transpose(1, 2, 0, 3)
    fc_w = fc_w.reshape(256 * 16, latent).T                     # (latent, 4096)
    fc_w = jnp.zeros((kp, 256 * 16), jnp.float32).at[:latent].set(fc_w)
    fc_b = params["fc_b"].reshape(256, 4, 4).transpose(1, 2, 0).reshape(1, -1)

    w1 = _pack_convt_weight(params["w1"], 128)                  # (4, 1024, 128)
    b1 = params["b1"].reshape(1, 128)
    w2 = _pack_convt_weight(params["w2"], 128)                  # (4, 512, 128) padded
    b2 = jnp.zeros((1, 128), jnp.float32).at[0, :64].set(params["b2"])
    # layer 3 consumes the 128-channel (zero-padded) layer-2 output -> pad Cin.
    w3_full = jnp.zeros((128, 1, 4, 4), jnp.float32).at[:64].set(params["w3"])
    w3 = _pack_convt_weight(w3_full, 1).transpose(0, 2, 1)      # (4, 1, 512) f32
    b3 = params["b3"].reshape(1, 1)

    return {
        "fc_w": fc_w.astype(jnp.bfloat16)[None],                # (1, kp, 4096)
        "fc_b": fc_b,
        "w1": w1.astype(jnp.bfloat16), "b1": b1,
        "w2": w2.astype(jnp.bfloat16), "b2": b2,
        "w3": w3, "b3": b3,
    }


# ---------------------------------------------------------------------------
# VAEDecoder forward (Pallas path)
# ---------------------------------------------------------------------------
# TODO(synk): fuse fc + all 3 deconv stages into one pallas_call with the phase
# interleave done in VMEM scratch (needs multi-dim strided stores); the tiny
# (<=512 KiB) interleave/pad glue between layers currently runs in XLA.
@jax.jit
def vae_decoder_forward(z, packed):
    B = z.shape[0]
    kp = packed["fc_w"].shape[1]
    mp = _round_up(B, 8)
    zp = jnp.zeros((1, mp, kp), jnp.bfloat16)
    zp = zp.at[0, :B, :z.shape[1]].set(z.astype(jnp.bfloat16))

    # fc -> NHWC (B, 4, 4, 256)
    h = _phase_matmul(zp, packed["fc_w"], packed["fc_b"],
                      act="none", out_dtype=jnp.bfloat16)[0, :B]
    h = h.reshape(B, 4, 4, 256)

    # deconv1: 256 -> 128, 4x4 -> 8x8
    p1 = _phase_matmul(_phase_im2col(h), packed["w1"], packed["b1"],
                       act="relu", out_dtype=jnp.bfloat16)
    y1 = _interleave_phases(p1, B, 4, 4)

    # deconv2: 128 -> 64 (padded to 128 lanes), 8x8 -> 16x16
    p2 = _phase_matmul(_phase_im2col(y1), packed["w2"], packed["b2"],
                       act="relu", out_dtype=jnp.bfloat16)
    y2 = _interleave_phases(p2, B, 8, 8)

    # deconv3: -> 1 channel, 16x16 -> 32x32, tanh (VPU row-reduce kernel)
    p3 = _phase_rowsum_tanh(_phase_im2col(y2), packed["w3"], packed["b3"])
    y3 = _interleave_phases(p3, B, 16, 16)                      # (B, 32, 32, 1)

    return jnp.transpose(y3, (0, 3, 1, 2))                      # (B, 1, 32, 32)


# ---------------------------------------------------------------------------
# Pure-JAX f32 reference (independent of the Pallas path) for verification
# ---------------------------------------------------------------------------
def vae_decoder_reference(z, params):
    h = z @ params["fc_w"].T + params["fc_b"]
    h = h.reshape(z.shape[0], 256, 4, 4)

    def ct(x, w, b):
        w_conv = jnp.transpose(w[:, :, ::-1, ::-1], (1, 0, 2, 3))  # (Cout,Cin,kh,kw)
        y = jax.lax.conv_general_dilated(
            x, w_conv, window_strides=(1, 1), padding=((2, 2), (2, 2)),
            lhs_dilation=(2, 2),
            dimension_numbers=("NCHW", "OIHW", "NCHW"))
        return y + b[None, :, None, None]

    h = jax.nn.relu(ct(h, params["w1"], params["b1"]))
    h = jax.nn.relu(ct(h, params["w2"], params["b2"]))
    return jnp.tanh(ct(h, params["w3"], params["b3"]))


# ---------------------------------------------------------------------------
# Deterministic parameter construction (synthetic; no checkpoint loading)
# ---------------------------------------------------------------------------
def init_params(key, latent_dim):
    channels = 1  # dataset == 'mnist'
    ks = jax.random.split(key, 8)
    sc = 0.05
    return {
        "fc_w": sc * jax.random.normal(ks[0], (256 * 4 * 4, latent_dim), jnp.float32),
        "fc_b": sc * jax.random.normal(ks[1], (256 * 4 * 4,), jnp.float32),
        "w1": sc * jax.random.normal(ks[2], (256, 128, 4, 4), jnp.float32),
        "b1": sc * jax.random.normal(ks[3], (128,), jnp.float32),
        "w2": sc * jax.random.normal(ks[4], (128, 64, 4, 4), jnp.float32),
        "b2": sc * jax.random.normal(ks[5], (64,), jnp.float32),
        "w3": sc * jax.random.normal(ks[6], (64, channels, 4, 4), jnp.float32),
        "b3": sc * jax.random.normal(ks[7], (channels,), jnp.float32),
    }


if __name__ == "__main__":
    latent_dim = 64   # small latent for the synthetic test (module default is 512)
    batch = 2

    key = jax.random.PRNGKey(0)
    k_param, k_z = jax.random.split(key)
    params = init_params(k_param, latent_dim)
    z = jax.random.normal(k_z, (batch, latent_dim), jnp.float32)

    packed = pack_params(params)   # one-time weight packing (outside forward)

    out = jax.block_until_ready(vae_decoder_forward(z, packed))
    ref = jax.block_until_ready(vae_decoder_reference(z, params))

    assert out.shape == (batch, 1, 32, 32), out.shape
    max_err = float(jnp.max(jnp.abs(out - ref)))
    # bf16 MXU operands with f32 accumulation -> loosened tolerance.
    assert max_err < 3e-2, max_err

    print("KERNEL_OK")
</pallas_src>

<mosaic_0001>
module attributes {stable_mosaic.version = 11 : i64} {
  func.func @_matmul_bias_act_kernel(%arg0: i32, %arg1: memref<1x8x128xbf16, #tpu.memory_space<vmem>>, %arg2: memref<1x128x4096xbf16, #tpu.memory_space<vmem>>, %arg3: memref<1x4096xf32, #tpu.memory_space<vmem>>, %arg4: memref<1x8x4096xbf16, #tpu.memory_space<vmem>>) attributes {dimension_semantics = [#tpu.dimension_semantics<parallel>], iteration_bounds = array<i64: 1>, scalar_prefetch = 0 : i64, scratch_operands = 0 : i64, tpu.core_type = #tpu.core_type<tc>, window_params = [{transform_indices = @transform_0, window_bounds = array<i64: 1, 8, 128>}, {transform_indices = @transform_1, window_bounds = array<i64: 1, 128, 4096>}, {pipeline_mode = #tpu.pipeline_mode<synchronous>, transform_indices = @transform_2, window_bounds = array<i64: 1, 4096>}, {transform_indices = @transform_3, window_bounds = array<i64: 1, 8, 4096>}]} {
    %c0 = arith.constant 0 : index
    %c0_0 = arith.constant 0 : index
    %c0_1 = arith.constant 0 : index
    %0 = vector.load %arg1[%c0, %c0_0, %c0_1] : memref<1x8x128xbf16, #tpu.memory_space<vmem>>, vector<1x8x128xbf16>
    %1 = vector.shape_cast %0 : vector<1x8x128xbf16> to vector<8x128xbf16>
    %c0_2 = arith.constant 0 : index
    %c0_3 = arith.constant 0 : index
    %c0_4 = arith.constant 0 : index
    %2 = vector.load %arg2[%c0_2, %c0_3, %c0_4] : memref<1x128x4096xbf16, #tpu.memory_space<vmem>>, vector<1x128x4096xbf16>
    %3 = vector.shape_cast %2 : vector<1x128x4096xbf16> to vector<128x4096xbf16>
    %cst = arith.constant dense<0.000000e+00> : vector<8x4096xf32>
    %4 = tpu.matmul %1, %3, %cst {dimension_numbers = #tpu.dot_dimension_numbers<[1], [0], [0], [1], [0, 0, 1, 1], [], []>} : vector<8x128xbf16>, vector<128x4096xbf16>, vector<8x4096xf32> -> vector<8x4096xf32>
    %c0_5 = arith.constant 0 : index
    %c0_6 = arith.constant 0 : index
    %5 = vector.load %arg3[%c0_5, %c0_6] : memref<1x4096xf32, #tpu.memory_space<vmem>>, vector<1x4096xf32>
    %6 = vector.broadcast %5 : vector<1x4096xf32> to vector<8x4096xf32>
    %7 = arith.addf %4, %6 : vector<8x4096xf32>
    %8 = arith.truncf %7 : vector<8x4096xf32> to vector<8x4096xbf16>
    %c0_7 = arith.constant 0 : index
    %c0_8 = arith.constant 0 : index
    %c0_9 = arith.constant 0 : index
    %9 = vector.load %arg4[%c0_7, %c0_8, %c0_9] : memref<1x8x4096xbf16, #tpu.memory_space<vmem>>, vector<1x8x4096xbf16>
    %10 = vector.shape_cast %9 : vector<1x8x4096xbf16> to vector<8x4096xbf16>
    %11 = vector.shape_cast %8 : vector<8x4096xbf16> to vector<1x8x4096xbf16>
    tpu.vector_store %arg4[%c0_7, %c0_8, %c0_9], %11 {strides = array<i32>} : memref<1x8x4096xbf16, #tpu.memory_space<vmem>>, vector<1x8x4096xbf16>,
    return
  }
  func.func @transform_0(%arg0: i32) -> (i32, i32, i32) {
    %c0_i32 = arith.constant 0 : i32
    %c0_i32_0 = arith.constant 0 : i32
    %c0_i32_1 = arith.constant 0 : i32
    return %arg0, %c0_i32, %c0_i32_0 : i32, i32, i32
  }
  func.func @transform_1(%arg0: i32) -> (i32, i32, i32) {
    %c0_i32 = arith.constant 0 : i32
    %c0_i32_0 = arith.constant 0 : i32
    %c0_i32_1 = arith.constant 0 : i32
    return %arg0, %c0_i32, %c0_i32_0 : i32, i32, i32
  }
  func.func @transform_2(%arg0: i32) -> (i32, i32) {
    %c0_i32 = arith.constant 0 : i32
    %c0_i32_0 = arith.constant 0 : i32
    %c0_i32_1 = arith.constant 0 : i32
    return %c0_i32, %c0_i32_0 : i32, i32
  }
  func.func @transform_3(%arg0: i32) -> (i32, i32, i32) {
    %c0_i32 = arith.constant 0 : i32
    %c0_i32_0 = arith.constant 0 : i32
    %c0_i32_1 = arith.constant 0 : i32
    return %arg0, %c0_i32, %c0_i32_0 : i32, i32, i32
  }
}

module attributes {stable_mosaic.version = 11 : i64} {
  func.func @_matmul_bias_act_kernel(%arg0: i32, %arg1: memref<1x32x1024xbf16, #tpu.memory_space<vmem>>, %arg2: memref<1x1024x128xbf16, #tpu.memory_space<vmem>>, %arg3: memref<1x128xf32, #tpu.memory_space<vmem>>, %arg4: memref<1x32x128xbf16, #tpu.memory_space<vmem>>) attributes {dimension_semantics = [#tpu.dimension_semantics<parallel>], iteration_bounds = array<i64: 4>, scalar_prefetch = 0 : i64, scratch_operands = 0 : i64, tpu.core_type = #tpu.core_type<tc>, window_params = [{transform_indices = @transform_0, window_bounds = array<i64: 1, 32, 1024>}, {transform_indices = @transform_1, window_bounds = array<i64: 1, 1024, 128>}, {pipeline_mode = #tpu.pipeline_mode<synchronous>, transform_indices = @transform_2, window_bounds = array<i64: 1, 128>}, {transform_indices = @transform_3, window_bounds = array<i64: 1, 32, 128>}]} {
    %c0 = arith.constant 0 : index
    %c0_0 = arith.constant 0 : index
    %c0_1 = arith.constant 0 : index
    %0 = vector.load %arg1[%c0, %c0_0, %c0_1] : memref<1x32x1024xbf16, #tpu.memory_space<vmem>>, vector<1x32x1024xbf16>
    %1 = vector.shape_cast %0 : vector<1x32x1024xbf16> to vector<32x1024xbf16>
    %c0_2 = arith.constant 0 : index
    %c0_3 = arith.constant 0 : index
    %c0_4 = arith.constant 0 : index
    %2 = vector.load %arg2[%c0_2, %c0_3, %c0_4] : memref<1x1024x128xbf16, #tpu.memory_space<vmem>>, vector<1x1024x128xbf16>
    %3 = vector.shape_cast %2 : vector<1x1024x128xbf16> to vector<1024x128xbf16>
    %cst = arith.constant dense<0.000000e+00> : vector<32x128xf32>
    %4 = tpu.matmul %1, %3, %cst {dimension_numbers = #tpu.dot_dimension_numbers<[1], [0], [0], [1], [0, 0, 1, 1], [], []>} : vector<32x1024xbf16>, vector<1024x128xbf16>, vector<32x128xf32> -> vector<32x128xf32>
    %c0_5 = arith.constant 0 : index
    %c0_6 = arith.constant 0 : index
    %5 = vector.load %arg3[%c0_5, %c0_6] : memref<1x128xf32, #tpu.memory_space<vmem>>, vector<1x128xf32>
    %6 = vector.broadcast %5 : vector<1x128xf32> to vector<32x128xf32>
    %7 = arith.addf %4, %6 : vector<32x128xf32>
    %cst_7 = arith.constant 0.000000e+00 : f32
    %8 = vector.broadcast %cst_7 : f32 to vector<32x128xf32>
    %9 = arith.maximumf %7, %8 : vector<32x128xf32>
    %10 = arith.truncf %9 : vector<32x128xf32> to vector<32x128xbf16>
    %c0_8 = arith.constant 0 : index
    %c0_9 = arith.constant 0 : index
    %c0_10 = arith.constant 0 : index
    %11 = vector.load %arg4[%c0_8, %c0_9, %c0_10] : memref<1x32x128xbf16, #tpu.memory_space<vmem>>, vector<1x32x128xbf16>
    %12 = vector.shape_cast %11 : vector<1x32x128xbf16> to vector<32x128xbf16>
    %13 = vector.shape_cast %10 : vector<32x128xbf16> to vector<1x32x128xbf16>
    tpu.vector_store %arg4[%c0_8, %c0_9, %c0_10], %13 {strides = array<i32>} : memref<1x32x128xbf16, #tpu.memory_space<vmem>>, vector<1x32x128xbf16>,
    return
  }
  func.func @transform_0(%arg0: i32) -> (i32, i32, i32) {
    %c0_i32 = arith.constant 0 : i32
    %c0_i32_0 = arith.constant 0 : i32
    %c0_i32_1 = arith.constant 0 : i32
    return %arg0, %c0_i32, %c0_i32_0 : i32, i32, i32
  }
  func.func @transform_1(%arg0: i32) -> (i32, i32, i32) {
    %c0_i32 = arith.constant 0 : i32
    %c0_i32_0 = arith.constant 0 : i32
    %c0_i32_1 = arith.constant 0 : i32
    return %arg0, %c0_i32, %c0_i32_0 : i32, i32, i32
  }
  func.func @transform_2(%arg0: i32) -> (i32, i32) {
    %c0_i32 = arith.constant 0 : i32
    %c0_i32_0 = arith.constant 0 : i32
    %c0_i32_1 = arith.constant 0 : i32
    return %c0_i32, %c0_i32_0 : i32, i32
  }
  func.func @transform_3(%arg0: i32) -> (i32, i32, i32) {
    %c0_i32 = arith.constant 0 : i32
    %c0_i32_0 = arith.constant 0 : i32
    %c0_i32_1 = arith.constant 0 : i32
    return %arg0, %c0_i32, %c0_i32_0 : i32, i32, i32
  }
}

module attributes {stable_mosaic.version = 11 : i64} {
  func.func @_matmul_bias_act_kernel(%arg0: i32, %arg1: memref<1x128x512xbf16, #tpu.memory_space<vmem>>, %arg2: memref<1x512x128xbf16, #tpu.memory_space<vmem>>, %arg3: memref<1x128xf32, #tpu.memory_space<vmem>>, %arg4: memref<1x128x128xbf16, #tpu.memory_space<vmem>>) attributes {dimension_semantics = [#tpu.dimension_semantics<parallel>], iteration_bounds = array<i64: 4>, scalar_prefetch = 0 : i64, scratch_operands = 0 : i64, tpu.core_type = #tpu.core_type<tc>, window_params = [{transform_indices = @transform_0, window_bounds = array<i64: 1, 128, 512>}, {transform_indices = @transform_1, window_bounds = array<i64: 1, 512, 128>}, {pipeline_mode = #tpu.pipeline_mode<synchronous>, transform_indices = @transform_2, window_bounds = array<i64: 1, 128>}, {transform_indices = @transform_3, window_bounds = array<i64: 1, 128, 128>}]} {
    %c0 = arith.constant 0 : index
    %c0_0 = arith.constant 0 : index
    %c0_1 = arith.constant 0 : index
    %0 = vector.load %arg1[%c0, %c0_0, %c0_1] : memref<1x128x512xbf16, #tpu.memory_space<vmem>>, vector<1x128x512xbf16>
    %1 = vector.shape_cast %0 : vector<1x128x512xbf16> to vector<128x512xbf16>
    %c0_2 = arith.constant 0 : index
    %c0_3 = arith.constant 0 : index
    %c0_4 = arith.constant 0 : index
    %2 = vector.load %arg2[%c0_2, %c0_3, %c0_4] : memref<1x512x128xbf16, #tpu.memory_space<vmem>>, vector<1x512x128xbf16>
    %3 = vector.shape_cast %2 : vector<1x512x128xbf16> to vector<512x128xbf16>
    %cst = arith.constant dense<0.000000e+00> : vector<128x128xf32>
    %4 = tpu.matmul %1, %3, %cst {dimension_numbers = #tpu.dot_dimension_numbers<[1], [0], [0], [1], [0, 0, 1, 1], [], []>} : vector<128x512xbf16>, vector<512x128xbf16>, vector<128x128xf32> -> vector<128x128xf32>
    %c0_5 = arith.constant 0 : index
    %c0_6 = arith.constant 0 : index
    %5 = vector.load %arg3[%c0_5, %c0_6] : memref<1x128xf32, #tpu.memory_space<vmem>>, vector<1x128xf32>
    %6 = vector.broadcast %5 : vector<1x128xf32> to vector<128x128xf32>
    %7 = arith.addf %4, %6 : vector<128x128xf32>
    %cst_7 = arith.constant 0.000000e+00 : f32
    %8 = vector.broadcast %cst_7 : f32 to vector<128x128xf32>
    %9 = arith.maximumf %7, %8 : vector<128x128xf32>
    %10 = arith.truncf %9 : vector<128x128xf32> to vector<128x128xbf16>
    %c0_8 = arith.constant 0 : index
    %c0_9 = arith.constant 0 : index
    %c0_10 = arith.constant 0 : index
    %11 = vector.load %arg4[%c0_8, %c0_9, %c0_10] : memref<1x128x128xbf16, #tpu.memory_space<vmem>>, vector<1x128x128xbf16>
    %12 = vector.shape_cast %11 : vector<1x128x128xbf16> to vector<128x128xbf16>
    %13 = vector.shape_cast %10 : vector<128x128xbf16> to vector<1x128x128xbf16>
    tpu.vector_store %arg4[%c0_8, %c0_9, %c0_10], %13 {strides = array<i32>} : memref<1x128x128xbf16, #tpu.memory_space<vmem>>, vector<1x128x128xbf16>,
    return
  }
  func.func @transform_0(%arg0: i32) -> (i32, i32, i32) {
    %c0_i32 = arith.constant 0 : i32
    %c0_i32_0 = arith.constant 0 : i32
    %c0_i32_1 = arith.constant 0 : i32
    return %arg0, %c0_i32, %c0_i32_0 : i32, i32, i32
  }
  func.func @transform_1(%arg0: i32) -> (i32, i32, i32) {
    %c0_i32 = arith.constant 0 : i32
    %c0_i32_0 = arith.constant 0 : i32
    %c0_i32_1 = arith.constant 0 : i32
    return %arg0, %c0_i32, %c0_i32_0 : i32, i32, i32
  }
  func.func @transform_2(%arg0: i32) -> (i32, i32) {
    %c0_i32 = arith.constant 0 : i32
    %c0_i32_0 = arith.constant 0 : i32
    %c0_i32_1 = arith.constant 0 : i32
    return %c0_i32, %c0_i32_0 : i32, i32
  }
  func.func @transform_3(%arg0: i32) -> (i32, i32, i32) {
    %c0_i32 = arith.constant 0 : i32
    %c0_i32_0 = arith.constant 0 : i32
    %c0_i32_1 = arith.constant 0 : i32
    return %arg0, %c0_i32, %c0_i32_0 : i32, i32, i32
  }
}

module attributes {stable_mosaic.version = 11 : i64} {
  func.func @_rowsum_bias_tanh_kernel(%arg0: i32, %arg1: memref<1x512x512xbf16, #tpu.memory_space<vmem>>, %arg2: memref<1x1x512xf32, #tpu.memory_space<vmem>>, %arg3: memref<1x1xf32, #tpu.memory_space<vmem>>, %arg4: memref<1x512x1xf32, #tpu.memory_space<vmem>>) attributes {dimension_semantics = [#tpu.dimension_semantics<parallel>], iteration_bounds = array<i64: 4>, scalar_prefetch = 0 : i64, scratch_operands = 0 : i64, tpu.core_type = #tpu.core_type<tc>, window_params = [{transform_indices = @transform_0, window_bounds = array<i64: 1, 512, 512>}, {transform_indices = @transform_1, window_bounds = array<i64: 1, 1, 512>}, {pipeline_mode = #tpu.pipeline_mode<synchronous>, transform_indices = @transform_2, window_bounds = array<i64: 1, 1>}, {transform_indices = @transform_3, window_bounds = array<i64: 1, 512, 1>}]} {
    %c0 = arith.constant 0 : index
    %c0_0 = arith.constant 0 : index
    %c0_1 = arith.constant 0 : index
    %0 = vector.load %arg1[%c0, %c0_0, %c0_1] : memref<1x512x512xbf16, #tpu.memory_space<vmem>>, vector<1x512x512xbf16>
    %1 = vector.shape_cast %0 : vector<1x512x512xbf16> to vector<512x512xbf16>
    %2 = arith.extf %1 : vector<512x512xbf16> to vector<512x512xf32>
    %c0_2 = arith.constant 0 : index
    %c0_3 = arith.constant 0 : index
    %c0_4 = arith.constant 0 : index
    %3 = vector.load %arg2[%c0_2, %c0_3, %c0_4] : memref<1x1x512xf32, #tpu.memory_space<vmem>>, vector<1x1x512xf32>
    %4 = vector.shape_cast %3 : vector<1x1x512xf32> to vector<1x512xf32>
    %5 = vector.broadcast %4 : vector<1x512xf32> to vector<512x512xf32>
    %6 = arith.mulf %2, %5 : vector<512x512xf32>
    %cst = arith.constant dense<0.000000e+00> : vector<512xf32>
    %7 = vector.multi_reduction <add>, %6, %cst [1] : vector<512x512xf32> to vector<512xf32>
    %8 = vector.shape_cast %7 : vector<512xf32> to vector<512x1xf32>
    %c0_5 = arith.constant 0 : index
    %c0_6 = arith.constant 0 : index
    %9 = vector.load %arg3[%c0_5, %c0_6] : memref<1x1xf32, #tpu.memory_space<vmem>>, vector<1x1xf32>
    %10 = vector.broadcast %9 : vector<1x1xf32> to vector<512x1xf32>
    %11 = arith.addf %8, %10 : vector<512x1xf32>
    %12 = math.tanh %11 : vector<512x1xf32>
    %c0_7 = arith.constant 0 : index
    %c0_8 = arith.constant 0 : index
    %c0_9 = arith.constant 0 : index
    %13 = vector.load %arg4[%c0_7, %c0_8, %c0_9] : memref<1x512x1xf32, #tpu.memory_space<vmem>>, vector<1x512x1xf32>
    %14 = vector.shape_cast %13 : vector<1x512x1xf32> to vector<512x1xf32>
    %15 = vector.shape_cast %12 : vector<512x1xf32> to vector<1x512x1xf32>
    tpu.vector_store %arg4[%c0_7, %c0_8, %c0_9], %15 {strides = array<i32>} : memref<1x512x1xf32, #tpu.memory_space<vmem>>, vector<1x512x1xf32>,
    return
  }
  func.func @transform_0(%arg0: i32) -> (i32, i32, i32) {
    %c0_i32 = arith.constant 0 : i32
    %c0_i32_0 = arith.constant 0 : i32
    %c0_i32_1 = arith.constant 0 : i32
    return %arg0, %c0_i32, %c0_i32_0 : i32, i32, i32
  }
  func.func @transform_1(%arg0: i32) -> (i32, i32, i32) {
    %c0_i32 = arith.constant 0 : i32
    %c0_i32_0 = arith.constant 0 : i32
    %c0_i32_1 = arith.constant 0 : i32
    return %arg0, %c0_i32, %c0_i32_0 : i32, i32, i32
  }
  func.func @transform_2(%arg0: i32) -> (i32, i32) {
    %c0_i32 = arith.constant 0 : i32
    %c0_i32_0 = arith.constant 0 : i32
    %c0_i32_1 = arith.constant 0 : i32
    return %c0_i32, %c0_i32_0 : i32, i32
  }
  func.func @transform_3(%arg0: i32) -> (i32, i32, i32) {
    %c0_i32 = arith.constant 0 : i32
    %c0_i32_0 = arith.constant 0 : i32
    %c0_i32_1 = arith.constant 0 : i32
    return %arg0, %c0_i32, %c0_i32_0 : i32, i32, i32
  }
}

</mosaic_0001>

<llo_original>
// kernel: squeeze.1
$region0: #{squeeze.1}
  %s0 = inlined_call_operand.vmem [shape: bf16[1,2,4096], index: 0, kind: input, shape index: {}]
  %s1 = inlined_call_operand.vmem [shape: bf16[2,4,4,256], index: 1, kind: output, shape index: {}]
  $region1: #{squeeze.1} parent=0
    #allocation0 [shape = 'u8[65536]{0}', space=vmem, size = 0x10000, scoped, tag = 'scoped mem for output reshape']
    #allocation1 [shape = 'u8[131072]{0}', space=vmem, size = 0x20000, scoped, tag = 'scoped mem for input reshape']
    %s3 = smul.u32 1, 2
    %s4 = sshll.u32 1, %s3
    %s5 = ssub.s32 %s4, 1
    %s6 = smul.addr 1, 31
    %s7 = scalar_lea.vmem %s0, %s6
    %s8 = sshrl.u32 %s5, 1
    %s9 = sor.u32 %s5, %s8
    %s10 = sand.u32 %s9, 85
    %s11 = sshrl.u32 %s10, 1
    %s12 = sor.u32 %s10, %s11
    %s13 = sand.u32 51, %s12
    %s14 = sshrl.u32 %s13, 2
    %s15 = sor.u32 %s13, %s14
    %s16 = sand.u32 15, %s15
    %v17 = vld [vmem:[%s7] sm:%s16]
    %v18 = vunpack.c.l.bf16 %v17
    %v19 = vunpack.c.h.bf16 %v17
    %s20 = scalar_lea.vmem [#allocation1], 248
    %21 = vst [vmem:[%s20] sm:%s5] %v18
    %s22 = smul.addr 1, 30
    %s23 = scalar_lea.vmem %s0, %s22
    %s24 = sshrl.u32 %s5, 1
    %s25 = sor.u32 %s5, %s24
    %s26 = sand.u32 %s25, 85
    %s27 = sshrl.u32 %s26, 1
    %s28 = sor.u32 %s26, %s27
    %s29 = sand.u32 51, %s28
    %s30 = sshrl.u32 %s29, 2
    %s31 = sor.u32 %s29, %s30
    %s32 = sand.u32 15, %s31
    %v33 = vld [vmem:[%s23] sm:%s32]
    %v34 = vunpack.c.l.bf16 %v33
    %v35 = vunpack.c.h.bf16 %v33
    %s36 = scalar_lea.vmem [#allocation1], 240
    %37 = vst [vmem:[%s36] sm:%s5] %v34
    %s38 = smul.addr 1, 29
    %s39 = scalar_lea.vmem %s0, %s38
    %s40 = sshrl.u32 %s5, 1
    %s41 = sor.u32 %s5, %s40
    %s42 = sand.u32 %s41, 85
    %s43 = sshrl.u32 %s42, 1
    %s44 = sor.u32 %s42, %s43
    %s45 = sand.u32 51, %s44
    %s46 = sshrl.u32 %s45, 2
    %s47 = sor.u32 %s45, %s46
    %s48 = sand.u32 15, %s47
    %v49 = vld [vmem:[%s39] sm:%s48]
    %v50 = vunpack.c.l.bf16 %v49
    %v51 = vunpack.c.h.bf16 %v49
    %s52 = scalar_lea.vmem [#allocation1], 232
    %53 = vst [vmem:[%s52] sm:%s5] %v50
    %s54 = smul.addr 1, 28
    %s55 = scalar_lea.vmem %s0, %s54
    %s56 = sshrl.u32 %s5, 1
    %s57 = sor.u32 %s5, %s56
    %s58 = sand.u32 %s57, 85
    %s59 = sshrl.u32 %s58, 1
    %s60 = sor.u32 %s58, %s59
    %s61 = sand.u32 51, %s60
    %s62 = sshrl.u32 %s61, 2
    %s63 = sor.u32 %s61, %s62
    %s64 = sand.u32 15, %s63
    %v65 = vld [vmem:[%s55] sm:%s64]
    %v66 = vunpack.c.l.bf16 %v65
    %v67 = vunpack.c.h.bf16 %v65
    %s68 = scalar_lea.vmem [#allocation1], 224
    %69 = vst [vmem:[%s68] sm:%s5] %v66
    %s70 = smul.addr 1, 27
    %s71 = scalar_lea.vmem %s0, %s70
    %s72 = sshrl.u32 %s5, 1
    %s73 = sor.u32 %s5, %s72
    %s74 = sand.u32 %s73, 85
    %s75 = sshrl.u32 %s74, 1
    %s76 = sor.u32 %s74, %s75
    %s77 = sand.u32 51, %s76
    %s78 = sshrl.u32 %s77, 2
    %s79 = sor.u32 %s77, %s78
    %s80 = sand.u32 15, %s79
    %v81 = vld [vmem:[%s71] sm:%s80]
    %v82 = vunpack.c.l.bf16 %v81
    %v83 = vunpack.c.h.bf16 %v81
    %s84 = scalar_lea.vmem [#allocation1], 216
    %85 = vst [vmem:[%s84] sm:%s5] %v82
    %s86 = smul.addr 1, 26
    %s87 = scalar_lea.vmem %s0, %s86
    %s88 = sshrl.u32 %s5, 1
    %s89 = sor.u32 %s5, %s88
    %s90 = sand.u32 %s89, 85
    %s91 = sshrl.u32 %s90, 1
    %s92 = sor.u32 %s90, %s91
    %s93 = sand.u32 51, %s92
    %s94 = sshrl.u32 %s93, 2
    %s95 = sor.u32 %s93, %s94
    %s96 = sand.u32 15, %s95
    %v97 = vld [vmem:[%s87] sm:%s96]
    %v98 = vunpack.c.l.bf16 %v97
    %v99 = vunpack.c.h.bf16 %v97
    %s100 = scalar_lea.vmem [#allocation1], 208
    %101 = vst [vmem:[%s100] sm:%s5] %v98
    %s102 = smul.addr 1, 25
    %s103 = scalar_lea.vmem %s0, %s102
    %s104 = sshrl.u32 %s5, 1
    %s105 = sor.u32 %s5, %s104
    %s106 = sand.u32 %s105, 85
    %s107 = sshrl.u32 %s106, 1
    %s108 = sor.u32 %s106, %s107
    %s109 = sand.u32 51, %s108
    %s110 = sshrl.u32 %s109, 2
    %s111 = sor.u32 %s109, %s110
    %s112 = sand.u32 15, %s111
    %v113 = vld [vmem:[%s103] sm:%s112]
    %v114 = vunpack.c.l.bf16 %v113
    %v115 = vunpack.c.h.bf16 %v113
    %s116 = scalar_lea.vmem [#allocation1], 200
    %117 = vst [vmem:[%s116] sm:%s5] %v114
    %s118 = smul.addr 1, 24
    %s119 = scalar_lea.vmem %s0, %s118
    %s120 = sshrl.u32 %s5, 1
    %s121 = sor.u32 %s5, %s120
    %s122 = sand.u32 %s121, 85
    %s123 = sshrl.u32 %s122, 1
    %s124 = sor.u32 %s122, %s123
    %s125 = sand.u32 51, %s124
    %s126 = sshrl.u32 %s125, 2
    %s127 = sor.u32 %s125, %s126
    %s128 = sand.u32 15, %s127
    %v129 = vld [vmem:[%s119] sm:%s128]
    %v130 = vunpack.c.l.bf16 %v129
    %v131 = vunpack.c.h.bf16 %v129
    %s132 = scalar_lea.vmem [#allocation1], 192
    %133 = vst [vmem:[%s132] sm:%s5] %v130
    %s134 = smul.addr 1, 23
    %s135 = scalar_lea.vmem %s0, %s134
    %s136 = sshrl.u32 %s5, 1
    %s137 = sor.u32 %s5, %s136
    %s138 = sand.u32 %s137, 85
    %s139 = sshrl.u32 %s138, 1
    %s140 = sor.u32 %s138, %s139
    %s141 = sand.u32 51, %s140
    %s142 = sshrl.u32 %s141, 2
    %s143 = sor.u32 %s141, %s142
    %s144 = sand.u32 15, %s143
    %v145 = vld [vmem:[%s135] sm:%s144]
    %v146 = vunpack.c.l.bf16 %v145
    %v147 = vunpack.c.h.bf16 %v145
    %s148 = scalar_lea.vmem [#allocation1], 184
    %149 = vst [vmem:[%s148] sm:%s5] %v146
    %s150 = smul.addr 1, 22
    %s151 = scalar_lea.vmem %s0, %s150
    %s152 = sshrl.u32 %s5, 1
    %s153 = sor.u32 %s5, %s152
    %s154 = sand.u32 %s153, 85
    %s155 = sshrl.u32 %s154, 1
    %s156 = sor.u32 %s154, %s155
    %s157 = sand.u32 51, %s156
    %s158 = sshrl.u32 %s157, 2
    %s159 = sor.u32 %s157, %s158
    %s160 = sand.u32 15, %s159
    %v161 = vld [vmem:[%s151] sm:%s160]
    %v162 = vunpack.c.l.bf16 %v161
    %v163 = vunpack.c.h.bf16 %v161
    %s164 = scalar_lea.vmem [#allocation1], 176
    %165 = vst [vmem:[%s164] sm:%s5] %v162
    %s166 = smul.addr 1, 21
    %s167 = scalar_lea.vmem %s0, %s166
    %s168 = sshrl.u32 %s5, 1
    %s169 = sor.u32 %s5, %s168
    %s170 = sand.u32 %s169, 85
    %s171 = sshrl.u32 %s170, 1
    %s172 = sor.u32 %s170, %s171
    %s173 = sand.u32 51, %s172
    %s174 = sshrl.u32 %s173, 2
    %s175 = sor.u32 %s173, %s174
    %s176 = sand.u32 15, %s175
    %v177 = vld [vmem:[%s167] sm:%s176]
    %v178 = vunpack.c.l.bf16 %v177
    %v179 = vunpack.c.h.bf16 %v177
    %s180 = scalar_lea.vmem [#allocation1], 168
    %181 = vst [vmem:[%s180] sm:%s5] %v178
    %s182 = smul.addr 1, 20
    %s183 = scalar_lea.vmem %s0, %s182
    %s184 = sshrl.u32 %s5, 1
    %s185 = sor.u32 %s5, %s184
    %s186 = sand.u32 %s185, 85
    %s187 = sshrl.u32 %s186, 1
    %s188 = sor.u32 %s186, %s187
    %s189 = sand.u32 51, %s188
    %s190 = sshrl.u32 %s189, 2
    %s191 = sor.u32 %s189, %s190
    %s192 = sand.u32 15, %s191
    %v193 = vld [vmem:[%s183] sm:%s192]
    %v194 = vunpack.c.l.bf16 %v193
    %v195 = vunpack.c.h.bf16 %v193
    %s196 = scalar_lea.vmem [#allocation1], 160
    %197 = vst [vmem:[%s196] sm:%s5] %v194
    %s198 = smul.addr 1, 19
    %s199 = scalar_lea.vmem %s0, %s198
    %s200 = sshrl.u32 %s5, 1
    %s201 = sor.u32 %s5, %s200
    %s202 = sand.u32 %s201, 85
    %s203 = sshrl.u32 %s202, 1
    %s204 = sor.u32 %s202, %s203
    %s205 = sand.u32 51, %s204
    %s206 = sshrl.u32 %s205, 2
    %s207 = sor.u32 %s205, %s206
    %s208 = sand.u32 15, %s207
    %v209 = vld [vmem:[%s199] sm:%s208]
    %v210 = vunpack.c.l.bf16 %v209
    %v211 = vunpack.c.h.bf16 %v209
    %s212 = scalar_lea.vmem [#allocation1], 152
    %213 = vst [vmem:[%s212] sm:%s5] %v210
    %s214 = smul.addr 1, 18
    %s215 = scalar_lea.vmem %s0, %s214
    %s216 = sshrl.u32 %s5, 1
    %s217 = sor.u32 %s5, %s216
    %s218 = sand.u32 %s217, 85
    %s219 = sshrl.u32 %s218, 1
    %s220 = sor.u32 %s218, %s219
    %s221 = sand.u32 51, %s220
    %s222 = sshrl.u32 %s221, 2
    %s223 = sor.u32 %s221, %s222
    %s224 = sand.u32 15, %s223
    %v225 = vld [vmem:[%s215] sm:%s224]
    %v226 = vunpack.c.l.bf16 %v225
    %v227 = vunpack.c.h.bf16 %v225
    %s228 = scalar_lea.vmem [#allocation1], 144
    %229 = vst [vmem:[%s228] sm:%s5] %v226
    %s230 = smul.addr 1, 17
    %s231 = scalar_lea.vmem %s0, %s230
    %s232 = sshrl.u32 %s5, 1
    %s233 = sor.u32 %s5, %s232
    %s234 = sand.u32 %s233, 85
    %s235 = sshrl.u32 %s234, 1
    %s236 = sor.u32 %s234, %s235
    %s237 = sand.u32 51, %s236
    %s238 = sshrl.u32 %s237, 2
    %s239 = sor.u32 %s237, %s238
    %s240 = sand.u32 15, %s239
    %v241 = vld [vmem:[%s231] sm:%s240]
    %v242 = vunpack.c.l.bf16 %v241
    %v243 = vunpack.c.h.bf16 %v241
    %s244 = scalar_lea.vmem [#allocation1], 136
    %245 = vst [vmem:[%s244] sm:%s5] %v242
    %s246 = smul.addr 1, 16
    %s247 = scalar_lea.vmem %s0, %s246
    %s248 = sshrl.u32 %s5, 1
    %s249 = sor.u32 %s5, %s248
    %s250 = sand.u32 %s249, 85
    %s251 = sshrl.u32 %s250, 1
    %s252 = sor.u32 %s250, %s251
    %s253 = sand.u32 51, %s252
    %s254 = sshrl.u32 %s253, 2
    %s255 = sor.u32 %s253, %s254
    %s256 = sand.u32 15, %s255
    %v257 = vld [vmem:[%s247] sm:%s256]
    %v258 = vunpack.c.l.bf16 %v257
    %v259 = vunpack.c.h.bf16 %v257
    %s260 = scalar_lea.vmem [#allocation1], 128
    %261 = vst [vmem:[%s260] sm:%s5] %v258
    %s262 = smul.addr 1, 15
    %s263 = scalar_lea.vmem %s0, %s262
    %s264 = sshrl.u32 %s5, 1
    %s265 = sor.u32 %s5, %s264
    %s266 = sand.u32 %s265, 85
    %s267 = sshrl.u32 %s266, 1
    %s268 = sor.u32 %s266, %s267
    %s269 = sand.u32 51, %s268
    %s270 = sshrl.u32 %s269, 2
    %s271 = sor.u32 %s269, %s270
    %s272 = sand.u32 15, %s271
    %v273 = vld [vmem:[%s263] sm:%s272]
    %v274 = vunpack.c.l.bf16 %v273
    %v275 = vunpack.c.h.bf16 %v273
    %s276 = scalar_lea.vmem [#allocation1], 120
    %277 = vst [vmem:[%s276] sm:%s5] %v274
    %s278 = smul.addr 1, 14
    %s279 = scalar_lea.vmem %s0, %s278
    %s280 = sshrl.u32 %s5, 1
    %s281 = sor.u32 %s5, %s280
    %s282 = sand.u32 %s281, 85
    %s283 = sshrl.u32 %s282, 1
    %s284 = sor.u32 %s282, %s283
    %s285 = sand.u32 51, %s284
    %s286 = sshrl.u32 %s285, 2
    %s287 = sor.u32 %s285, %s286
    %s288 = sand.u32 15, %s287
    %v289 = vld [vmem:[%s279] sm:%s288]
    %v290 = vunpack.c.l.bf16 %v289
    %v291 = vunpack.c.h.bf16 %v289
    %s292 = scalar_lea.vmem [#allocation1], 112
    %293 = vst [vmem:[%s292] sm:%s5] %v290
    %s294 = smul.addr 1, 13
    %s295 = scalar_lea.vmem %s0, %s294
    %s296 = sshrl.u32 %s5, 1
    %s297 = sor.u32 %s5, %s296
    %s298 = sand.u32 %s297, 85
    %s299 = sshrl.u32 %s298, 1
    %s300 = sor.u32 %s298, %s299
    %s301 = sand.u32 51, %s300
    %s302 = sshrl.u32 %s301, 2
    %s303 = sor.u32 %s301, %s302
    %s304 = sand.u32 15, %s303
    %v305 = vld [vmem:[%s295] sm:%s304]
    %v306 = vunpack.c.l.bf16 %v305
    %v307 = vunpack.c.h.bf16 %v305
    %s308 = scalar_lea.vmem [#allocation1], 104
    %309 = vst [vmem:[%s308] sm:%s5] %v306
    %s310 = smul.addr 1, 12
    %s311 = scalar_lea.vmem %s0, %s310
    %s312 = sshrl.u32 %s5, 1
    %s313 = sor.u32 %s5, %s312
    %s314 = sand.u32 %s313, 85
    %s315 = sshrl.u32 %s314, 1
    %s316 = sor.u32 %s314, %s315
    %s317 = sand.u32 51, %s316
    %s318 = sshrl.u32 %s317, 2
    %s319 = sor.u32 %s317, %s318
    %s320 = sand.u32 15, %s319
    %v321 = vld [vmem:[%s311] sm:%s320]
    %v322 = vunpack.c.l.bf16 %v321
    %v323 = vunpack.c.h.bf16 %v321
    %s324 = scalar_lea.vmem [#allocation1], 96
    %325 = vst [vmem:[%s324] sm:%s5] %v322
    %s326 = smul.addr 1, 11
    %s327 = scalar_lea.vmem %s0, %s326
    %s328 = sshrl.u32 %s5, 1
    %s329 = sor.u32 %s5, %s328
    %s330 = sand.u32 %s329, 85
    %s331 = sshrl.u32 %s330, 1
    %s332 = sor.u32 %s330, %s331
    %s333 = sand.u32 51, %s332
    %s334 = sshrl.u32 %s333, 2
    %s335 = sor.u32 %s333, %s334
    %s336 = sand.u32 15, %s335
    %v337 = vld [vmem:[%s327] sm:%s336]
    %v338 = vunpack.c.l.bf16 %v337
    %v339 = vunpack.c.h.bf16 %v337
    %s340 = scalar_lea.vmem [#allocation1], 88
    %341 = vst [vmem:[%s340] sm:%s5] %v338
    %s342 = smul.addr 1, 10
    %s343 = scalar_lea.vmem %s0, %s342
    %s344 = sshrl.u32 %s5, 1
    %s345 = sor.u32 %s5, %s344
    %s346 = sand.u32 %s345, 85
    %s347 = sshrl.u32 %s346, 1
    %s348 = sor.u32 %s346, %s347
    %s349 = sand.u32 51, %s348
    %s350 = sshrl.u32 %s349, 2
    %s351 = sor.u32 %s349, %s350
    %s352 = sand.u32 15, %s351
    %v353 = vld [vmem:[%s343] sm:%s352]
    %v354 = vunpack.c.l.bf16 %v353
    %v355 = vunpack.c.h.bf16 %v353
    %s356 = scalar_lea.vmem [#allocation1], 80
    %357 = vst [vmem:[%s356] sm:%s5] %v354
    %s358 = smul.addr 1, 9
    %s359 = scalar_lea.vmem %s0, %s358
    %s360 = sshrl.u32 %s5, 1
    %s361 = sor.u32 %s5, %s360
    %s362 = sand.u32 %s361, 85
    %s363 = sshrl.u32 %s362, 1
    %s364 = sor.u32 %s362, %s363
    %s365 = sand.u32 51, %s364
    %s366 = sshrl.u32 %s365, 2
    %s367 = sor.u32 %s365, %s366
    %s368 = sand.u32 15, %s367
    %v369 = vld [vmem:[%s359] sm:%s368]
    %v370 = vunpack.c.l.bf16 %v369
    %v371 = vunpack.c.h.bf16 %v369
    %s372 = scalar_lea.vmem [#allocation1], 72
    %373 = vst [vmem:[%s372] sm:%s5] %v370
    %s374 = smul.addr 1, 8
    %s375 = scalar_lea.vmem %s0, %s374
    %s376 = sshrl.u32 %s5, 1
    %s377 = sor.u32 %s5, %s376
    %s378 = sand.u32 %s377, 85
    %s379 = sshrl.u32 %s378, 1
    %s380 = sor.u32 %s378, %s379
    %s381 = sand.u32 51, %s380
    %s382 = sshrl.u32 %s381, 2
    %s383 = sor.u32 %s381, %s382
    %s384 = sand.u32 15, %s383
    %v385 = vld [vmem:[%s375] sm:%s384]
    %v386 = vunpack.c.l.bf16 %v385
    %v387 = vunpack.c.h.bf16 %v385
    %s388 = scalar_lea.vmem [#allocation1], 64
    %389 = vst [vmem:[%s388] sm:%s5] %v386
    %s390 = smul.addr 1, 7
    %s391 = scalar_lea.vmem %s0, %s390
    %s392 = sshrl.u32 %s5, 1
    %s393 = sor.u32 %s5, %s392
    %s394 = sand.u32 %s393, 85
    %s395 = sshrl.u32 %s394, 1
    %s396 = sor.u32 %s394, %s395
    %s397 = sand.u32 51, %s396
    %s398 = sshrl.u32 %s397, 2
    %s399 = sor.u32 %s397, %s398
    %s400 = sand.u32 15, %s399
    %v401 = vld [vmem:[%s391] sm:%s400]
    %v402 = vunpack.c.l.bf16 %v401
    %v403 = vunpack.c.h.bf16 %v401
    %s404 = scalar_lea.vmem [#allocation1], 56
    %405 = vst [vmem:[%s404] sm:%s5] %v402
    %s406 = smul.addr 1, 6
    %s407 = scalar_lea.vmem %s0, %s406
    %s408 = sshrl.u32 %s5, 1
    %s409 = sor.u32 %s5, %s408
    %s410 = sand.u32 %s409, 85
    %s411 = sshrl.u32 %s410, 1
    %s412 = sor.u32 %s410, %s411
    %s413 = sand.u32 51, %s412
    %s414 = sshrl.u32 %s413, 2
    %s415 = sor.u32 %s413, %s414
    %s416 = sand.u32 15, %s415
    %v417 = vld [vmem:[%s407] sm:%s416]
    %v418 = vunpack.c.l.bf16 %v417
    %v419 = vunpack.c.h.bf16 %v417
    %s420 = scalar_lea.vmem [#allocation1], 48
    %421 = vst [vmem:[%s420] sm:%s5] %v418
    %s422 = smul.addr 1, 5
    %s423 = scalar_lea.vmem %s0, %s422
    %s424 = sshrl.u32 %s5, 1
    %s425 = sor.u32 %s5, %s424
    %s426 = sand.u32 %s425, 85
    %s427 = sshrl.u32 %s426, 1
    %s428 = sor.u32 %s426, %s427
    %s429 = sand.u32 51, %s428
    %s430 = sshrl.u32 %s429, 2
    %s431 = sor.u32 %s429, %s430
    %s432 = sand.u32 15, %s431
    %v433 = vld [vmem:[%s423] sm:%s432]
    %v434 = vunpack.c.l.bf16 %v433
    %v435 = vunpack.c.h.bf16 %v433
    %s436 = scalar_lea.vmem [#allocation1], 40
    %437 = vst [vmem:[%s436] sm:%s5] %v434
    %s438 = smul.addr 1, 4
    %s439 = scalar_lea.vmem %s0, %s438
    %s440 = sshrl.u32 %s5, 1
    %s441 = sor.u32 %s5, %s440
    %s442 = sand.u32 %s441, 85
    %s443 = sshrl.u32 %s442, 1
    %s444 = sor.u32 %s442, %s443
    %s445 = sand.u32 51, %s444
    %s446 = sshrl.u32 %s445, 2
    %s447 = sor.u32 %s445, %s446
    %s448 = sand.u32 15, %s447
    %v449 = vld [vmem:[%s439] sm:%s448]
    %v450 = vunpack.c.l.bf16 %v449
    %v451 = vunpack.c.h.bf16 %v449
    %s452 = scalar_lea.vmem [#allocation1], 32
    %453 = vst [vmem:[%s452] sm:%s5] %v450
    %s454 = smul.addr 1, 3
    %s455 = scalar_lea.vmem %s0, %s454
    %s456 = sshrl.u32 %s5, 1
    %s457 = sor.u32 %s5, %s456
    %s458 = sand.u32 %s457, 85
    %s459 = sshrl.u32 %s458, 1
    %s460 = sor.u32 %s458, %s459
    %s461 = sand.u32 51, %s460
    %s462 = sshrl.u32 %s461, 2
    %s463 = sor.u32 %s461, %s462
    %s464 = sand.u32 15, %s463
    %v465 = vld [vmem:[%s455] sm:%s464]
    %v466 = vunpack.c.l.bf16 %v465
    %v467 = vunpack.c.h.bf16 %v465
    %s468 = scalar_lea.vmem [#allocation1], 24
    %469 = vst [vmem:[%s468] sm:%s5] %v466
    %s470 = smul.addr 1, 2
    %s471 = scalar_lea.vmem %s0, %s470
    %s472 = sshrl.u32 %s5, 1
    %s473 = sor.u32 %s5, %s472
    %s474 = sand.u32 %s473, 85
    %s475 = sshrl.u32 %s474, 1
    %s476 = sor.u32 %s474, %s475
    %s477 = sand.u32 51, %s476
    %s478 = sshrl.u32 %s477, 2
    %s479 = sor.u32 %s477, %s478
    %s480 = sand.u32 15, %s479
    %v481 = vld [vmem:[%s471] sm:%s480]
    %v482 = vunpack.c.l.bf16 %v481
    %v483 = vunpack.c.h.bf16 %v481
    %s484 = scalar_lea.vmem [#allocation1], 16
    %485 = vst [vmem:[%s484] sm:%s5] %v482
    %s486 = scalar_lea.vmem %s0, 1
    %s487 = sshrl.u32 %s5, 1
    %s488 = sor.u32 %s5, %s487
    %s489 = sand.u32 %s488, 85
    %s490 = sshrl.u32 %s489, 1
    %s491 = sor.u32 %s489, %s490
    %s492 = sand.u32 51, %s491
    %s493 = sshrl.u32 %s492, 2
    %s494 = sor.u32 %s492, %s493
    %s495 = sand.u32 15, %s494
    %v496 = vld [vmem:[%s486] sm:%s495]
    %v497 = vunpack.c.l.bf16 %v496
    %v498 = vunpack.c.h.bf16 %v496
    %s499 = scalar_lea.vmem [#allocation1], 8
    %500 = vst [vmem:[%s499] sm:%s5] %v497
    %s501 = sshrl.u32 %s5, 1
    %s502 = sor.u32 %s5, %s501
    %s503 = sand.u32 %s502, 85
    %s504 = sshrl.u32 %s503, 1
    %s505 = sor.u32 %s503, %s504
    %s506 = sand.u32 51, %s505
    %s507 = sshrl.u32 %s506, 2
    %s508 = sor.u32 %s506, %s507
    %s509 = sand.u32 15, %s508
    %v510 = vld [vmem:[%s0] sm:%s509]
    %v511 = vunpack.c.l.bf16 %v510
    %v512 = vunpack.c.h.bf16 %v510
    %513 = vst [vmem:[#allocation1] sm:%s5] %v511
    %v514 = vld [vmem:[#allocation1] sm:$0x3]
    %515 = vst [vmem:[#allocation0] sm:$0x1] %v514
    %s516 = scalar_lea.vmem [#allocation0], 63
    %517 = vst [vmem:[%s516] sm:$0x2] %v514
    %s518 = scalar_lea.vmem [#allocation1], 8
    %v519 = vld [vmem:[%s518] sm:$0x3]
    %s520 = scalar_lea.vmem [#allocation0], 8
    %521 = vst [vmem:[%s520] sm:$0x1] %v519
    %s522 = scalar_lea.vmem [#allocation0], 71
    %523 = vst [vmem:[%s522] sm:$0x2] %v519
    %s524 = scalar_lea.vmem [#allocation1], 16
    %v525 = vld [vmem:[%s524] sm:$0x3]
    %s526 = scalar_lea.vmem [#allocation0], 1
    %527 = vst [vmem:[%s526] sm:$0x1] %v525
    %s528 = scalar_lea.vmem [#allocation0], 64
    %529 = vst [vmem:[%s528] sm:$0x2] %v525
    %s530 = scalar_lea.vmem [#allocation1], 24
    %v531 = vld [vmem:[%s530] sm:$0x3]
    %s532 = scalar_lea.vmem [#allocation0], 9
    %533 = vst [vmem:[%s532] sm:$0x1] %v531
    %s534 = scalar_lea.vmem [#allocation0], 72
    %535 = vst [vmem:[%s534] sm:$0x2] %v531
    %s536 = scalar_lea.vmem [#allocation1], 32
    %v537 = vld [vmem:[%s536] sm:$0x3]
    %s538 = scalar_lea.vmem [#allocation0], 2
    %539 = vst [vmem:[%s538] sm:$0x1] %v537
    %s540 = scalar_lea.vmem [#allocation0], 65
    %541 = vst [vmem:[%s540] sm:$0x2] %v537
    %s542 = scalar_lea.vmem [#allocation1], 40
    %v543 = vld [vmem:[%s542] sm:$0x3]
    %s544 = scalar_lea.vmem [#allocation0], 10
    %545 = vst [vmem:[%s544] sm:$0x1] %v543
    %s546 = scalar_lea.vmem [#allocation0], 73
    %547 = vst [vmem:[%s546] sm:$0x2] %v543
    %s548 = scalar_lea.vmem [#allocation1], 48
    %v549 = vld [vmem:[%s548] sm:$0x3]
    %s550 = scalar_lea.vmem [#allocation0], 3
    %551 = vst [vmem:[%s550] sm:$0x1] %v549
    %s552 = scalar_lea.vmem [#allocation0], 66
    %553 = vst [vmem:[%s552] sm:$0x2] %v549
    %s554 = scalar_lea.vmem [#allocation1], 56
    %v555 = vld [vmem:[%s554] sm:$0x3]
    %s556 = scalar_lea.vmem [#allocation0], 11
    %557 = vst [vmem:[%s556] sm:$0x1] %v555
    %s558 = scalar_lea.vmem [#allocation0], 74
    %559 = vst [vmem:[%s558] sm:$0x2] %v555
    %s560 = scalar_lea.vmem [#allocation1], 64
    %v561 = vld [vmem:[%s560] sm:$0x3]
    %s562 = scalar_lea.vmem [#allocation0], 16
    %563 = vst [vmem:[%s562] sm:$0x1] %v561
    %s564 = scalar_lea.vmem [#allocation0], 79
    %565 = vst [vmem:[%s564] sm:$0x2] %v561
    %s566 = scalar_lea.vmem [#allocation1], 72
    %v567 = vld [vmem:[%s566] sm:$0x3]
    %s568 = scalar_lea.vmem [#allocation0], 24
    %569 = vst [vmem:[%s568] sm:$0x1] %v567
    %s570 = scalar_lea.vmem [#allocation0], 87
    %571 = vst [vmem:[%s570] sm:$0x2] %v567
    %s572 = scalar_lea.vmem [#allocation1], 80
    %v573 = vld [vmem:[%s572] sm:$0x3]
    %s574 = scalar_lea.vmem [#allocation0], 17
    %575 = vst [vmem:[%s574] sm:$0x1] %v573
    %s576 = scalar_lea.vmem [#allocation0], 80
    %577 = vst [vmem:[%s576] sm:$0x2] %v573
    %s578 = scalar_lea.vmem [#allocation1], 88
    %v579 = vld [vmem:[%s578] sm:$0x3]
    %s580 = scalar_lea.vmem [#allocation0], 25
    %581 = vst [vmem:[%s580] sm:$0x1] %v579
    %s582 = scalar_lea.vmem [#allocation0], 88
    %583 = vst [vmem:[%s582] sm:$0x2] %v579
    %s584 = scalar_lea.vmem [#allocation1], 96
    %v585 = vld [vmem:[%s584] sm:$0x3]
    %s586 = scalar_lea.vmem [#allocation0], 18
    %587 = vst [vmem:[%s586] sm:$0x1] %v585
    %s588 = scalar_lea.vmem [#allocation0], 81
    %589 = vst [vmem:[%s588] sm:$0x2] %v585
    %s590 = scalar_lea.vmem [#allocation1], 104
    %v591 = vld [vmem:[%s590] sm:$0x3]
    %s592 = scalar_lea.vmem [#allocation0], 26
    %593 = vst [vmem:[%s592] sm:$0x1] %v591
    %s594 = scalar_lea.vmem [#allocation0], 89
    %595 = vst [vmem:[%s594] sm:$0x2] %v591
    %s596 = scalar_lea.vmem [#allocation1], 112
    %v597 = vld [vmem:[%s596] sm:$0x3]
    %s598 = scalar_lea.vmem [#allocation0], 19
    %599 = vst [vmem:[%s598] sm:$0x1] %v597
    %s600 = scalar_lea.vmem [#allocation0], 82
    %601 = vst [vmem:[%s600] sm:$0x2] %v597
    %s602 = scalar_lea.vmem [#allocation1], 120
    %v603 = vld [vmem:[%s602] sm:$0x3]
    %s604 = scalar_lea.vmem [#allocation0], 27
    %605 = vst [vmem:[%s604] sm:$0x1] %v603
    %s606 = scalar_lea.vmem [#allocation0], 90
    %607 = vst [vmem:[%s606] sm:$0x2] %v603
    %s608 = scalar_lea.vmem [#allocation1], 128
    %v609 = vld [vmem:[%s608] sm:$0x3]
    %s610 = scalar_lea.vmem [#allocation0], 32
    %611 = vst [vmem:[%s610] sm:$0x1] %v609
    %s612 = scalar_lea.vmem [#allocation0], 95
    %613 = vst [vmem:[%s612] sm:$0x2] %v609
    %s614 = scalar_lea.vmem [#allocation1], 136
    %v615 = vld [vmem:[%s614] sm:$0x3]
    %s616 = scalar_lea.vmem [#allocation0], 40
    %617 = vst [vmem:[%s616] sm:$0x1] %v615
    %s618 = scalar_lea.vmem [#allocation0], 103
    %619 = vst [vmem:[%s618] sm:$0x2] %v615
    %s620 = scalar_lea.vmem [#allocation1], 144
    %v621 = vld [vmem:[%s620] sm:$0x3]
    %s622 = scalar_lea.vmem [#allocation0], 33
    %623 = vst [vmem:[%s622] sm:$0x1] %v621
    %s624 = scalar_lea.vmem [#allocation0], 96
    %625 = vst [vmem:[%s624] sm:$0x2] %v621
    %s626 = scalar_lea.vmem [#allocation1], 152
    %v627 = vld [vmem:[%s626] sm:$0x3]
    %s628 = scalar_lea.vmem [#allocation0], 41
    %629 = vst [vmem:[%s628] sm:$0x1] %v627
    %s630 = scalar_lea.vmem [#allocation0], 104
    %631 = vst [vmem:[%s630] sm:$0x2] %v627
    %s632 = scalar_lea.vmem [#allocation1], 160
    %v633 = vld [vmem:[%s632] sm:$0x3]
    %s634 = scalar_lea.vmem [#allocation0], 34
    %635 = vst [vmem:[%s634] sm:$0x1] %v633
    %s636 = scalar_lea.vmem [#allocation0], 97
    %637 = vst [vmem:[%s636] sm:$0x2] %v633
    %s638 = scalar_lea.vmem [#allocation1], 168
    %v639 = vld [vmem:[%s638] sm:$0x3]
    %s640 = scalar_lea.vmem [#allocation0], 42
    %641 = vst [vmem:[%s640] sm:$0x1] %v639
    %s642 = scalar_lea.vmem [#allocation0], 105
    %643 = vst [vmem:[%s642] sm:$0x2] %v639
    %s644 = scalar_lea.vmem [#allocation1], 176
    %v645 = vld [vmem:[%s644] sm:$0x3]
    %s646 = scalar_lea.vmem [#allocation0], 35
    %647 = vst [vmem:[%s646] sm:$0x1] %v645
    %s648 = scalar_lea.vmem [#allocation0], 98
    %649 = vst [vmem:[%s648] sm:$0x2] %v645
    %s650 = scalar_lea.vmem [#allocation1], 184
    %v651 = vld [vmem:[%s650] sm:$0x3]
    %s652 = scalar_lea.vmem [#allocation0], 43
    %653 = vst [vmem:[%s652] sm:$0x1] %v651
    %s654 = scalar_lea.vmem [#allocation0], 106
    %655 = vst [vmem:[%s654] sm:$0x2] %v651
    %s656 = scalar_lea.vmem [#allocation1], 192
    %v657 = vld [vmem:[%s656] sm:$0x3]
    %s658 = scalar_lea.vmem [#allocation0], 48
    %659 = vst [vmem:[%s658] sm:$0x1] %v657
    %s660 = scalar_lea.vmem [#allocation0], 111
    %661 = vst [vmem:[%s660] sm:$0x2] %v657
    %s662 = scalar_lea.vmem [#allocation1], 200
    %v663 = vld [vmem:[%s662] sm:$0x3]
    %s664 = scalar_lea.vmem [#allocation0], 56
    %665 = vst [vmem:[%s664] sm:$0x1] %v663
    %s666 = scalar_lea.vmem [#allocation0], 119
    %667 = vst [vmem:[%s666] sm:$0x2] %v663
    %s668 = scalar_lea.vmem [#allocation1], 208
    %v669 = vld [vmem:[%s668] sm:$0x3]
    %s670 = scalar_lea.vmem [#allocation0], 49
    %671 = vst [vmem:[%s670] sm:$0x1] %v669
    %s672 = scalar_lea.vmem [#allocation0], 112
    %673 = vst [vmem:[%s672] sm:$0x2] %v669
    %s674 = scalar_lea.vmem [#allocation1], 216
    %v675 = vld [vmem:[%s674] sm:$0x3]
    %s676 = scalar_lea.vmem [#allocation0], 57
    %677 = vst [vmem:[%s676] sm:$0x1] %v675
    %s678 = scalar_lea.vmem [#allocation0], 120
    %679 = vst [vmem:[%s678] sm:$0x2] %v675
    %s680 = scalar_lea.vmem [#allocation1], 224
    %v681 = vld [vmem:[%s680] sm:$0x3]
    %s682 = scalar_lea.vmem [#allocation0], 50
    %683 = vst [vmem:[%s682] sm:$0x1] %v681
    %s684 = scalar_lea.vmem [#allocation0], 113
    %685 = vst [vmem:[%s684] sm:$0x2] %v681
    %s686 = scalar_lea.vmem [#allocation1], 232
    %v687 = vld [vmem:[%s686] sm:$0x3]
    %s688 = scalar_lea.vmem [#allocation0], 58
    %689 = vst [vmem:[%s688] sm:$0x1] %v687
    %s690 = scalar_lea.vmem [#allocation0], 121
    %691 = vst [vmem:[%s690] sm:$0x2] %v687
    %s692 = scalar_lea.vmem [#allocation1], 240
    %v693 = vld [vmem:[%s692] sm:$0x3]
    %s694 = scalar_lea.vmem [#allocation0], 51
    %695 = vst [vmem:[%s694] sm:$0x1] %v693
    %s696 = scalar_lea.vmem [#allocation0], 114
    %697 = vst [vmem:[%s696] sm:$0x2] %v693
    %s698 = scalar_lea.vmem [#allocation1], 248
    %v699 = vld [vmem:[%s698] sm:$0x3]
    %s700 = scalar_lea.vmem [#allocation0], 59
    %701 = vst [vmem:[%s700] sm:$0x1] %v699
    %s702 = scalar_lea.vmem [#allocation0], 122
    %703 = vst [vmem:[%s702] sm:$0x2] %v699
    %s705 = smul.u32 2, 2
    %s706 = sshll.u32 1, %s705
    %s707 = ssub.s32 %s706, 1
    %s708 = sshrl.u32 %s705, 1
    %v709 = vld [vmem:[#allocation0] sm:%s707]
    %v710 = vpack.c.bf16 0.0, %v709
    %s711 = sshll.u32 1, %s708
    %s712 = ssub.s32 %s711, 1
    %713 = vst [vmem:[%s1] sm:%s712] %v710
    %s714 = scalar_lea.vmem [#allocation0], 8
    %v715 = vld [vmem:[%s714] sm:%s707]
    %v716 = vpack.c.bf16 0.0, %v715
    %s717 = sshll.u32 1, %s708
    %s718 = ssub.s32 %s717, 1
    %s719 = scalar_lea.vmem %s1, 2
    %720 = vst [vmem:[%s719] sm:%s718] %v716
    %s721 = scalar_lea.vmem [#allocation0], 16
    %v722 = vld [vmem:[%s721] sm:%s707]
    %v723 = vpack.c.bf16 0.0, %v722
    %s724 = sshll.u32 1, %s708
    %s725 = ssub.s32 %s724, 1
    %s726 = smul.addr 2, 2
    %s727 = scalar_lea.vmem %s1, %s726
    %728 = vst [vmem:[%s727] sm:%s725] %v723
    %s729 = scalar_lea.vmem [#allocation0], 24
    %v730 = vld [vmem:[%s729] sm:%s707]
    %v731 = vpack.c.bf16 0.0, %v730
    %s732 = sshll.u32 1, %s708
    %s733 = ssub.s32 %s732, 1
    %s734 = smul.addr 2, 3
    %s735 = scalar_lea.vmem %s1, %s734
    %736 = vst [vmem:[%s735] sm:%s733] %v731
    %s737 = scalar_lea.vmem [#allocation0], 32
    %v738 = vld [vmem:[%s737] sm:%s707]
    %v739 = vpack.c.bf16 0.0, %v738
    %s740 = sshll.u32 1, %s708
    %s741 = ssub.s32 %s740, 1
    %s742 = smul.addr 2, 4
    %s743 = scalar_lea.vmem %s1, %s742
    %744 = vst [vmem:[%s743] sm:%s741] %v739
    %s745 = scalar_lea.vmem [#allocation0], 40
    %v746 = vld [vmem:[%s745] sm:%s707]
    %v747 = vpack.c.bf16 0.0, %v746
    %s748 = sshll.u32 1, %s708
    %s749 = ssub.s32 %s748, 1
    %s750 = smul.addr 2, 5
    %s751 = scalar_lea.vmem %s1, %s750
    %752 = vst [vmem:[%s751] sm:%s749] %v747
    %s753 = scalar_lea.vmem [#allocation0], 48
    %v754 = vld [vmem:[%s753] sm:%s707]
    %v755 = vpack.c.bf16 0.0, %v754
    %s756 = sshll.u32 1, %s708
    %s757 = ssub.s32 %s756, 1
    %s758 = smul.addr 2, 6
    %s759 = scalar_lea.vmem %s1, %s758
    %760 = vst [vmem:[%s759] sm:%s757] %v755
    %s761 = scalar_lea.vmem [#allocation0], 56
    %v762 = vld [vmem:[%s761] sm:%s707]
    %v763 = vpack.c.bf16 0.0, %v762
    %s764 = sshll.u32 1, %s708
    %s765 = ssub.s32 %s764, 1
    %s766 = smul.addr 2, 7
    %s767 = scalar_lea.vmem %s1, %s766
    %768 = vst [vmem:[%s767] sm:%s765] %v763
    %s769 = scalar_lea.vmem [#allocation0], 64
    %v770 = vld [vmem:[%s769] sm:%s707]
    %v771 = vpack.c.bf16 0.0, %v770
    %s772 = sshll.u32 1, %s708
    %s773 = ssub.s32 %s772, 1
    %s774 = smul.addr 2, 8
    %s775 = scalar_lea.vmem %s1, %s774
    %776 = vst [vmem:[%s775] sm:%s773] %v771
    %s777 = scalar_lea.vmem [#allocation0], 72
    %v778 = vld [vmem:[%s777] sm:%s707]
    %v779 = vpack.c.bf16 0.0, %v778
    %s780 = sshll.u32 1, %s708
    %s781 = ssub.s32 %s780, 1
    %s782 = smul.addr 2, 9
    %s783 = scalar_lea.vmem %s1, %s782
    %784 = vst [vmem:[%s783] sm:%s781] %v779
    %s785 = scalar_lea.vmem [#allocation0], 80
    %v786 = vld [vmem:[%s785] sm:%s707]
    %v787 = vpack.c.bf16 0.0, %v786
    %s788 = sshll.u32 1, %s708
    %s789 = ssub.s32 %s788, 1
    %s790 = smul.addr 2, 10
    %s791 = scalar_lea.vmem %s1, %s790
    %792 = vst [vmem:[%s791] sm:%s789] %v787
    %s793 = scalar_lea.vmem [#allocation0], 88
    %v794 = vld [vmem:[%s793] sm:%s707]
    %v795 = vpack.c.bf16 0.0, %v794
    %s796 = sshll.u32 1, %s708
    %s797 = ssub.s32 %s796, 1
    %s798 = smul.addr 2, 11
    %s799 = scalar_lea.vmem %s1, %s798
    %800 = vst [vmem:[%s799] sm:%s797] %v795
    %s801 = scalar_lea.vmem [#allocation0], 96
    %v802 = vld [vmem:[%s801] sm:%s707]
    %v803 = vpack.c.bf16 0.0, %v802
    %s804 = sshll.u32 1, %s708
    %s805 = ssub.s32 %s804, 1
    %s806 = smul.addr 2, 12
    %s807 = scalar_lea.vmem %s1, %s806
    %808 = vst [vmem:[%s807] sm:%s805] %v803
    %s809 = scalar_lea.vmem [#allocation0], 104
    %v810 = vld [vmem:[%s809] sm:%s707]
    %v811 = vpack.c.bf16 0.0, %v810
    %s812 = sshll.u32 1, %s708
    %s813 = ssub.s32 %s812, 1
    %s814 = smul.addr 2, 13
    %s815 = scalar_lea.vmem %s1, %s814
    %816 = vst [vmem:[%s815] sm:%s813] %v811
    %s817 = scalar_lea.vmem [#allocation0], 112
    %v818 = vld [vmem:[%s817] sm:%s707]
    %v819 = vpack.c.bf16 0.0, %v818
    %s820 = sshll.u32 1, %s708
    %s821 = ssub.s32 %s820, 1
    %s822 = smul.addr 2, 14
    %s823 = scalar_lea.vmem %s1, %s822
    %824 = vst [vmem:[%s823] sm:%s821] %v819
    %s825 = scalar_lea.vmem [#allocation0], 120
    %v826 = vld [vmem:[%s825] sm:%s707]
    %v827 = vpack.c.bf16 0.0, %v826
    %s828 = sshll.u32 1, %s708
    %s829 = ssub.s32 %s828, 1
    %s830 = smul.addr 2, 15
    %s831 = scalar_lea.vmem %s1, %s830
    %832 = vst [vmem:[%s831] sm:%s829] %v827

// kernel: vae_decoder_forward.5
$region0: #{vae_decoder_forward.5}
  #allocation0 [shape = 'u32[]', space=smem, size = 0x4, offset = 0x4, fixed_abs, tag = 'smem constant byte address 0x4 - core index']
  #allocation1 [shape = 'u32[144,128]{1,0:T(1,128)}', space=vmem, size = 0x12000, scoped, tag = 'internal scratch']
  %s0 = inlined_call_operand.vmem [shape: bf16[4,32,1024], index: 0, kind: input, shape index: {}]
  %s1 = inlined_call_operand.vmem [shape: bf16[4,1024,128], index: 1, kind: input, shape index: {}]
  %s2 = inlined_call_operand.hbm [shape: f32[1,128], index: 2, kind: input, shape index: {}]
  %s3 = inlined_call_operand.vmem [shape: bf16[4,32,128], index: 3, kind: output, shape index: {}]
  %s4 = sld [smem:[#allocation0]]
  $region49: #{vae_decoder_forward.5} parent=0
    _
  %s6 = ssub.s32 1, %s4
  %s7 = scalar_select 0, %s6, %s4
  $region1: #{vae_decoder_forward.5} parent=0
    #allocation2 [shape = 'u8[512]{0}', space=vmem, size = 0x400, scoped, tag = 'input window, operand 2, single buffered']
    #allocation3 [shape = 's32[2]{0}', space=sflag, size = 0x8, scoped, tag = 'scoped memory for vae_decoder_forward.5']
    %8 = vsyncpa [#allocation3], 0
    loop: start=0, step=1, limit=6
    $region2: #{vae_decoder_forward.5} parent=1 // loop_pre_header
      _
    $region3: #{vae_decoder_forward.5} parent=1 // loop_header
      %s10 = sphi 0, %s14
      %p11 = scmp.ge.s32.totalorder %s10, 6
      %s20 = sphi 0, %s22
      %s23 = sphi 0, %s20
      %s24 = sphi 0, %s23
      %s40 = sphi 0, %s24
      %s46 = sphi 0, %s48
      %s49 = sphi 0, %s46
      %s50 = sphi 0, %s49
      %s66 = sphi 0, %s50
      %s70 = sphi 0, %s70
      %s72 = sphi 0, %s70
      %s73 = sphi 0, %s72
      %s87 = sphi 0, %s73
      %s93 = sphi 0, %s95
      %s96 = sphi 0, %s93
      %s97 = sphi 0, %s96
      %s113 = sphi 0, %s97
    $region4: #{vae_decoder_forward.5} parent=1 // loop_header_branch
      %13 = sbr.rel (%p11) target = $region8
    $region5: #{vae_decoder_forward.5} parent=1 // loop_body
      %s15 = ssub.s32 %s10, 1
      %s16 = ssub.s32 %s10, 2
      %s17 = sadd.s32 %s10, 1
      %s18 = ssub.s32 %s10, %s17
      %p19 = scmp.eq.s32.totalorder %s18, 0
      %s21 = sadd.s32 %s20, 1
      %s22 = scalar_select %p19, %s20, %s21
      %p25 = pneg %p19
      %p26 = scmp.eq.s32.totalorder %s10, 3
      %p27 = por %p25, %p26
      %p28 = scmp.ne.s32.totalorder %s20, %s23
      %p29 = scmp.eq.s32.totalorder %s10, 0
      %p30 = por %p28, %p29
      %p31 = scmp.ne.s32.totalorder %s20, %s23
      %p32 = scmp.eq.s32.totalorder %s15, 3
      %p33 = por %p31, %p32
      %p34 = scmp.ne.s32.totalorder %s23, %s24
      %p35 = scmp.eq.s32.totalorder %s15, 0
      %p36 = por %p34, %p35
      %p37 = scmp.ne.s32.totalorder %s23, %s24
      %p38 = scmp.eq.s32.totalorder %s16, 3
      %p39 = por %p37, %p38
      %p41 = scmp.ne.s32.totalorder %s24, %s40
      %p42 = scmp.eq.s32.totalorder %s16, 0
      %p43 = por %p41, %p42
      %s44 = ssub.s32 %s10, %s17
      %p45 = scmp.eq.s32.totalorder %s44, 0
      %s47 = sadd.s32 %s46, 1
      %s48 = scalar_select %p45, %s46, %s47
      %p51 = pneg %p45
      %p52 = scmp.eq.s32.totalorder %s10, 3
      %p53 = por %p51, %p52
      %p54 = scmp.ne.s32.totalorder %s46, %s49
      %p55 = scmp.eq.s32.totalorder %s10, 0
      %p56 = por %p54, %p55
      %p57 = scmp.ne.s32.totalorder %s46, %s49
      %p58 = scmp.eq.s32.totalorder %s15, 3
      %p59 = por %p57, %p58
      %p60 = scmp.ne.s32.totalorder %s49, %s50
      %p61 = scmp.eq.s32.totalorder %s15, 0
      %p62 = por %p60, %p61
      %p63 = scmp.ne.s32.totalorder %s49, %s50
      %p64 = scmp.eq.s32.totalorder %s16, 3
      %p65 = por %p63, %p64
      %p67 = scmp.ne.s32.totalorder %s50, %s66
      %p68 = scmp.eq.s32.totalorder %s16, 0
      %p69 = por %p67, %p68
      %s71 = sadd.s32 %s70, 1
      %p74 = scmp.eq.s32.totalorder %s10, 3
      %p75 = scmp.ne.s32.totalorder %s70, %s72
      %p76 = scmp.eq.s32.totalorder %s10, 0
      %p77 = por %p75, %p76
      %p78 = scmp.ne.s32.totalorder %s70, %s72
      %p79 = scmp.eq.s32.totalorder %s15, 3
      %p80 = por %p78, %p79
      %p81 = scmp.ne.s32.totalorder %s72, %s73
      %p82 = scmp.eq.s32.totalorder %s15, 0
      %p83 = por %p81, %p82
      %p84 = scmp.ne.s32.totalorder %s72, %s73
      %p85 = scmp.eq.s32.totalorder %s16, 3
      %p86 = por %p84, %p85
      %p88 = scmp.ne.s32.totalorder %s73, %s87
      %p89 = scmp.eq.s32.totalorder %s16, 0
      %p90 = por %p88, %p89
      %s91 = ssub.s32 %s10, %s17
      %p92 = scmp.eq.s32.totalorder %s91, 0
      %s94 = sadd.s32 %s93, 1
      %s95 = scalar_select %p92, %s93, %s94
      %p98 = pneg %p92
      %p99 = scmp.eq.s32.totalorder %s10, 3
      %p100 = por %p98, %p99
      %p101 = scmp.ne.s32.totalorder %s93, %s96
      %p102 = scmp.eq.s32.totalorder %s10, 0
      %p103 = por %p101, %p102
      %p104 = scmp.ne.s32.totalorder %s93, %s96
      %p105 = scmp.eq.s32.totalorder %s15, 3
      %p106 = por %p104, %p105
      %p107 = scmp.ne.s32.totalorder %s96, %s97
      %p108 = scmp.eq.s32.totalorder %s15, 0
      %p109 = por %p107, %p108
      %p110 = scmp.ne.s32.totalorder %s96, %s97
      %p111 = scmp.eq.s32.totalorder %s16, 3
      %p112 = por %p110, %p111
      %p114 = scmp.ne.s32.totalorder %s97, %s113
      %p115 = scmp.eq.s32.totalorder %s16, 0
      %p116 = por %p114, %p115
      %p117 = scmp.le.s32.totalorder 1, %s10
      %p118 = scmp.lt.s32.totalorder %s10, 5
      %p119 = pnand %p117, %p118
      %p120 = pneg %p119
      // Predicated region
      $region9: #{vae_decoder_forward.5} parent=5 // pred_check
        _
      $region10: #{vae_decoder_forward.5} parent=5 // pred_check_branch
        %122 = sbr.rel (%p119) target = $region12
      $region11: #{vae_decoder_forward.5} parent=5 // pred_region
        %s123 = ssub.s32 %s10, 1
        // Predicated region
        $region13: #{vae_decoder_forward.5} parent=11 // pred_check
          %p124 = pneg %p83
        $region14: #{vae_decoder_forward.5} parent=11 // pred_check_branch
          %126 = sbr.rel (%p124) target = $region16
        $region15: #{vae_decoder_forward.5} parent=11 // pred_region
          %s128 = ssub.s32 16, 16
          %129 = vsyncadd [#allocation3], %s128
          %s131 = sshll.u32 [#allocation2], 4
          %s132 = int_to_ptr.vmem [resolvable:$true] %s131
          %134 = dma.hbm_to_vmem [thread:$0]  %s2, 16, %s132, [#allocation3]
        $region16: #{vae_decoder_forward.5} parent=11 // pred_fallthru
          _
      $region12: #{vae_decoder_forward.5} parent=5 // pred_fallthru
        _
      %p135 = scmp.lt.s32.totalorder %s10, 4
      // Predicated region
      $region17: #{vae_decoder_forward.5} parent=5 // pred_check
        %p136 = pneg %p135
      $region18: #{vae_decoder_forward.5} parent=5 // pred_check_branch
        %138 = sbr.rel (%p136) target = $region20
      $region19: #{vae_decoder_forward.5} parent=5 // pred_region
        // Predicated region
        $region21: #{vae_decoder_forward.5} parent=19 // pred_check
          %p139 = pneg %p30
        $region22: #{vae_decoder_forward.5} parent=19 // pred_check_branch
          %141 = sbr.rel (%p139) target = $region24
        $region23: #{vae_decoder_forward.5} parent=19 // pred_region
          %p142 = scmp.lt.s32.totalorder %s10, 3
          %s143 = scalar_select %p142, %s10, 3
          %s144 = smul.addr %s143, 32
          %s145 = smul.addr %s144, 4
          %s146 = scalar_lea.vmem %s0, %s145
        $region24: #{vae_decoder_forward.5} parent=19 // pred_fallthru
          _
        // Predicated region
        $region25: #{vae_decoder_forward.5} parent=19 // pred_check
          %p147 = pneg %p56
        $region26: #{vae_decoder_forward.5} parent=19 // pred_check_branch
          %149 = sbr.rel (%p147) target = $region28
        $region27: #{vae_decoder_forward.5} parent=19 // pred_region
          %p150 = scmp.lt.s32.totalorder %s10, 3
          %s151 = scalar_select %p150, %s10, 3
          %s152 = smul.addr %s151, 128
          %s153 = smul.addr %s152, 4
          %s154 = scalar_lea.vmem %s1, %s153
        $region28: #{vae_decoder_forward.5} parent=19 // pred_fallthru
          _
      $region20: #{vae_decoder_forward.5} parent=5 // pred_fallthru
        _
      %p155 = scmp.le.s32.totalorder 1, %s10
      %p156 = scmp.lt.s32.totalorder %s10, 5
      %p157 = pnand %p155, %p156
      %p158 = pneg %p157
      // Predicated region
      $region29: #{vae_decoder_forward.5} parent=5 // pred_check
        _
      $region30: #{vae_decoder_forward.5} parent=5 // pred_check_branch
        %160 = sbr.rel (%p157) target = $region32
      $region31: #{vae_decoder_forward.5} parent=5 // pred_region
        %s161 = ssub.s32 %s10, 1
        // Predicated region
        $region33: #{vae_decoder_forward.5} parent=31 // pred_check
          %p162 = pneg %p83
        $region34: #{vae_decoder_forward.5} parent=31 // pred_check_branch
          %164 = sbr.rel (%p162) target = $region36
        $region35: #{vae_decoder_forward.5} parent=31 // pred_region
          %165 = dma.done [#allocation3], 16
        $region36: #{vae_decoder_forward.5} parent=31 // pred_fallthru
          _
        %p166 = scmp.lt.s32.totalorder %s15, 3
        %s167 = scalar_select %p166, %s15, 3
        %s168 = smul.addr %s167, 32
        %s169 = smul.addr %s168, 4
        %s170 = scalar_lea.vmem %s0, %s169
        %p171 = pneg %p36
        %p172 = pneg %p33
        %p173 = scmp.lt.s32.totalorder %s15, 3
        %s174 = scalar_select %p173, %s15, 3
        %s175 = smul.addr %s174, 128
        %s176 = smul.addr %s175, 4
        %s177 = scalar_lea.vmem %s1, %s176
        %p178 = pneg %p62
        %p179 = pneg %p59
        %p180 = pneg %p83
        %p181 = pneg %p80
        %p182 = pneg %p109
        %p183 = pneg %p106
        %p184 = scmp.lt.s32.totalorder %s15, 3
        %s185 = scalar_select %p184, %s15, 3
        %s186 = smul.addr %s185, 4
        %s187 = smul.addr %s186, 4
        %s188 = scalar_lea.vmem %s3, %s187
        %p189 = scmp.lt.s32.totalorder %s15, 3
        %s190 = scalar_select %p189, %s15, 3
        %s191 = smul.addr %s190, 32
        %s192 = smul.addr %s191, 4
        %s193 = scalar_lea.vmem %s0, %s192
        %p194 = scmp.lt.s32.totalorder %s15, 3
        %s195 = scalar_select %p194, %s15, 3
        %s196 = smul.addr %s195, 128
        %s197 = smul.addr %s196, 4
        %s198 = scalar_lea.vmem %s1, %s197
        %p199 = scmp.lt.s32.totalorder %s15, 3
        %s200 = scalar_select %p199, %s15, 3
        %s201 = smul.addr %s200, 4
        %s202 = smul.addr %s201, 4
        %s203 = scalar_lea.vmem %s3, %s202
        %v205 = vld [vmem:[%s193] sm:$0xff]
        %v206 = vld [vmem:[%s193 + $0x8] sm:$0xff]
        %v207 = vld [vmem:[%s193 + $0x10] sm:$0xff]
        %v208 = vld [vmem:[%s193 + $0x18] sm:$0xff]
        %v209 = vld [vmem:[%s193 + $0x20] sm:$0xff]
        %v210 = vld [vmem:[%s193 + $0x28] sm:$0xff]
        %v211 = vld [vmem:[%s193 + $0x30] sm:$0xff]
        %v212 = vld [vmem:[%s193 + $0x38] sm:$0xff]
        %v213 = vld [vmem:[%s193 + $0x40] sm:$0xff]
        %v214 = vld [vmem:[%s193 + $0x48] sm:$0xff]
        %v215 = vld [vmem:[%s193 + $0x50] sm:$0xff]
        %v216 = vld [vmem:[%s193 + $0x58] sm:$0xff]
        %v217 = vld [vmem:[%s193 + $0x60] sm:$0xff]
        %v218 = vld [vmem:[%s193 + $0x68] sm:$0xff]
        %v219 = vld [vmem:[%s193 + $0x70] sm:$0xff]
        %v220 = vld [vmem:[%s193 + $0x78] sm:$0xff]
        %v221 = vld [vmem:[%s198] sm:$0xf]
        %v222 = vld [vmem:[%s198 + $0x4] sm:$0xf]
        %v223 = vld [vmem:[%s198 + $0x8] sm:$0xf]
        %v224 = vld [vmem:[%s198 + $0xc] sm:$0xf]
        %v225 = vld [vmem:[%s198 + $0x10] sm:$0xf]
        %v226 = vld [vmem:[%s198 + $0x14] sm:$0xf]
        %v227 = vld [vmem:[%s198 + $0x18] sm:$0xf]
        %v228 = vld [vmem:[%s198 + $0x1c] sm:$0xf]
        %v229 = vld [vmem:[%s198 + $0x20] sm:$0xf]
        %v230 = vld [vmem:[%s198 + $0x24] sm:$0xf]
        %v231 = vld [vmem:[%s198 + $0x28] sm:$0xf]
        %v232 = vld [vmem:[%s198 + $0x2c] sm:$0xf]
        %v233 = vld [vmem:[%s198 + $0x30] sm:$0xf]
        %v234 = vld [vmem:[%s198 + $0x34] sm:$0xf]
        %v235 = vld [vmem:[%s198 + $0x38] sm:$0xf]
        %v236 = vld [vmem:[%s198 + $0x3c] sm:$0xf]
        %v237 = vld [vmem:[%s198 + $0x40] sm:$0xf]
        %v238 = vld [vmem:[%s198 + $0x44] sm:$0xf]
        %v239 = vld [vmem:[%s198 + $0x48] sm:$0xf]
        %v240 = vld [vmem:[%s198 + $0x4c] sm:$0xf]
        %v241 = vld [vmem:[%s198 + $0x50] sm:$0xf]
        %v242 = vld [vmem:[%s198 + $0x54] sm:$0xf]
        %v243 = vld [vmem:[%s198 + $0x58] sm:$0xf]
        %v244 = vld [vmem:[%s198 + $0x5c] sm:$0xf]
        %v245 = vld [vmem:[%s198 + $0x60] sm:$0xf]
        %v246 = vld [vmem:[%s198 + $0x64] sm:$0xf]
        %v247 = vld [vmem:[%s198 + $0x68] sm:$0xf]
        %v248 = vld [vmem:[%s198 + $0x6c] sm:$0xf]
        %v249 = vld [vmem:[%s198 + $0x70] sm:$0xf]
        %v250 = vld [vmem:[%s198 + $0x74] sm:$0xf]
        %v251 = vld [vmem:[%s198 + $0x78] sm:$0xf]
        %v252 = vld [vmem:[%s198 + $0x7c] sm:$0xf]
        %v253 = vld [vmem:[%s198 + $0x80] sm:$0xf]
        %v254 = vld [vmem:[%s198 + $0x84] sm:$0xf]
        %v255 = vld [vmem:[%s198 + $0x88] sm:$0xf]
        %v256 = vld [vmem:[%s198 + $0x8c] sm:$0xf]
        %v257 = vld [vmem:[%s198 + $0x90] sm:$0xf]
        %v258 = vld [vmem:[%s198 + $0x94] sm:$0xf]
        %v259 = vld [vmem:[%s198 + $0x98] sm:$0xf]
        %v260 = vld [vmem:[%s198 + $0x9c] sm:$0xf]
        %v261 = vld [vmem:[%s198 + $0xa0] sm:$0xf]
        %v262 = vld [vmem:[%s198 + $0xa4] sm:$0xf]
        %v263 = vld [vmem:[%s198 + $0xa8] sm:$0xf]
        %v264 = vld [vmem:[%s198 + $0xac] sm:$0xf]
        %v265 = vld [vmem:[%s198 + $0xb0] sm:$0xf]
        %v266 = vld [vmem:[%s198 + $0xb4] sm:$0xf]
        %v267 = vld [vmem:[%s198 + $0xb8] sm:$0xf]
        %v268 = vld [vmem:[%s198 + $0xbc] sm:$0xf]
        %v269 = vld [vmem:[%s198 + $0xc0] sm:$0xf]
        %v270 = vld [vmem:[%s198 + $0xc4] sm:$0xf]
        %v271 = vld [vmem:[%s198 + $0xc8] sm:$0xf]
        %v272 = vld [vmem:[%s198 + $0xcc] sm:$0xf]
        %v273 = vld [vmem:[%s198 + $0xd0] sm:$0xf]
        %v274 = vld [vmem:[%s198 + $0xd4] sm:$0xf]
        %v275 = vld [vmem:[%s198 + $0xd8] sm:$0xf]
        %v276 = vld [vmem:[%s198 + $0xdc] sm:$0xf]
        %v277 = vld [vmem:[%s198 + $0xe0] sm:$0xf]
        %v278 = vld [vmem:[%s198 + $0xe4] sm:$0xf]
        %v279 = vld [vmem:[%s198 + $0xe8] sm:$0xf]
        %v280 = vld [vmem:[%s198 + $0xec] sm:$0xf]
        %v281 = vld [vmem:[%s198 + $0xf0] sm:$0xf]
        %v282 = vld [vmem:[%s198 + $0xf4] sm:$0xf]
        %v283 = vld [vmem:[%s198 + $0xf8] sm:$0xf]
        %v284 = vld [vmem:[%s198 + $0xfc] sm:$0xf]
        %v285 = vld [vmem:[%s198 + $0x100] sm:$0xf]
        %v286 = vld [vmem:[%s198 + $0x104] sm:$0xf]
        %v287 = vld [vmem:[%s198 + $0x108] sm:$0xf]
        %v288 = vld [vmem:[%s198 + $0x10c] sm:$0xf]
        %v289 = vld [vmem:[%s198 + $0x110] sm:$0xf]
        %v290 = vld [vmem:[%s198 + $0x114] sm:$0xf]
        %v291 = vld [vmem:[%s198 + $0x118] sm:$0xf]
        %v292 = vld [vmem:[%s198 + $0x11c] sm:$0xf]
        %v293 = vld [vmem:[%s198 + $0x120] sm:$0xf]
        %v294 = vld [vmem:[%s198 + $0x124] sm:$0xf]
        %v295 = vld [vmem:[%s198 + $0x128] sm:$0xf]
        %v296 = vld [vmem:[%s198 + $0x12c] sm:$0xf]
        %v297 = vld [vmem:[%s198 + $0x130] sm:$0xf]
        %v298 = vld [vmem:[%s198 + $0x134] sm:$0xf]
        %v299 = vld [vmem:[%s198 + $0x138] sm:$0xf]
        %v300 = vld [vmem:[%s198 + $0x13c] sm:$0xf]
        %v301 = vld [vmem:[%s198 + $0x140] sm:$0xf]
        %v302 = vld [vmem:[%s198 + $0x144] sm:$0xf]
        %v303 = vld [vmem:[%s198 + $0x148] sm:$0xf]
        %v304 = vld [vmem:[%s198 + $0x14c] sm:$0xf]
        %v305 = vld [vmem:[%s198 + $0x150] sm:$0xf]
        %v306 = vld [vmem:[%s198 + $0x154] sm:$0xf]
        %v307 = vld [vmem:[%s198 + $0x158] sm:$0xf]
        %v308 = vld [vmem:[%s198 + $0x15c] sm:$0xf]
        %v309 = vld [vmem:[%s198 + $0x160] sm:$0xf]
        %v310 = vld [vmem:[%s198 + $0x164] sm:$0xf]
        %v311 = vld [vmem:[%s198 + $0x168] sm:$0xf]
        %v312 = vld [vmem:[%s198 + $0x16c] sm:$0xf]
        %v313 = vld [vmem:[%s198 + $0x170] sm:$0xf]
        %v314 = vld [vmem:[%s198 + $0x174] sm:$0xf]
        %v315 = vld [vmem:[%s198 + $0x178] sm:$0xf]
        %v316 = vld [vmem:[%s198 + $0x17c] sm:$0xf]
        %v317 = vld [vmem:[%s198 + $0x180] sm:$0xf]
        %v318 = vld [vmem:[%s198 + $0x184] sm:$0xf]
        %v319 = vld [vmem:[%s198 + $0x188] sm:$0xf]
        %v320 = vld [vmem:[%s198 + $0x18c] sm:$0xf]
        %v321 = vld [vmem:[%s198 + $0x190] sm:$0xf]
        %v322 = vld [vmem:[%s198 + $0x194] sm:$0xf]
        %v323 = vld [vmem:[%s198 + $0x198] sm:$0xf]
        %v324 = vld [vmem:[%s198 + $0x19c] sm:$0xf]
        %v325 = vld [vmem:[%s198 + $0x1a0] sm:$0xf]
        %v326 = vld [vmem:[%s198 + $0x1a4] sm:$0xf]
        %v327 = vld [vmem:[%s198 + $0x1a8] sm:$0xf]
        %v328 = vld [vmem:[%s198 + $0x1ac] sm:$0xf]
        %v329 = vld [vmem:[%s198 + $0x1b0] sm:$0xf]
        %v330 = vld [vmem:[%s198 + $0x1b4] sm:$0xf]
        %v331 = vld [vmem:[%s198 + $0x1b8] sm:$0xf]
        %v332 = vld [vmem:[%s198 + $0x1bc] sm:$0xf]
        %v333 = vld [vmem:[%s198 + $0x1c0] sm:$0xf]
        %v334 = vld [vmem:[%s198 + $0x1c4] sm:$0xf]
        %v335 = vld [vmem:[%s198 + $0x1c8] sm:$0xf]
        %v336 = vld [vmem:[%s198 + $0x1cc] sm:$0xf]
        %v337 = vld [vmem:[%s198 + $0x1d0] sm:$0xf]
        %v338 = vld [vmem:[%s198 + $0x1d4] sm:$0xf]
        %v339 = vld [vmem:[%s198 + $0x1d8] sm:$0xf]
        %v340 = vld [vmem:[%s198 + $0x1dc] sm:$0xf]
        %v341 = vld [vmem:[%s198 + $0x1e0] sm:$0xf]
        %v342 = vld [vmem:[%s198 + $0x1e4] sm:$0xf]
        %v343 = vld [vmem:[%s198 + $0x1e8] sm:$0xf]
        %v344 = vld [vmem:[%s198 + $0x1ec] sm:$0xf]
        %v345 = vld [vmem:[%s198 + $0x1f0] sm:$0xf]
        %v346 = vld [vmem:[%s198 + $0x1f4] sm:$0xf]
        %v347 = vld [vmem:[%s198 + $0x1f8] sm:$0xf]
        %v348 = vld [vmem:[%s198 + $0x1fc] sm:$0xf]
        %v349 = vld [vmem:[#allocation2] sm:$0x1]
        %v351 = vlaneseq
        %v352 = vshrl.u32 %v351, 7
        %v353 = vsub.s32 0, %v352
        %v354 = vrot.slane %v349, %v353
        %v372 = vunpack.c.l.b16 %v205
        %v373 = vunpack.c.h.b16 %v205
        %v374 = vunpack.c.l.b16 %v206
        %v375 = vunpack.c.h.b16 %v206
        %v376 = vunpack.c.l.b16 %v207
        %v377 = vunpack.c.h.b16 %v207
        %v378 = vunpack.c.l.b16 %v208
        %v379 = vunpack.c.h.b16 %v208
        %v380 = vunpack.c.l.b16 %v209
        %v381 = vunpack.c.h.b16 %v209
        %v382 = vunpack.c.l.b16 %v210
        %v383 = vunpack.c.h.b16 %v210
        %v384 = vunpack.c.l.b16 %v211
        %v385 = vunpack.c.h.b16 %v211
        %v386 = vunpack.c.l.b16 %v212
        %v387 = vunpack.c.h.b16 %v212
        %v388 = vunpack.c.l.b16 %v213
        %v389 = vunpack.c.h.b16 %v213
        %v390 = vunpack.c.l.b16 %v214
        %v391 = vunpack.c.h.b16 %v214
        %v392 = vunpack.c.l.b16 %v215
        %v393 = vunpack.c.h.b16 %v215
        %v394 = vunpack.c.l.b16 %v216
        %v395 = vunpack.c.h.b16 %v216
        %v396 = vunpack.c.l.b16 %v217
        %v397 = vunpack.c.h.b16 %v217
        %v398 = vunpack.c.l.b16 %v218
        %v399 = vunpack.c.h.b16 %v218
        %v400 = vunpack.c.l.b16 %v219
        %v401 = vunpack.c.h.b16 %v219
        %v402 = vunpack.c.l.b16 %v220
        %v403 = vunpack.c.h.b16 %v220
        %v404 = vpack.c.b16 %v380, %v372
        %v405 = vpack.c.b16 %v381, %v373
        %v406 = vpack.c.b16 %v382, %v374
        %v407 = vpack.c.b16 %v383, %v375
        %v408 = vpack.c.b16 %v384, %v376
        %v409 = vpack.c.b16 %v385, %v377
        %v410 = vpack.c.b16 %v386, %v378
        %v411 = vpack.c.b16 %v387, %v379
        %v412 = vpack.c.b16 %v396, %v388
        %v413 = vpack.c.b16 %v397, %v389
        %v414 = vpack.c.b16 %v398, %v390
        %v415 = vpack.c.b16 %v399, %v391
        %v416 = vpack.c.b16 %v400, %v392
        %v417 = vpack.c.b16 %v401, %v393
        %v418 = vpack.c.b16 %v402, %v394
        %v419 = vpack.c.b16 %v403, %v395
        %v564 = vunpack.c.l.b16 %v221
        %v565 = vunpack.c.l.b16 %v222
        %v566 = vunpack.c.l.b16 %v223
        %v567 = vunpack.c.l.b16 %v224
        %v568 = vunpack.c.l.b16 %v225
        %v569 = vunpack.c.l.b16 %v226
        %v570 = vunpack.c.l.b16 %v227
        %v571 = vunpack.c.l.b16 %v228
        %v572 = vunpack.c.l.b16 %v229
        %v573 = vunpack.c.l.b16 %v230
        %v574 = vunpack.c.l.b16 %v231
        %v575 = vunpack.c.l.b16 %v232
        %v576 = vunpack.c.l.b16 %v233
        %v577 = vunpack.c.l.b16 %v234
        %v578 = vunpack.c.l.b16 %v235
        %v579 = vunpack.c.l.b16 %v236
        %v580 = vunpack.c.l.b16 %v237
        %v581 = vunpack.c.l.b16 %v238
        %v582 = vunpack.c.l.b16 %v239
        %v583 = vunpack.c.l.b16 %v240
        %v584 = vunpack.c.l.b16 %v241
        %v585 = vunpack.c.l.b16 %v242
        %v586 = vunpack.c.l.b16 %v243
        %v587 = vunpack.c.l.b16 %v244
        %v588 = vunpack.c.l.b16 %v245
        %v589 = vunpack.c.l.b16 %v246
        %v590 = vunpack.c.l.b16 %v247
        %v591 = vunpack.c.l.b16 %v248
        %v592 = vunpack.c.l.b16 %v249
        %v593 = vunpack.c.l.b16 %v250
        %v594 = vunpack.c.l.b16 %v251
        %v595 = vunpack.c.l.b16 %v252
        %v596 = vunpack.c.l.b16 %v253
        %v597 = vunpack.c.l.b16 %v254
        %v598 = vunpack.c.l.b16 %v255
        %v599 = vunpack.c.l.b16 %v256
        %v600 = vunpack.c.l.b16 %v257
        %v601 = vunpack.c.l.b16 %v258
        %v602 = vunpack.c.l.b16 %v259
        %v603 = vunpack.c.l.b16 %v260
        %v604 = vunpack.c.l.b16 %v261
        %v605 = vunpack.c.l.b16 %v262
        %v606 = vunpack.c.l.b16 %v263
        %v607 = vunpack.c.l.b16 %v264
        %v608 = vunpack.c.l.b16 %v265
        %v609 = vunpack.c.l.b16 %v266
        %v610 = vunpack.c.l.b16 %v267
        %v611 = vunpack.c.l.b16 %v268
        %v612 = vunpack.c.l.b16 %v269
        %v613 = vunpack.c.l.b16 %v270
        %v614 = vunpack.c.l.b16 %v271
        %v615 = vunpack.c.l.b16 %v272
        %v616 = vunpack.c.l.b16 %v273
        %v617 = vunpack.c.l.b16 %v274
        %v618 = vunpack.c.l.b16 %v275
        %v619 = vunpack.c.l.b16 %v276
        %v620 = vunpack.c.l.b16 %v277
        %v621 = vunpack.c.l.b16 %v278
        %v622 = vunpack.c.l.b16 %v279
        %v623 = vunpack.c.l.b16 %v280
        %v624 = vunpack.c.l.b16 %v281
        %v625 = vunpack.c.l.b16 %v282
        %v626 = vunpack.c.l.b16 %v283
        %v627 = vunpack.c.l.b16 %v284
        %v628 = vunpack.c.l.b16 %v285
        %v629 = vunpack.c.l.b16 %v286
        %v630 = vunpack.c.l.b16 %v287
        %v631 = vunpack.c.l.b16 %v288
        %v632 = vunpack.c.l.b16 %v289
        %v633 = vunpack.c.l.b16 %v290
        %v634 = vunpack.c.l.b16 %v291
        %v635 = vunpack.c.l.b16 %v292
        %v636 = vunpack.c.l.b16 %v293
        %v637 = vunpack.c.l.b16 %v294
        %v638 = vunpack.c.l.b16 %v295
        %v639 = vunpack.c.l.b16 %v296
        %v640 = vunpack.c.l.b16 %v297
        %v641 = vunpack.c.l.b16 %v298
        %v642 = vunpack.c.l.b16 %v299
        %v643 = vunpack.c.l.b16 %v300
        %v644 = vunpack.c.l.b16 %v301
        %v645 = vunpack.c.l.b16 %v302
        %v646 = vunpack.c.l.b16 %v303
        %v647 = vunpack.c.l.b16 %v304
        %v648 = vunpack.c.l.b16 %v305
        %v649 = vunpack.c.l.b16 %v306
        %v650 = vunpack.c.l.b16 %v307
        %v651 = vunpack.c.l.b16 %v308
        %v652 = vunpack.c.l.b16 %v309
        %v653 = vunpack.c.l.b16 %v310
        %v654 = vunpack.c.l.b16 %v311
        %v655 = vunpack.c.l.b16 %v312
        %v656 = vunpack.c.l.b16 %v313
        %v657 = vunpack.c.l.b16 %v314
        %v658 = vunpack.c.l.b16 %v315
        %v659 = vunpack.c.l.b16 %v316
        %v660 = vunpack.c.l.b16 %v317
        %v661 = vunpack.c.l.b16 %v318
        %v662 = vunpack.c.l.b16 %v319
        %v663 = vunpack.c.l.b16 %v320
        %v664 = vunpack.c.l.b16 %v321
        %v665 = vunpack.c.l.b16 %v322
        %v666 = vunpack.c.l.b16 %v323
        %v667 = vunpack.c.l.b16 %v324
        %v668 = vunpack.c.l.b16 %v325
        %v669 = vunpack.c.l.b16 %v326
        %v670 = vunpack.c.l.b16 %v327
        %v671 = vunpack.c.l.b16 %v328
        %v672 = vunpack.c.l.b16 %v329
        %v673 = vunpack.c.l.b16 %v330
        %v674 = vunpack.c.l.b16 %v331
        %v675 = vunpack.c.l.b16 %v332
        %v676 = vunpack.c.l.b16 %v333
        %v677 = vunpack.c.l.b16 %v334
        %v678 = vunpack.c.l.b16 %v335
        %v679 = vunpack.c.l.b16 %v336
        %v680 = vunpack.c.l.b16 %v337
        %v681 = vunpack.c.l.b16 %v338
        %v682 = vunpack.c.l.b16 %v339
        %v683 = vunpack.c.l.b16 %v340
        %v684 = vunpack.c.l.b16 %v341
        %v685 = vunpack.c.l.b16 %v342
        %v686 = vunpack.c.l.b16 %v343
        %v687 = vunpack.c.l.b16 %v344
        %v688 = vunpack.c.l.b16 %v345
        %v689 = vunpack.c.l.b16 %v346
        %v690 = vunpack.c.l.b16 %v347
        %v691 = vunpack.c.l.b16 %v348
        %v692 = vpack.c.b16 %v565, %v564
        %v693 = vpack.c.b16 %v567, %v566
        %v694 = vpack.c.b16 %v569, %v568
        %v695 = vpack.c.b16 %v571, %v570
        %v696 = vpack.c.b16 %v573, %v572
        %v697 = vpack.c.b16 %v575, %v574
        %v698 = vpack.c.b16 %v577, %v576
        %v699 = vpack.c.b16 %v579, %v578
        %v700 = vpack.c.b16 %v581, %v580
        %v701 = vpack.c.b16 %v583, %v582
        %v702 = vpack.c.b16 %v585, %v584
        %v703 = vpack.c.b16 %v587, %v586
        %v704 = vpack.c.b16 %v589, %v588
        %v705 = vpack.c.b16 %v591, %v590
        %v706 = vpack.c.b16 %v593, %v592
        %v707 = vpack.c.b16 %v595, %v594
        %v708 = vpack.c.b16 %v597, %v596
        %v709 = vpack.c.b16 %v599, %v598
        %v710 = vpack.c.b16 %v601, %v600
        %v711 = vpack.c.b16 %v603, %v602
        %v712 = vpack.c.b16 %v605, %v604
        %v713 = vpack.c.b16 %v607, %v606
        %v714 = vpack.c.b16 %v609, %v608
        %v715 = vpack.c.b16 %v611, %v610
        %v716 = vpack.c.b16 %v613, %v612
        %v717 = vpack.c.b16 %v615, %v614
        %v718 = vpack.c.b16 %v617, %v616
        %v719 = vpack.c.b16 %v619, %v618
        %v720 = vpack.c.b16 %v621, %v620
        %v721 = vpack.c.b16 %v623, %v622
        %v722 = vpack.c.b16 %v625, %v624
        %v723 = vpack.c.b16 %v627, %v626
        %v724 = vpack.c.b16 %v629, %v628
        %v725 = vpack.c.b16 %v631, %v630
        %v726 = vpack.c.b16 %v633, %v632
        %v727 = vpack.c.b16 %v635, %v634
        %v728 = vpack.c.b16 %v637, %v636
        %v729 = vpack.c.b16 %v639, %v638
        %v730 = vpack.c.b16 %v641, %v640
        %v731 = vpack.c.b16 %v643, %v642
        %v732 = vpack.c.b16 %v645, %v644
        %v733 = vpack.c.b16 %v647, %v646
        %v734 = vpack.c.b16 %v649, %v648
        %v735 = vpack.c.b16 %v651, %v650
        %v736 = vpack.c.b16 %v653, %v652
        %v737 = vpack.c.b16 %v655, %v654
        %v738 = vpack.c.b16 %v657, %v656
        %v739 = vpack.c.b16 %v659, %v658
        %v740 = vpack.c.b16 %v661, %v660
        %v741 = vpack.c.b16 %v663, %v662
        %v742 = vpack.c.b16 %v665, %v664
        %v743 = vpack.c.b16 %v667, %v666
        %v744 = vpack.c.b16 %v669, %v668
        %v745 = vpack.c.b16 %v671, %v670
        %v746 = vpack.c.b16 %v673, %v672
        %v747 = vpack.c.b16 %v675, %v674
        %v748 = vpack.c.b16 %v677, %v676
        %v749 = vpack.c.b16 %v679, %v678
        %v750 = vpack.c.b16 %v681, %v680
        %v751 = vpack.c.b16 %v683, %v682
        %v752 = vpack.c.b16 %v685, %v684
        %v753 = vpack.c.b16 %v687, %v686
        %v754 = vpack.c.b16 %v689, %v688
        %v755 = vpack.c.b16 %v691, %v690
        %820 = vmatprep.subr.bf16.mxu0 0
        %821 = vmatpush1.bf16.msra.mxu0 %v699
        %822 = vmatprep.subr.bf16.mxu0 0
        %823 = vmatpush1.bf16.msra.mxu0 %v698
        %824 = vmatprep.subr.bf16.mxu0 0
        %825 = vmatpush1.bf16.msra.mxu0 %v697
        %826 = vmatprep.subr.bf16.mxu0 0
        %827 = vmatpush1.bf16.msra.mxu0 %v696
        %828 = vmatprep.subr.bf16.mxu0 0
        %829 = vmatpush1.bf16.msra.mxu0 %v695
        %830 = vmatprep.subr.bf16.mxu0 0
        %831 = vmatpush1.bf16.msra.mxu0 %v694
        %832 = vmatprep.subr.bf16.mxu0 0
        %833 = vmatpush1.bf16.msra.mxu0 %v693
        %834 = vmatprep.subr.bf16.mxu0 0
        %835 = vmatpush1.bf16.msra.mxu0 %v692
        %836 = vmatprep.subr.bf16.mxu0 0
        %837 = vmatpush2.bf16.msra.mxu0 %v707
        %838 = vmatprep.subr.bf16.mxu0 0
        %839 = vmatpush2.bf16.msra.mxu0 %v706
        %840 = vmatprep.subr.bf16.mxu0 0
        %841 = vmatpush2.bf16.msra.mxu0 %v705
        %842 = vmatprep.subr.bf16.mxu0 0
        %843 = vmatpush2.bf16.msra.mxu0 %v704
        %844 = vmatprep.subr.bf16.mxu0 0
        %845 = vmatpush2.bf16.msra.mxu0 %v703
        %846 = vmatprep.subr.bf16.mxu0 0
        %847 = vmatpush2.bf16.msra.mxu0 %v702
        %848 = vmatprep.subr.bf16.mxu0 0
        %849 = vmatpush2.bf16.msra.mxu0 %v701
        %850 = vmatprep.subr.bf16.mxu0 0
        %851 = vmatpush2.bf16.msra.mxu0 %v700
        %852 = vmatprep.mubr.bf16.mxu0 %v405
        %853 = vmatmul.mubr.bf16.gmra.mxu0 %v404
        %v854 = vpop.f32.mrf.mxu0
        %v855 = vadd.f32 %v354, %v854
        %v856 = vpop.f32.mrf.mxu0
        %v857 = vpop.f32.mrf.mxu0
        %v858 = vadd.f32 %v354, %v857
        %v859 = vpop.f32.mrf.mxu0
        %860 = vmatprep.mubr.bf16.mxu0 %v413
        %861 = vmatmul.mubr.bf16.gmra.mxu0 %v412
        %v862 = vpop.f32.mrf.mxu0
        %v863 = vadd.f32 %v354, %v862
        %v864 = vpop.f32.mrf.mxu0
        %v865 = vpop.f32.mrf.mxu0
        %v866 = vadd.f32 %v354, %v865
        %v867 = vpop.f32.mrf.mxu0
        %868 = vdwg.mxu0
        %869 = vmatprep.subr.bf16.mxu0 0
        %870 = vmatpush1.bf16.msra.mxu0 %v715
        %871 = vmatprep.subr.bf16.mxu0 0
        %872 = vmatpush1.bf16.msra.mxu0 %v714
        %873 = vmatprep.subr.bf16.mxu0 0
        %874 = vmatpush1.bf16.msra.mxu0 %v713
        %875 = vmatprep.subr.bf16.mxu0 0
        %876 = vmatpush1.bf16.msra.mxu0 %v712
        %877 = vmatprep.subr.bf16.mxu0 0
        %878 = vmatpush1.bf16.msra.mxu0 %v711
        %879 = vmatprep.subr.bf16.mxu0 0
        %880 = vmatpush1.bf16.msra.mxu0 %v710
        %881 = vmatprep.subr.bf16.mxu0 0
        %882 = vmatpush1.bf16.msra.mxu0 %v709
        %883 = vmatprep.subr.bf16.mxu0 0
        %884 = vmatpush1.bf16.msra.mxu0 %v708
        %885 = vmatprep.subr.bf16.mxu0 0
        %886 = vmatpush2.bf16.msra.mxu0 %v723
        %887 = vmatprep.subr.bf16.mxu0 0
        %888 = vmatpush2.bf16.msra.mxu0 %v722
        %889 = vmatprep.subr.bf16.mxu0 0
        %890 = vmatpush2.bf16.msra.mxu0 %v721
        %891 = vmatprep.subr.bf16.mxu0 0
        %892 = vmatpush2.bf16.msra.mxu0 %v720
        %893 = vmatprep.subr.bf16.mxu0 0
        %894 = vmatpush2.bf16.msra.mxu0 %v719
        %895 = vmatprep.subr.bf16.mxu0 0
        %896 = vmatpush2.bf16.msra.mxu0 %v718
        %897 = vmatprep.subr.bf16.mxu0 0
        %898 = vmatpush2.bf16.msra.mxu0 %v717
        %899 = vmatprep.subr.bf16.mxu0 0
        %900 = vmatpush2.bf16.msra.mxu0 %v716
        %901 = vmatprep.mubr.bf16.mxu0 %v407
        %902 = vmatmul.mubr.bf16.gmra.mxu0 %v406
        %v903 = vpop.f32.mrf.mxu0
        %v904 = vadd.f32 %v855, %v903
        %v905 = vpop.f32.mrf.mxu0
        %v906 = vpop.f32.mrf.mxu0
        %v907 = vadd.f32 %v858, %v906
        %v908 = vpop.f32.mrf.mxu0
        %909 = vmatprep.mubr.bf16.mxu0 %v415
        %910 = vmatmul.mubr.bf16.gmra.mxu0 %v414
        %v911 = vpop.f32.mrf.mxu0
        %v912 = vadd.f32 %v863, %v911
        %v913 = vpop.f32.mrf.mxu0
        %v914 = vpop.f32.mrf.mxu0
        %v915 = vadd.f32 %v866, %v914
        %v916 = vpop.f32.mrf.mxu0
        %917 = vdwg.mxu0
        %918 = vmatprep.subr.bf16.mxu0 0
        %919 = vmatpush1.bf16.msra.mxu0 %v731
        %920 = vmatprep.subr.bf16.mxu0 0
        %921 = vmatpush1.bf16.msra.mxu0 %v730
        %922 = vmatprep.subr.bf16.mxu0 0
        %923 = vmatpush1.bf16.msra.mxu0 %v729
        %924 = vmatprep.subr.bf16.mxu0 0
        %925 = vmatpush1.bf16.msra.mxu0 %v728
        %926 = vmatprep.subr.bf16.mxu0 0
        %927 = vmatpush1.bf16.msra.mxu0 %v727
        %928 = vmatprep.subr.bf16.mxu0 0
        %929 = vmatpush1.bf16.msra.mxu0 %v726
        %930 = vmatprep.subr.bf16.mxu0 0
        %931 = vmatpush1.bf16.msra.mxu0 %v725
        %932 = vmatprep.subr.bf16.mxu0 0
        %933 = vmatpush1.bf16.msra.mxu0 %v724
        %934 = vmatprep.subr.bf16.mxu0 0
        %935 = vmatpush2.bf16.msra.mxu0 %v739
        %936 = vmatprep.subr.bf16.mxu0 0
        %937 = vmatpush2.bf16.msra.mxu0 %v738
        %938 = vmatprep.subr.bf16.mxu0 0
        %939 = vmatpush2.bf16.msra.mxu0 %v737
        %940 = vmatprep.subr.bf16.mxu0 0
        %941 = vmatpush2.bf16.msra.mxu0 %v736
        %942 = vmatprep.subr.bf16.mxu0 0
        %943 = vmatpush2.bf16.msra.mxu0 %v735
        %944 = vmatprep.subr.bf16.mxu0 0
        %945 = vmatpush2.bf16.msra.mxu0 %v734
        %946 = vmatprep.subr.bf16.mxu0 0
        %947 = vmatpush2.bf16.msra.mxu0 %v733
        %948 = vmatprep.subr.bf16.mxu0 0
        %949 = vmatpush2.bf16.msra.mxu0 %v732
        %950 = vmatprep.mubr.bf16.mxu0 %v409
        %951 = vmatmul.mubr.bf16.gmra.mxu0 %v408
        %v952 = vpop.f32.mrf.mxu0
        %v953 = vadd.f32 %v904, %v952
        %v954 = vpop.f32.mrf.mxu0
        %v955 = vpop.f32.mrf.mxu0
        %v956 = vadd.f32 %v907, %v955
        %v957 = vpop.f32.mrf.mxu0
        %958 = vmatprep.mubr.bf16.mxu0 %v417
        %959 = vmatmul.mubr.bf16.gmra.mxu0 %v416
        %v960 = vpop.f32.mrf.mxu0
        %v961 = vadd.f32 %v912, %v960
        %v962 = vpop.f32.mrf.mxu0
        %v963 = vpop.f32.mrf.mxu0
        %v964 = vadd.f32 %v915, %v963
        %v965 = vpop.f32.mrf.mxu0
        %966 = vdwg.mxu0
        %967 = vmatprep.subr.bf16.mxu0 0
        %968 = vmatpush1.bf16.msra.mxu0 %v747
        %969 = vmatprep.subr.bf16.mxu0 0
        %970 = vmatpush1.bf16.msra.mxu0 %v746
        %971 = vmatprep.subr.bf16.mxu0 0
        %972 = vmatpush1.bf16.msra.mxu0 %v745
        %973 = vmatprep.subr.bf16.mxu0 0
        %974 = vmatpush1.bf16.msra.mxu0 %v744
        %975 = vmatprep.subr.bf16.mxu0 0
        %976 = vmatpush1.bf16.msra.mxu0 %v743
        %977 = vmatprep.subr.bf16.mxu0 0
        %978 = vmatpush1.bf16.msra.mxu0 %v742
        %979 = vmatprep.subr.bf16.mxu0 0
        %980 = vmatpush1.bf16.msra.mxu0 %v741
        %981 = vmatprep.subr.bf16.mxu0 0
        %982 = vmatpush1.bf16.msra.mxu0 %v740
        %983 = vmatprep.subr.bf16.mxu0 0
        %984 = vmatpush2.bf16.msra.mxu0 %v755
        %985 = vmatprep.subr.bf16.mxu0 0
        %986 = vmatpush2.bf16.msra.mxu0 %v754
        %987 = vmatprep.subr.bf16.mxu0 0
        %988 = vmatpush2.bf16.msra.mxu0 %v753
        %989 = vmatprep.subr.bf16.mxu0 0
        %990 = vmatpush2.bf16.msra.mxu0 %v752
        %991 = vmatprep.subr.bf16.mxu0 0
        %992 = vmatpush2.bf16.msra.mxu0 %v751
        %993 = vmatprep.subr.bf16.mxu0 0
        %994 = vmatpush2.bf16.msra.mxu0 %v750
        %995 = vmatprep.subr.bf16.mxu0 0
        %996 = vmatpush2.bf16.msra.mxu0 %v749
        %997 = vmatprep.subr.bf16.mxu0 0
        %998 = vmatpush2.bf16.msra.mxu0 %v748
        %999 = vmatprep.mubr.bf16.mxu0 %v411
        %1000 = vmatmul.mubr.bf16.gmra.mxu0 %v410
        %v1001 = vpop.f32.mrf.mxu0
        %v1002 = vadd.f32 %v953, %v1001
        %v1003 = vpop.f32.mrf.mxu0
        %v1004 = vpop.f32.mrf.mxu0
        %v1005 = vadd.f32 %v956, %v1004
        %v1006 = vpop.f32.mrf.mxu0
        %1007 = vmatprep.mubr.bf16.mxu0 %v419
        %1008 = vmatmul.mubr.bf16.gmra.mxu0 %v418
        %v1009 = vpop.f32.mrf.mxu0
        %v1010 = vadd.f32 %v961, %v1009
        %v1011 = vpop.f32.mrf.mxu0
        %v1012 = vpop.f32.mrf.mxu0
        %v1013 = vadd.f32 %v964, %v1012
        %v1014 = vpop.f32.mrf.mxu0
        %1015 = vdwg.mxu0
        %v1016 = vmax.f32 %v1002, 0.0
        %v1017 = vmax.f32 %v1005, 0.0
        %v1018 = vmax.f32 %v1010, 0.0
        %v1019 = vmax.f32 %v1013, 0.0
        %v1020 = vpack.c.bf16 %v1017, %v1016
        %v1021 = vpack.c.bf16 %v1019, %v1018
        %v1024 = vunpack.c.l.b16 %v1020
        %v1025 = vunpack.c.h.b16 %v1020
        %v1026 = vunpack.c.l.b16 %v1021
        %v1027 = vunpack.c.h.b16 %v1021
        %v1028 = vpack.c.b16 %v1024, %v1024
        %v1029 = vpack.c.b16 %v1025, %v1025
        %v1030 = vpack.c.b16 %v1026, %v1026
        %v1031 = vpack.c.b16 %v1027, %v1027
        %1036 = vst [vmem:[%s203] sm:$0xf] %v1028
        %1037 = vst [vmem:[%s203 + $0x4] sm:$0xf] %v1029
        %1038 = vst [vmem:[%s203 + $0x8] sm:$0xf] %v1030
        %1039 = vst [vmem:[%s203 + $0xc] sm:$0xf] %v1031
        %p1040 = scmp.lt.s32.totalorder %s15, 3
        %s1041 = scalar_select %p1040, %s15, 3
        %s1042 = smul.addr %s1041, 4
        %s1043 = smul.addr %s1042, 4
        %s1044 = scalar_lea.vmem %s3, %s1043
        // Predicated region
        $region37: #{vae_decoder_forward.5} parent=31 // pred_check
          %p1045 = pneg %p106
        $region38: #{vae_decoder_forward.5} parent=31 // pred_check_branch
          %1047 = sbr.rel (%p1045) target = $region40
        $region39: #{vae_decoder_forward.5} parent=31 // pred_region
          _
        $region40: #{vae_decoder_forward.5} parent=31 // pred_fallthru
          _
      $region32: #{vae_decoder_forward.5} parent=5 // pred_fallthru
        _
      %p1048 = scmp.le.s32.totalorder 2, %s10
      // Predicated region
      $region41: #{vae_decoder_forward.5} parent=5 // pred_check
        %p1049 = pneg %p1048
      $region42: #{vae_decoder_forward.5} parent=5 // pred_check_branch
        %1051 = sbr.rel (%p1049) target = $region44
      $region43: #{vae_decoder_forward.5} parent=5 // pred_region
        %s1052 = ssub.s32 %s10, 2
        // Predicated region
        $region45: #{vae_decoder_forward.5} parent=43 // pred_check
          %p1053 = pneg %p112
        $region46: #{vae_decoder_forward.5} parent=43 // pred_check_branch
          %1055 = sbr.rel (%p1053) target = $region48
        $region47: #{vae_decoder_forward.5} parent=43 // pred_region
          %p1056 = scmp.lt.s32.totalorder %s16, 3
          %s1057 = scalar_select %p1056, %s16, 3
          %s1058 = smul.addr %s1057, 4
          %s1059 = smul.addr %s1058, 4
          %s1060 = scalar_lea.vmem %s3, %s1059
        $region48: #{vae_decoder_forward.5} parent=43 // pred_fallthru
          _
      $region44: #{vae_decoder_forward.5} parent=5 // pred_fallthru
        _
    $region6: #{vae_decoder_forward.5} parent=1 // loop_footer
      %s14 = sadd.s32 1, %s10
    $region7: #{vae_decoder_forward.5} parent=1 // loop_footer_branch
      %9 = sbr.rel target = $region3
    $region8: #{vae_decoder_forward.5} parent=1 // loop_exit
      _
    %1061 = vsyncpa [#allocation3], 1
    %s1062 = scalar_lea.sflag [#allocation3], 1
    %1063 = vsyncpa %s1062, 1

// kernel: vae_decoder_forward.6
$region0: #{vae_decoder_forward.6}
  #allocation0 [shape = 'u32[]', space=smem, size = 0x4, offset = 0x4, fixed_abs, tag = 'smem constant byte address 0x4 - core index']
  #allocation1 [shape = 'u32[144,128]{1,0:T(1,128)}', space=vmem, size = 0x12000, scoped, tag = 'internal scratch']
  %s0 = inlined_call_operand.vmem [shape: bf16[4,128,512], index: 0, kind: input, shape index: {}]
  %s1 = inlined_call_operand.vmem [shape: bf16[4,512,128], index: 1, kind: input, shape index: {}]
  %s2 = inlined_call_operand.vmem [shape: f32[1,128], index: 2, kind: input, shape index: {}]
  %s3 = inlined_call_operand.vmem [shape: bf16[4,128,128], index: 3, kind: output, shape index: {}]
  %s4 = sld [smem:[#allocation0]]
  $region45: #{vae_decoder_forward.6} parent=0
    _
  %s6 = ssub.s32 1, %s4
  %s7 = scalar_select 0, %s6, %s4
  loop: start=0, step=1, limit=6
  $region2: #{vae_decoder_forward.6} parent=0 // loop_pre_header
    _
  $region3: #{vae_decoder_forward.6} parent=0 // loop_header
    %s9 = sphi 0, %s13
    %p10 = scmp.ge.s32.totalorder %s9, 6
    %s19 = sphi 0, %s21
    %s22 = sphi 0, %s19
    %s23 = sphi 0, %s22
    %s39 = sphi 0, %s23
    %s45 = sphi 0, %s47
    %s48 = sphi 0, %s45
    %s49 = sphi 0, %s48
    %s65 = sphi 0, %s49
    %s69 = sphi 0, %s69
    %s71 = sphi 0, %s69
    %s72 = sphi 0, %s71
    %s86 = sphi 0, %s72
    %s92 = sphi 0, %s94
    %s95 = sphi 0, %s92
    %s96 = sphi 0, %s95
    %s112 = sphi 0, %s96
  $region4: #{vae_decoder_forward.6} parent=0 // loop_header_branch
    %12 = sbr.rel (%p10) target = $region8
  $region5: #{vae_decoder_forward.6} parent=0 // loop_body
    %s14 = ssub.s32 %s9, 1
    %s15 = ssub.s32 %s9, 2
    %s16 = sadd.s32 %s9, 1
    %s17 = ssub.s32 %s9, %s16
    %p18 = scmp.eq.s32.totalorder %s17, 0
    %s20 = sadd.s32 %s19, 1
    %s21 = scalar_select %p18, %s19, %s20
    %p24 = pneg %p18
    %p25 = scmp.eq.s32.totalorder %s9, 3
    %p26 = por %p24, %p25
    %p27 = scmp.ne.s32.totalorder %s19, %s22
    %p28 = scmp.eq.s32.totalorder %s9, 0
    %p29 = por %p27, %p28
    %p30 = scmp.ne.s32.totalorder %s19, %s22
    %p31 = scmp.eq.s32.totalorder %s14, 3
    %p32 = por %p30, %p31
    %p33 = scmp.ne.s32.totalorder %s22, %s23
    %p34 = scmp.eq.s32.totalorder %s14, 0
    %p35 = por %p33, %p34
    %p36 = scmp.ne.s32.totalorder %s22, %s23
    %p37 = scmp.eq.s32.totalorder %s15, 3
    %p38 = por %p36, %p37
    %p40 = scmp.ne.s32.totalorder %s23, %s39
    %p41 = scmp.eq.s32.totalorder %s15, 0
    %p42 = por %p40, %p41
    %s43 = ssub.s32 %s9, %s16
    %p44 = scmp.eq.s32.totalorder %s43, 0
    %s46 = sadd.s32 %s45, 1
    %s47 = scalar_select %p44, %s45, %s46
    %p50 = pneg %p44
    %p51 = scmp.eq.s32.totalorder %s9, 3
    %p52 = por %p50, %p51
    %p53 = scmp.ne.s32.totalorder %s45, %s48
    %p54 = scmp.eq.s32.totalorder %s9, 0
    %p55 = por %p53, %p54
    %p56 = scmp.ne.s32.totalorder %s45, %s48
    %p57 = scmp.eq.s32.totalorder %s14, 3
    %p58 = por %p56, %p57
    %p59 = scmp.ne.s32.totalorder %s48, %s49
    %p60 = scmp.eq.s32.totalorder %s14, 0
    %p61 = por %p59, %p60
    %p62 = scmp.ne.s32.totalorder %s48, %s49
    %p63 = scmp.eq.s32.totalorder %s15, 3
    %p64 = por %p62, %p63
    %p66 = scmp.ne.s32.totalorder %s49, %s65
    %p67 = scmp.eq.s32.totalorder %s15, 0
    %p68 = por %p66, %p67
    %s70 = sadd.s32 %s69, 1
    %p73 = scmp.eq.s32.totalorder %s9, 3
    %p74 = scmp.ne.s32.totalorder %s69, %s71
    %p75 = scmp.eq.s32.totalorder %s9, 0
    %p76 = por %p74, %p75
    %p77 = scmp.ne.s32.totalorder %s69, %s71
    %p78 = scmp.eq.s32.totalorder %s14, 3
    %p79 = por %p77, %p78
    %p80 = scmp.ne.s32.totalorder %s71, %s72
    %p81 = scmp.eq.s32.totalorder %s14, 0
    %p82 = por %p80, %p81
    %p83 = scmp.ne.s32.totalorder %s71, %s72
    %p84 = scmp.eq.s32.totalorder %s15, 3
    %p85 = por %p83, %p84
    %p87 = scmp.ne.s32.totalorder %s72, %s86
    %p88 = scmp.eq.s32.totalorder %s15, 0
    %p89 = por %p87, %p88
    %s90 = ssub.s32 %s9, %s16
    %p91 = scmp.eq.s32.totalorder %s90, 0
    %s93 = sadd.s32 %s92, 1
    %s94 = scalar_select %p91, %s92, %s93
    %p97 = pneg %p91
    %p98 = scmp.eq.s32.totalorder %s9, 3
    %p99 = por %p97, %p98
    %p100 = scmp.ne.s32.totalorder %s92, %s95
    %p101 = scmp.eq.s32.totalorder %s9, 0
    %p102 = por %p100, %p101
    %p103 = scmp.ne.s32.totalorder %s92, %s95
    %p104 = scmp.eq.s32.totalorder %s14, 3
    %p105 = por %p103, %p104
    %p106 = scmp.ne.s32.totalorder %s95, %s96
    %p107 = scmp.eq.s32.totalorder %s14, 0
    %p108 = por %p106, %p107
    %p109 = scmp.ne.s32.totalorder %s95, %s96
    %p110 = scmp.eq.s32.totalorder %s15, 3
    %p111 = por %p109, %p110
    %p113 = scmp.ne.s32.totalorder %s96, %s112
    %p114 = scmp.eq.s32.totalorder %s15, 0
    %p115 = por %p113, %p114
    %p116 = scmp.le.s32.totalorder 1, %s9
    %p117 = scmp.lt.s32.totalorder %s9, 5
    %p118 = pnand %p116, %p117
    %p119 = pneg %p118
    // Predicated region
    $region9: #{vae_decoder_forward.6} parent=5 // pred_check
      _
    $region10: #{vae_decoder_forward.6} parent=5 // pred_check_branch
      %121 = sbr.rel (%p118) target = $region12
    $region11: #{vae_decoder_forward.6} parent=5 // pred_region
      %s122 = ssub.s32 %s9, 1
      // Predicated region
      $region13: #{vae_decoder_forward.6} parent=11 // pred_check
        %p123 = pneg %p82
      $region14: #{vae_decoder_forward.6} parent=11 // pred_check_branch
        %125 = sbr.rel (%p123) target = $region16
      $region15: #{vae_decoder_forward.6} parent=11 // pred_region
        _
      $region16: #{vae_decoder_forward.6} parent=11 // pred_fallthru
        _
    $region12: #{vae_decoder_forward.6} parent=5 // pred_fallthru
      _
    %p126 = scmp.lt.s32.totalorder %s9, 4
    // Predicated region
    $region17: #{vae_decoder_forward.6} parent=5 // pred_check
      %p127 = pneg %p126
    $region18: #{vae_decoder_forward.6} parent=5 // pred_check_branch
      %129 = sbr.rel (%p127) target = $region20
    $region19: #{vae_decoder_forward.6} parent=5 // pred_region
      // Predicated region
      $region21: #{vae_decoder_forward.6} parent=19 // pred_check
        %p130 = pneg %p29
      $region22: #{vae_decoder_forward.6} parent=19 // pred_check_branch
        %132 = sbr.rel (%p130) target = $region24
      $region23: #{vae_decoder_forward.6} parent=19 // pred_region
        %p133 = scmp.lt.s32.totalorder %s9, 3
        %s134 = scalar_select %p133, %s9, 3
        %s135 = smul.addr %s134, 64
        %s136 = smul.addr %s135, 4
        %s137 = scalar_lea.vmem %s0, %s136
      $region24: #{vae_decoder_forward.6} parent=19 // pred_fallthru
        _
      // Predicated region
      $region25: #{vae_decoder_forward.6} parent=19 // pred_check
        %p138 = pneg %p55
      $region26: #{vae_decoder_forward.6} parent=19 // pred_check_branch
        %140 = sbr.rel (%p138) target = $region28
      $region27: #{vae_decoder_forward.6} parent=19 // pred_region
        %p141 = scmp.lt.s32.totalorder %s9, 3
        %s142 = scalar_select %p141, %s9, 3
        %s143 = smul.addr %s142, 64
        %s144 = smul.addr %s143, 4
        %s145 = scalar_lea.vmem %s1, %s144
      $region28: #{vae_decoder_forward.6} parent=19 // pred_fallthru
        _
    $region20: #{vae_decoder_forward.6} parent=5 // pred_fallthru
      _
    %p146 = scmp.le.s32.totalorder 1, %s9
    %p147 = scmp.lt.s32.totalorder %s9, 5
    %p148 = pnand %p146, %p147
    %p149 = pneg %p148
    // Predicated region
    $region29: #{vae_decoder_forward.6} parent=5 // pred_check
      _
    $region30: #{vae_decoder_forward.6} parent=5 // pred_check_branch
      %151 = sbr.rel (%p148) target = $region32
    $region31: #{vae_decoder_forward.6} parent=5 // pred_region
      %s152 = ssub.s32 %s9, 1
      %p153 = scmp.lt.s32.totalorder %s14, 3
      %s154 = scalar_select %p153, %s14, 3
      %s155 = smul.addr %s154, 64
      %s156 = smul.addr %s155, 4
      %s157 = scalar_lea.vmem %s0, %s156
      %p158 = pneg %p35
      %p159 = pneg %p32
      %p160 = scmp.lt.s32.totalorder %s14, 3
      %s161 = scalar_select %p160, %s14, 3
      %s162 = smul.addr %s161, 64
      %s163 = smul.addr %s162, 4
      %s164 = scalar_lea.vmem %s1, %s163
      %p165 = pneg %p61
      %p166 = pneg %p58
      %p167 = pneg %p82
      %p168 = pneg %p79
      %p169 = pneg %p108
      %p170 = pneg %p105
      %p171 = scmp.lt.s32.totalorder %s14, 3
      %s172 = scalar_select %p171, %s14, 3
      %s173 = smul.addr %s172, 16
      %s174 = smul.addr %s173, 4
      %s175 = scalar_lea.vmem %s3, %s174
      %p176 = scmp.lt.s32.totalorder %s14, 3
      %s177 = scalar_select %p176, %s14, 3
      %s178 = smul.addr %s177, 64
      %s179 = smul.addr %s178, 4
      %s180 = scalar_lea.vmem %s0, %s179
      %p181 = scmp.lt.s32.totalorder %s14, 3
      %s182 = scalar_select %p181, %s14, 3
      %s183 = smul.addr %s182, 64
      %s184 = smul.addr %s183, 4
      %s185 = scalar_lea.vmem %s1, %s184
      %p186 = scmp.lt.s32.totalorder %s14, 3
      %s187 = scalar_select %p186, %s14, 3
      %s188 = smul.addr %s187, 16
      %s189 = smul.addr %s188, 4
      %s190 = scalar_lea.vmem %s3, %s189
      %v192 = vld [vmem:[%s180] sm:$0xff]
      %v193 = vld [vmem:[%s180 + $0x8] sm:$0xff]
      %v194 = vld [vmem:[%s180 + $0x10] sm:$0xff]
      %v195 = vld [vmem:[%s180 + $0x18] sm:$0xff]
      %v196 = vld [vmem:[%s180 + $0x20] sm:$0xff]
      %v197 = vld [vmem:[%s180 + $0x28] sm:$0xff]
      %v198 = vld [vmem:[%s180 + $0x30] sm:$0xff]
      %v199 = vld [vmem:[%s180 + $0x38] sm:$0xff]
      %v200 = vld [vmem:[%s180 + $0x40] sm:$0xff]
      %v201 = vld [vmem:[%s180 + $0x48] sm:$0xff]
      %v202 = vld [vmem:[%s180 + $0x50] sm:$0xff]
      %v203 = vld [vmem:[%s180 + $0x58] sm:$0xff]
      %v204 = vld [vmem:[%s180 + $0x60] sm:$0xff]
      %v205 = vld [vmem:[%s180 + $0x68] sm:$0xff]
      %v206 = vld [vmem:[%s180 + $0x70] sm:$0xff]
      %v207 = vld [vmem:[%s180 + $0x78] sm:$0xff]
      %v208 = vld [vmem:[%s180 + $0x80] sm:$0xff]
      %v209 = vld [vmem:[%s180 + $0x88] sm:$0xff]
      %v210 = vld [vmem:[%s180 + $0x90] sm:$0xff]
      %v211 = vld [vmem:[%s180 + $0x98] sm:$0xff]
      %v212 = vld [vmem:[%s180 + $0xa0] sm:$0xff]
      %v213 = vld [vmem:[%s180 + $0xa8] sm:$0xff]
      %v214 = vld [vmem:[%s180 + $0xb0] sm:$0xff]
      %v215 = vld [vmem:[%s180 + $0xb8] sm:$0xff]
      %v216 = vld [vmem:[%s180 + $0xc0] sm:$0xff]
      %v217 = vld [vmem:[%s180 + $0xc8] sm:$0xff]
      %v218 = vld [vmem:[%s180 + $0xd0] sm:$0xff]
      %v219 = vld [vmem:[%s180 + $0xd8] sm:$0xff]
      %v220 = vld [vmem:[%s180 + $0xe0] sm:$0xff]
      %v221 = vld [vmem:[%s180 + $0xe8] sm:$0xff]
      %v222 = vld [vmem:[%s180 + $0xf0] sm:$0xff]
      %v223 = vld [vmem:[%s180 + $0xf8] sm:$0xff]
      %v224 = vld [vmem:[%s185] sm:$0xf]
      %v225 = vld [vmem:[%s185 + $0x4] sm:$0xf]
      %v226 = vld [vmem:[%s185 + $0x8] sm:$0xf]
      %v227 = vld [vmem:[%s185 + $0xc] sm:$0xf]
      %v228 = vld [vmem:[%s185 + $0x10] sm:$0xf]
      %v229 = vld [vmem:[%s185 + $0x14] sm:$0xf]
      %v230 = vld [vmem:[%s185 + $0x18] sm:$0xf]
      %v231 = vld [vmem:[%s185 + $0x1c] sm:$0xf]
      %v232 = vld [vmem:[%s185 + $0x20] sm:$0xf]
      %v233 = vld [vmem:[%s185 + $0x24] sm:$0xf]
      %v234 = vld [vmem:[%s185 + $0x28] sm:$0xf]
      %v235 = vld [vmem:[%s185 + $0x2c] sm:$0xf]
      %v236 = vld [vmem:[%s185 + $0x30] sm:$0xf]
      %v237 = vld [vmem:[%s185 + $0x34] sm:$0xf]
      %v238 = vld [vmem:[%s185 + $0x38] sm:$0xf]
      %v239 = vld [vmem:[%s185 + $0x3c] sm:$0xf]
      %v240 = vld [vmem:[%s185 + $0x40] sm:$0xf]
      %v241 = vld [vmem:[%s185 + $0x44] sm:$0xf]
      %v242 = vld [vmem:[%s185 + $0x48] sm:$0xf]
      %v243 = vld [vmem:[%s185 + $0x4c] sm:$0xf]
      %v244 = vld [vmem:[%s185 + $0x50] sm:$0xf]
      %v245 = vld [vmem:[%s185 + $0x54] sm:$0xf]
      %v246 = vld [vmem:[%s185 + $0x58] sm:$0xf]
      %v247 = vld [vmem:[%s185 + $0x5c] sm:$0xf]
      %v248 = vld [vmem:[%s185 + $0x60] sm:$0xf]
      %v249 = vld [vmem:[%s185 + $0x64] sm:$0xf]
      %v250 = vld [vmem:[%s185 + $0x68] sm:$0xf]
      %v251 = vld [vmem:[%s185 + $0x6c] sm:$0xf]
      %v252 = vld [vmem:[%s185 + $0x70] sm:$0xf]
      %v253 = vld [vmem:[%s185 + $0x74] sm:$0xf]
      %v254 = vld [vmem:[%s185 + $0x78] sm:$0xf]
      %v255 = vld [vmem:[%s185 + $0x7c] sm:$0xf]
      %v256 = vld [vmem:[%s185 + $0x80] sm:$0xf]
      %v257 = vld [vmem:[%s185 + $0x84] sm:$0xf]
      %v258 = vld [vmem:[%s185 + $0x88] sm:$0xf]
      %v259 = vld [vmem:[%s185 + $0x8c] sm:$0xf]
      %v260 = vld [vmem:[%s185 + $0x90] sm:$0xf]
      %v261 = vld [vmem:[%s185 + $0x94] sm:$0xf]
      %v262 = vld [vmem:[%s185 + $0x98] sm:$0xf]
      %v263 = vld [vmem:[%s185 + $0x9c] sm:$0xf]
      %v264 = vld [vmem:[%s185 + $0xa0] sm:$0xf]
      %v265 = vld [vmem:[%s185 + $0xa4] sm:$0xf]
      %v266 = vld [vmem:[%s185 + $0xa8] sm:$0xf]
      %v267 = vld [vmem:[%s185 + $0xac] sm:$0xf]
      %v268 = vld [vmem:[%s185 + $0xb0] sm:$0xf]
      %v269 = vld [vmem:[%s185 + $0xb4] sm:$0xf]
      %v270 = vld [vmem:[%s185 + $0xb8] sm:$0xf]
      %v271 = vld [vmem:[%s185 + $0xbc] sm:$0xf]
      %v272 = vld [vmem:[%s185 + $0xc0] sm:$0xf]
      %v273 = vld [vmem:[%s185 + $0xc4] sm:$0xf]
      %v274 = vld [vmem:[%s185 + $0xc8] sm:$0xf]
      %v275 = vld [vmem:[%s185 + $0xcc] sm:$0xf]
      %v276 = vld [vmem:[%s185 + $0xd0] sm:$0xf]
      %v277 = vld [vmem:[%s185 + $0xd4] sm:$0xf]
      %v278 = vld [vmem:[%s185 + $0xd8] sm:$0xf]
      %v279 = vld [vmem:[%s185 + $0xdc] sm:$0xf]
      %v280 = vld [vmem:[%s185 + $0xe0] sm:$0xf]
      %v281 = vld [vmem:[%s185 + $0xe4] sm:$0xf]
      %v282 = vld [vmem:[%s185 + $0xe8] sm:$0xf]
      %v283 = vld [vmem:[%s185 + $0xec] sm:$0xf]
      %v284 = vld [vmem:[%s185 + $0xf0] sm:$0xf]
      %v285 = vld [vmem:[%s185 + $0xf4] sm:$0xf]
      %v286 = vld [vmem:[%s185 + $0xf8] sm:$0xf]
      %v287 = vld [vmem:[%s185 + $0xfc] sm:$0xf]
      %v288 = vld [vmem:[%s2] sm:$0x1]
      %v290 = vlaneseq
      %v291 = vshrl.u32 %v290, 7
      %v292 = vsub.s32 0, %v291
      %v293 = vrot.slane %v288, %v292
      %v327 = vunpack.c.l.b16 %v192
      %v328 = vunpack.c.h.b16 %v192
      %v329 = vunpack.c.l.b16 %v193
      %v330 = vunpack.c.h.b16 %v193
      %v331 = vunpack.c.l.b16 %v194
      %v332 = vunpack.c.h.b16 %v194
      %v333 = vunpack.c.l.b16 %v195
      %v334 = vunpack.c.h.b16 %v195
      %v335 = vunpack.c.l.b16 %v196
      %v336 = vunpack.c.h.b16 %v196
      %v337 = vunpack.c.l.b16 %v197
      %v338 = vunpack.c.h.b16 %v197
      %v339 = vunpack.c.l.b16 %v198
      %v340 = vunpack.c.h.b16 %v198
      %v341 = vunpack.c.l.b16 %v199
      %v342 = vunpack.c.h.b16 %v199
      %v343 = vunpack.c.l.b16 %v200
      %v344 = vunpack.c.h.b16 %v200
      %v345 = vunpack.c.l.b16 %v201
      %v346 = vunpack.c.h.b16 %v201
      %v347 = vunpack.c.l.b16 %v202
      %v348 = vunpack.c.h.b16 %v202
      %v349 = vunpack.c.l.b16 %v203
      %v350 = vunpack.c.h.b16 %v203
      %v351 = vunpack.c.l.b16 %v204
      %v352 = vunpack.c.h.b16 %v204
      %v353 = vunpack.c.l.b16 %v205
      %v354 = vunpack.c.h.b16 %v205
      %v355 = vunpack.c.l.b16 %v206
      %v356 = vunpack.c.h.b16 %v206
      %v357 = vunpack.c.l.b16 %v207
      %v358 = vunpack.c.h.b16 %v207
      %v359 = vunpack.c.l.b16 %v208
      %v360 = vunpack.c.h.b16 %v208
      %v361 = vunpack.c.l.b16 %v209
      %v362 = vunpack.c.h.b16 %v209
      %v363 = vunpack.c.l.b16 %v210
      %v364 = vunpack.c.h.b16 %v210
      %v365 = vunpack.c.l.b16 %v211
      %v366 = vunpack.c.h.b16 %v211
      %v367 = vunpack.c.l.b16 %v212
      %v368 = vunpack.c.h.b16 %v212
      %v369 = vunpack.c.l.b16 %v213
      %v370 = vunpack.c.h.b16 %v213
      %v371 = vunpack.c.l.b16 %v214
      %v372 = vunpack.c.h.b16 %v214
      %v373 = vunpack.c.l.b16 %v215
      %v374 = vunpack.c.h.b16 %v215
      %v375 = vunpack.c.l.b16 %v216
      %v376 = vunpack.c.h.b16 %v216
      %v377 = vunpack.c.l.b16 %v217
      %v378 = vunpack.c.h.b16 %v217
      %v379 = vunpack.c.l.b16 %v218
      %v380 = vunpack.c.h.b16 %v218
      %v381 = vunpack.c.l.b16 %v219
      %v382 = vunpack.c.h.b16 %v219
      %v383 = vunpack.c.l.b16 %v220
      %v384 = vunpack.c.h.b16 %v220
      %v385 = vunpack.c.l.b16 %v221
      %v386 = vunpack.c.h.b16 %v221
      %v387 = vunpack.c.l.b16 %v222
      %v388 = vunpack.c.h.b16 %v222
      %v389 = vunpack.c.l.b16 %v223
      %v390 = vunpack.c.h.b16 %v223
      %v391 = vpack.c.b16 %v331, %v327
      %v392 = vpack.c.b16 %v332, %v328
      %v393 = vpack.c.b16 %v333, %v329
      %v394 = vpack.c.b16 %v334, %v330
      %v395 = vpack.c.b16 %v339, %v335
      %v396 = vpack.c.b16 %v340, %v336
      %v397 = vpack.c.b16 %v341, %v337
      %v398 = vpack.c.b16 %v342, %v338
      %v399 = vpack.c.b16 %v347, %v343
      %v400 = vpack.c.b16 %v348, %v344
      %v401 = vpack.c.b16 %v349, %v345
      %v402 = vpack.c.b16 %v350, %v346
      %v403 = vpack.c.b16 %v355, %v351
      %v404 = vpack.c.b16 %v356, %v352
      %v405 = vpack.c.b16 %v357, %v353
      %v406 = vpack.c.b16 %v358, %v354
      %v407 = vpack.c.b16 %v363, %v359
      %v408 = vpack.c.b16 %v364, %v360
      %v409 = vpack.c.b16 %v365, %v361
      %v410 = vpack.c.b16 %v366, %v362
      %v411 = vpack.c.b16 %v371, %v367
      %v412 = vpack.c.b16 %v372, %v368
      %v413 = vpack.c.b16 %v373, %v369
      %v414 = vpack.c.b16 %v374, %v370
      %v415 = vpack.c.b16 %v379, %v375
      %v416 = vpack.c.b16 %v380, %v376
      %v417 = vpack.c.b16 %v381, %v377
      %v418 = vpack.c.b16 %v382, %v378
      %v419 = vpack.c.b16 %v387, %v383
      %v420 = vpack.c.b16 %v388, %v384
      %v421 = vpack.c.b16 %v389, %v385
      %v422 = vpack.c.b16 %v390, %v386
      %v519 = vunpack.c.l.b16 %v224
      %v520 = vunpack.c.l.b16 %v225
      %v521 = vunpack.c.l.b16 %v226
      %v522 = vunpack.c.l.b16 %v227
      %v523 = vunpack.c.l.b16 %v228
      %v524 = vunpack.c.l.b16 %v229
      %v525 = vunpack.c.l.b16 %v230
      %v526 = vunpack.c.l.b16 %v231
      %v527 = vunpack.c.l.b16 %v232
      %v528 = vunpack.c.l.b16 %v233
      %v529 = vunpack.c.l.b16 %v234
      %v530 = vunpack.c.l.b16 %v235
      %v531 = vunpack.c.l.b16 %v236
      %v532 = vunpack.c.l.b16 %v237
      %v533 = vunpack.c.l.b16 %v238
      %v534 = vunpack.c.l.b16 %v239
      %v535 = vunpack.c.l.b16 %v240
      %v536 = vunpack.c.l.b16 %v241
      %v537 = vunpack.c.l.b16 %v242
      %v538 = vunpack.c.l.b16 %v243
      %v539 = vunpack.c.l.b16 %v244
      %v540 = vunpack.c.l.b16 %v245
      %v541 = vunpack.c.l.b16 %v246
      %v542 = vunpack.c.l.b16 %v247
      %v543 = vunpack.c.l.b16 %v248
      %v544 = vunpack.c.l.b16 %v249
      %v545 = vunpack.c.l.b16 %v250
      %v546 = vunpack.c.l.b16 %v251
      %v547 = vunpack.c.l.b16 %v252
      %v548 = vunpack.c.l.b16 %v253
      %v549 = vunpack.c.l.b16 %v254
      %v550 = vunpack.c.l.b16 %v255
      %v551 = vunpack.c.l.b16 %v256
      %v552 = vunpack.c.l.b16 %v257
      %v553 = vunpack.c.l.b16 %v258
      %v554 = vunpack.c.l.b16 %v259
      %v555 = vunpack.c.l.b16 %v260
      %v556 = vunpack.c.l.b16 %v261
      %v557 = vunpack.c.l.b16 %v262
      %v558 = vunpack.c.l.b16 %v263
      %v559 = vunpack.c.l.b16 %v264
      %v560 = vunpack.c.l.b16 %v265
      %v561 = vunpack.c.l.b16 %v266
      %v562 = vunpack.c.l.b16 %v267
      %v563 = vunpack.c.l.b16 %v268
      %v564 = vunpack.c.l.b16 %v269
      %v565 = vunpack.c.l.b16 %v270
      %v566 = vunpack.c.l.b16 %v271
      %v567 = vunpack.c.l.b16 %v272
      %v568 = vunpack.c.l.b16 %v273
      %v569 = vunpack.c.l.b16 %v274
      %v570 = vunpack.c.l.b16 %v275
      %v571 = vunpack.c.l.b16 %v276
      %v572 = vunpack.c.l.b16 %v277
      %v573 = vunpack.c.l.b16 %v278
      %v574 = vunpack.c.l.b16 %v279
      %v575 = vunpack.c.l.b16 %v280
      %v576 = vunpack.c.l.b16 %v281
      %v577 = vunpack.c.l.b16 %v282
      %v578 = vunpack.c.l.b16 %v283
      %v579 = vunpack.c.l.b16 %v284
      %v580 = vunpack.c.l.b16 %v285
      %v581 = vunpack.c.l.b16 %v286
      %v582 = vunpack.c.l.b16 %v287
      %v583 = vpack.c.b16 %v520, %v519
      %v584 = vpack.c.b16 %v522, %v521
      %v585 = vpack.c.b16 %v524, %v523
      %v586 = vpack.c.b16 %v526, %v525
      %v587 = vpack.c.b16 %v528, %v527
      %v588 = vpack.c.b16 %v530, %v529
      %v589 = vpack.c.b16 %v532, %v531
      %v590 = vpack.c.b16 %v534, %v533
      %v591 = vpack.c.b16 %v536, %v535
      %v592 = vpack.c.b16 %v538, %v537
      %v593 = vpack.c.b16 %v540, %v539
      %v594 = vpack.c.b16 %v542, %v541
      %v595 = vpack.c.b16 %v544, %v543
      %v596 = vpack.c.b16 %v546, %v545
      %v597 = vpack.c.b16 %v548, %v547
      %v598 = vpack.c.b16 %v550, %v549
      %v599 = vpack.c.b16 %v552, %v551
      %v600 = vpack.c.b16 %v554, %v553
      %v601 = vpack.c.b16 %v556, %v555
      %v602 = vpack.c.b16 %v558, %v557
      %v603 = vpack.c.b16 %v560, %v559
      %v604 = vpack.c.b16 %v562, %v561
      %v605 = vpack.c.b16 %v564, %v563
      %v606 = vpack.c.b16 %v566, %v565
      %v607 = vpack.c.b16 %v568, %v567
      %v608 = vpack.c.b16 %v570, %v569
      %v609 = vpack.c.b16 %v572, %v571
      %v610 = vpack.c.b16 %v574, %v573
      %v611 = vpack.c.b16 %v576, %v575
      %v612 = vpack.c.b16 %v578, %v577
      %v613 = vpack.c.b16 %v580, %v579
      %v614 = vpack.c.b16 %v582, %v581
      %647 = vmatprep.subr.bf16.mxu0 0
      %648 = vmatpush1.bf16.msra.mxu0 %v590
      %649 = vmatprep.subr.bf16.mxu0 0
      %650 = vmatpush1.bf16.msra.mxu0 %v589
      %651 = vmatprep.subr.bf16.mxu0 0
      %652 = vmatpush1.bf16.msra.mxu0 %v588
      %653 = vmatprep.subr.bf16.mxu0 0
      %654 = vmatpush1.bf16.msra.mxu0 %v587
      %655 = vmatprep.subr.bf16.mxu0 0
      %656 = vmatpush1.bf16.msra.mxu0 %v586
      %657 = vmatprep.subr.bf16.mxu0 0
      %658 = vmatpush1.bf16.msra.mxu0 %v585
      %659 = vmatprep.subr.bf16.mxu0 0
      %660 = vmatpush1.bf16.msra.mxu0 %v584
      %661 = vmatprep.subr.bf16.mxu0 0
      %662 = vmatpush1.bf16.msra.mxu0 %v583
      %663 = vmatprep.subr.bf16.mxu0 0
      %664 = vmatpush2.bf16.msra.mxu0 %v598
      %665 = vmatprep.subr.bf16.mxu0 0
      %666 = vmatpush2.bf16.msra.mxu0 %v597
      %667 = vmatprep.subr.bf16.mxu0 0
      %668 = vmatpush2.bf16.msra.mxu0 %v596
      %669 = vmatprep.subr.bf16.mxu0 0
      %670 = vmatpush2.bf16.msra.mxu0 %v595
      %671 = vmatprep.subr.bf16.mxu0 0
      %672 = vmatpush2.bf16.msra.mxu0 %v594
      %673 = vmatprep.subr.bf16.mxu0 0
      %674 = vmatpush2.bf16.msra.mxu0 %v593
      %675 = vmatprep.subr.bf16.mxu0 0
      %676 = vmatpush2.bf16.msra.mxu0 %v592
      %677 = vmatprep.subr.bf16.mxu0 0
      %678 = vmatpush2.bf16.msra.mxu0 %v591
      %679 = vmatprep.mubr.bf16.mxu0 %v392
      %680 = vmatmul.mubr.bf16.gmra.mxu0 %v391
      %v681 = vpop.f32.mrf.mxu0
      %v682 = vadd.f32 %v293, %v681
      %v683 = vpop.f32.mrf.mxu0
      %v684 = vpop.f32.mrf.mxu0
      %v685 = vadd.f32 %v293, %v684
      %v686 = vpop.f32.mrf.mxu0
      %687 = vmatprep.mubr.bf16.mxu0 %v396
      %688 = vmatmul.mubr.bf16.gmra.mxu0 %v395
      %v689 = vpop.f32.mrf.mxu0
      %v690 = vadd.f32 %v293, %v689
      %v691 = vpop.f32.mrf.mxu0
      %v692 = vpop.f32.mrf.mxu0
      %v693 = vadd.f32 %v293, %v692
      %v694 = vpop.f32.mrf.mxu0
      %695 = vmatprep.mubr.bf16.mxu0 %v400
      %696 = vmatmul.mubr.bf16.gmra.mxu0 %v399
      %v697 = vpop.f32.mrf.mxu0
      %v698 = vadd.f32 %v293, %v697
      %v699 = vpop.f32.mrf.mxu0
      %v700 = vpop.f32.mrf.mxu0
      %v701 = vadd.f32 %v293, %v700
      %v702 = vpop.f32.mrf.mxu0
      %703 = vmatprep.mubr.bf16.mxu0 %v404
      %704 = vmatmul.mubr.bf16.gmra.mxu0 %v403
      %v705 = vpop.f32.mrf.mxu0
      %v706 = vadd.f32 %v293, %v705
      %v707 = vpop.f32.mrf.mxu0
      %v708 = vpop.f32.mrf.mxu0
      %v709 = vadd.f32 %v293, %v708
      %v710 = vpop.f32.mrf.mxu0
      %711 = vmatprep.mubr.bf16.mxu0 %v408
      %712 = vmatmul.mubr.bf16.gmra.mxu0 %v407
      %v713 = vpop.f32.mrf.mxu0
      %v714 = vadd.f32 %v293, %v713
      %v715 = vpop.f32.mrf.mxu0
      %v716 = vpop.f32.mrf.mxu0
      %v717 = vadd.f32 %v293, %v716
      %v718 = vpop.f32.mrf.mxu0
      %719 = vmatprep.mubr.bf16.mxu0 %v412
      %720 = vmatmul.mubr.bf16.gmra.mxu0 %v411
      %v721 = vpop.f32.mrf.mxu0
      %v722 = vadd.f32 %v293, %v721
      %v723 = vpop.f32.mrf.mxu0
      %v724 = vpop.f32.mrf.mxu0
      %v725 = vadd.f32 %v293, %v724
      %v726 = vpop.f32.mrf.mxu0
      %727 = vmatprep.mubr.bf16.mxu0 %v416
      %728 = vmatmul.mubr.bf16.gmra.mxu0 %v415
      %v729 = vpop.f32.mrf.mxu0
      %v730 = vadd.f32 %v293, %v729
      %v731 = vpop.f32.mrf.mxu0
      %v732 = vpop.f32.mrf.mxu0
      %v733 = vadd.f32 %v293, %v732
      %v734 = vpop.f32.mrf.mxu0
      %735 = vmatprep.mubr.bf16.mxu0 %v420
      %736 = vmatmul.mubr.bf16.gmra.mxu0 %v419
      %v737 = vpop.f32.mrf.mxu0
      %v738 = vadd.f32 %v293, %v737
      %v739 = vpop.f32.mrf.mxu0
      %v740 = vpop.f32.mrf.mxu0
      %v741 = vadd.f32 %v293, %v740
      %v742 = vpop.f32.mrf.mxu0
      %743 = vdwg.mxu0
      %744 = vmatprep.subr.bf16.mxu0 0
      %745 = vmatpush1.bf16.msra.mxu0 %v606
      %746 = vmatprep.subr.bf16.mxu0 0
      %747 = vmatpush1.bf16.msra.mxu0 %v605
      %748 = vmatprep.subr.bf16.mxu0 0
      %749 = vmatpush1.bf16.msra.mxu0 %v604
      %750 = vmatprep.subr.bf16.mxu0 0
      %751 = vmatpush1.bf16.msra.mxu0 %v603
      %752 = vmatprep.subr.bf16.mxu0 0
      %753 = vmatpush1.bf16.msra.mxu0 %v602
      %754 = vmatprep.subr.bf16.mxu0 0
      %755 = vmatpush1.bf16.msra.mxu0 %v601
      %756 = vmatprep.subr.bf16.mxu0 0
      %757 = vmatpush1.bf16.msra.mxu0 %v600
      %758 = vmatprep.subr.bf16.mxu0 0
      %759 = vmatpush1.bf16.msra.mxu0 %v599
      %760 = vmatprep.subr.bf16.mxu0 0
      %761 = vmatpush2.bf16.msra.mxu0 %v614
      %762 = vmatprep.subr.bf16.mxu0 0
      %763 = vmatpush2.bf16.msra.mxu0 %v613
      %764 = vmatprep.subr.bf16.mxu0 0
      %765 = vmatpush2.bf16.msra.mxu0 %v612
      %766 = vmatprep.subr.bf16.mxu0 0
      %767 = vmatpush2.bf16.msra.mxu0 %v611
      %768 = vmatprep.subr.bf16.mxu0 0
      %769 = vmatpush2.bf16.msra.mxu0 %v610
      %770 = vmatprep.subr.bf16.mxu0 0
      %771 = vmatpush2.bf16.msra.mxu0 %v609
      %772 = vmatprep.subr.bf16.mxu0 0
      %773 = vmatpush2.bf16.msra.mxu0 %v608
      %774 = vmatprep.subr.bf16.mxu0 0
      %775 = vmatpush2.bf16.msra.mxu0 %v607
      %776 = vmatprep.mubr.bf16.mxu0 %v394
      %777 = vmatmul.mubr.bf16.gmra.mxu0 %v393
      %v778 = vpop.f32.mrf.mxu0
      %v779 = vadd.f32 %v682, %v778
      %v780 = vpop.f32.mrf.mxu0
      %v781 = vpop.f32.mrf.mxu0
      %v782 = vadd.f32 %v685, %v781
      %v783 = vpop.f32.mrf.mxu0
      %784 = vmatprep.mubr.bf16.mxu0 %v398
      %785 = vmatmul.mubr.bf16.gmra.mxu0 %v397
      %v786 = vpop.f32.mrf.mxu0
      %v787 = vadd.f32 %v690, %v786
      %v788 = vpop.f32.mrf.mxu0
      %v789 = vpop.f32.mrf.mxu0
      %v790 = vadd.f32 %v693, %v789
      %v791 = vpop.f32.mrf.mxu0
      %792 = vmatprep.mubr.bf16.mxu0 %v402
      %793 = vmatmul.mubr.bf16.gmra.mxu0 %v401
      %v794 = vpop.f32.mrf.mxu0
      %v795 = vadd.f32 %v698, %v794
      %v796 = vpop.f32.mrf.mxu0
      %v797 = vpop.f32.mrf.mxu0
      %v798 = vadd.f32 %v701, %v797
      %v799 = vpop.f32.mrf.mxu0
      %800 = vmatprep.mubr.bf16.mxu0 %v406
      %801 = vmatmul.mubr.bf16.gmra.mxu0 %v405
      %v802 = vpop.f32.mrf.mxu0
      %v803 = vadd.f32 %v706, %v802
      %v804 = vpop.f32.mrf.mxu0
      %v805 = vpop.f32.mrf.mxu0
      %v806 = vadd.f32 %v709, %v805
      %v807 = vpop.f32.mrf.mxu0
      %808 = vmatprep.mubr.bf16.mxu0 %v410
      %809 = vmatmul.mubr.bf16.gmra.mxu0 %v409
      %v810 = vpop.f32.mrf.mxu0
      %v811 = vadd.f32 %v714, %v810
      %v812 = vpop.f32.mrf.mxu0
      %v813 = vpop.f32.mrf.mxu0
      %v814 = vadd.f32 %v717, %v813
      %v815 = vpop.f32.mrf.mxu0
      %816 = vmatprep.mubr.bf16.mxu0 %v414
      %817 = vmatmul.mubr.bf16.gmra.mxu0 %v413
      %v818 = vpop.f32.mrf.mxu0
      %v819 = vadd.f32 %v722, %v818
      %v820 = vpop.f32.mrf.mxu0
      %v821 = vpop.f32.mrf.mxu0
      %v822 = vadd.f32 %v725, %v821
      %v823 = vpop.f32.mrf.mxu0
      %824 = vmatprep.mubr.bf16.mxu0 %v418
      %825 = vmatmul.mubr.bf16.gmra.mxu0 %v417
      %v826 = vpop.f32.mrf.mxu0
      %v827 = vadd.f32 %v730, %v826
      %v828 = vpop.f32.mrf.mxu0
      %v829 = vpop.f32.mrf.mxu0
      %v830 = vadd.f32 %v733, %v829
      %v831 = vpop.f32.mrf.mxu0
      %832 = vmatprep.mubr.bf16.mxu0 %v422
      %833 = vmatmul.mubr.bf16.gmra.mxu0 %v421
      %v834 = vpop.f32.mrf.mxu0
      %v835 = vadd.f32 %v738, %v834
      %v836 = vpop.f32.mrf.mxu0
      %v837 = vpop.f32.mrf.mxu0
      %v838 = vadd.f32 %v741, %v837
      %v839 = vpop.f32.mrf.mxu0
      %840 = vdwg.mxu0
      %v841 = vmax.f32 %v779, 0.0
      %v842 = vmax.f32 %v782, 0.0
      %v843 = vmax.f32 %v787, 0.0
      %v844 = vmax.f32 %v790, 0.0
      %v845 = vmax.f32 %v795, 0.0
      %v846 = vmax.f32 %v798, 0.0
      %v847 = vmax.f32 %v803, 0.0
      %v848 = vmax.f32 %v806, 0.0
      %v849 = vmax.f32 %v811, 0.0
      %v850 = vmax.f32 %v814, 0.0
      %v851 = vmax.f32 %v819, 0.0
      %v852 = vmax.f32 %v822, 0.0
      %v853 = vmax.f32 %v827, 0.0
      %v854 = vmax.f32 %v830, 0.0
      %v855 = vmax.f32 %v835, 0.0
      %v856 = vmax.f32 %v838, 0.0
      %v857 = vpack.c.bf16 %v842, %v841
      %v858 = vpack.c.bf16 %v844, %v843
      %v859 = vpack.c.bf16 %v846, %v845
      %v860 = vpack.c.bf16 %v848, %v847
      %v861 = vpack.c.bf16 %v850, %v849
      %v862 = vpack.c.bf16 %v852, %v851
      %v863 = vpack.c.bf16 %v854, %v853
      %v864 = vpack.c.bf16 %v856, %v855
      %v873 = vunpack.c.l.b16 %v857
      %v874 = vunpack.c.h.b16 %v857
      %v875 = vunpack.c.l.b16 %v858
      %v876 = vunpack.c.h.b16 %v858
      %v877 = vunpack.c.l.b16 %v859
      %v878 = vunpack.c.h.b16 %v859
      %v879 = vunpack.c.l.b16 %v860
      %v880 = vunpack.c.h.b16 %v860
      %v881 = vunpack.c.l.b16 %v861
      %v882 = vunpack.c.h.b16 %v861
      %v883 = vunpack.c.l.b16 %v862
      %v884 = vunpack.c.h.b16 %v862
      %v885 = vunpack.c.l.b16 %v863
      %v886 = vunpack.c.h.b16 %v863
      %v887 = vunpack.c.l.b16 %v864
      %v888 = vunpack.c.h.b16 %v864
      %v889 = vpack.c.b16 %v873, %v873
      %v890 = vpack.c.b16 %v874, %v874
      %v891 = vpack.c.b16 %v875, %v875
      %v892 = vpack.c.b16 %v876, %v876
      %v893 = vpack.c.b16 %v877, %v877
      %v894 = vpack.c.b16 %v878, %v878
      %v895 = vpack.c.b16 %v879, %v879
      %v896 = vpack.c.b16 %v880, %v880
      %v897 = vpack.c.b16 %v881, %v881
      %v898 = vpack.c.b16 %v882, %v882
      %v899 = vpack.c.b16 %v883, %v883
      %v900 = vpack.c.b16 %v884, %v884
      %v901 = vpack.c.b16 %v885, %v885
      %v902 = vpack.c.b16 %v886, %v886
      %v903 = vpack.c.b16 %v887, %v887
      %v904 = vpack.c.b16 %v888, %v888
      %921 = vst [vmem:[%s190] sm:$0xf] %v889
      %922 = vst [vmem:[%s190 + $0x4] sm:$0xf] %v890
      %923 = vst [vmem:[%s190 + $0x8] sm:$0xf] %v891
      %924 = vst [vmem:[%s190 + $0xc] sm:$0xf] %v892
      %925 = vst [vmem:[%s190 + $0x10] sm:$0xf] %v893
      %926 = vst [vmem:[%s190 + $0x14] sm:$0xf] %v894
      %927 = vst [vmem:[%s190 + $0x18] sm:$0xf] %v895
      %928 = vst [vmem:[%s190 + $0x1c] sm:$0xf] %v896
      %929 = vst [vmem:[%s190 + $0x20] sm:$0xf] %v897
      %930 = vst [vmem:[%s190 + $0x24] sm:$0xf] %v898
      %931 = vst [vmem:[%s190 + $0x28] sm:$0xf] %v899
      %932 = vst [vmem:[%s190 + $0x2c] sm:$0xf] %v900
      %933 = vst [vmem:[%s190 + $0x30] sm:$0xf] %v901
      %934 = vst [vmem:[%s190 + $0x34] sm:$0xf] %v902
      %935 = vst [vmem:[%s190 + $0x38] sm:$0xf] %v903
      %936 = vst [vmem:[%s190 + $0x3c] sm:$0xf] %v904
      %p937 = scmp.lt.s32.totalorder %s14, 3
      %s938 = scalar_select %p937, %s14, 3
      %s939 = smul.addr %s938, 16
      %s940 = smul.addr %s939, 4
      %s941 = scalar_lea.vmem %s3, %s940
      // Predicated region
      $region33: #{vae_decoder_forward.6} parent=31 // pred_check
        %p942 = pneg %p105
      $region34: #{vae_decoder_forward.6} parent=31 // pred_check_branch
        %944 = sbr.rel (%p942) target = $region36
      $region35: #{vae_decoder_forward.6} parent=31 // pred_region
        _
      $region36: #{vae_decoder_forward.6} parent=31 // pred_fallthru
        _
    $region32: #{vae_decoder_forward.6} parent=5 // pred_fallthru
      _
    %p945 = scmp.le.s32.totalorder 2, %s9
    // Predicated region
    $region37: #{vae_decoder_forward.6} parent=5 // pred_check
      %p946 = pneg %p945
    $region38: #{vae_decoder_forward.6} parent=5 // pred_check_branch
      %948 = sbr.rel (%p946) target = $region40
    $region39: #{vae_decoder_forward.6} parent=5 // pred_region
      %s949 = ssub.s32 %s9, 2
      // Predicated region
      $region41: #{vae_decoder_forward.6} parent=39 // pred_check
        %p950 = pneg %p111
      $region42: #{vae_decoder_forward.6} parent=39 // pred_check_branch
        %952 = sbr.rel (%p950) target = $region44
      $region43: #{vae_decoder_forward.6} parent=39 // pred_region
        %p953 = scmp.lt.s32.totalorder %s15, 3
        %s954 = scalar_select %p953, %s15, 3
        %s955 = smul.addr %s954, 16
        %s956 = smul.addr %s955, 4
        %s957 = scalar_lea.vmem %s3, %s956
      $region44: #{vae_decoder_forward.6} parent=39 // pred_fallthru
        _
    $region40: #{vae_decoder_forward.6} parent=5 // pred_fallthru
      _
  $region6: #{vae_decoder_forward.6} parent=0 // loop_footer
    %s13 = sadd.s32 1, %s9
  $region7: #{vae_decoder_forward.6} parent=0 // loop_footer_branch
    %8 = sbr.rel target = $region3
  $region8: #{vae_decoder_forward.6} parent=0 // loop_exit
    _

// kernel: vae_decoder_forward.4
$region0: #{vae_decoder_forward.4}
  #allocation0 [shape = 'u32[]', space=smem, size = 0x4, offset = 0x4, fixed_abs, tag = 'smem constant byte address 0x4 - core index']
  #allocation1 [shape = 'u32[144,128]{1,0:T(1,128)}', space=vmem, size = 0x12000, scoped, tag = 'internal scratch']
  %s0 = inlined_call_operand.vmem [shape: bf16[1,8,128], index: 0, kind: input, shape index: {}]
  %s1 = inlined_call_operand.hbm [shape: bf16[1,128,4096], index: 1, kind: input, shape index: {}]
  %s2 = inlined_call_operand.hbm [shape: f32[1,4096], index: 2, kind: input, shape index: {}]
  %s3 = inlined_call_operand.vmem [shape: bf16[1,8,4096], index: 3, kind: output, shape index: {}]
  %s4 = sld [smem:[#allocation0]]
  $region30: #{vae_decoder_forward.4} parent=0
    _
  %s6 = ssub.s32 1, %s4
  %s7 = scalar_select 0, %s6, %s4
  $region1: #{vae_decoder_forward.4} parent=0
    #allocation2 [shape = 'u8[1048576]{0}', space=vmem, size = 0x100000, scoped, tag = 'input window, operand 1, single buffered']
    #allocation3 [shape = 's32[1]{0}', space=sflag, size = 0x4, scoped, tag = 'scoped memory for vae_decoder_forward.4']
    #allocation4 [shape = 'u8[16384]{0}', space=vmem, size = 0x4000, scoped, tag = 'input window, operand 2, single buffered']
    #allocation5 [shape = 's32[1]{0}', space=sflag, size = 0x4, scoped, tag = 'scoped memory for vae_decoder_forward.4']
    %8 = vsyncpa [#allocation3], 0
    %9 = vsyncpa [#allocation5], 0
    // Predicated region
    $region2: #{vae_decoder_forward.4} parent=1 // pred_check
      _
    $region3: #{vae_decoder_forward.4} parent=1 // pred_check_branch
      %11 = sbr.rel (0) target = $region5
    $region4: #{vae_decoder_forward.4} parent=1 // pred_region
      _
    $region5: #{vae_decoder_forward.4} parent=1 // pred_fallthru
      _
    // Predicated region
    $region6: #{vae_decoder_forward.4} parent=1 // pred_check
      _
    $region7: #{vae_decoder_forward.4} parent=1 // pred_check_branch
      %13 = sbr.rel (0) target = $region9
    $region8: #{vae_decoder_forward.4} parent=1 // pred_region
      %s15 = ssub.s32 32768, 32768
      %16 = vsyncadd [#allocation3], %s15
      %s17 = sshll.u32 [#allocation2], 4
      %s18 = int_to_ptr.vmem [resolvable:$true] %s17
      %23 = dma.hbm_to_vmem [thread:$0]  %s1, 32768, %s18, [#allocation3], 2048, 2048, 128
    $region9: #{vae_decoder_forward.4} parent=1 // pred_fallthru
      _
    // Predicated region
    $region10: #{vae_decoder_forward.4} parent=1 // pred_check
      _
    $region11: #{vae_decoder_forward.4} parent=1 // pred_check_branch
      %25 = sbr.rel (0) target = $region13
    $region12: #{vae_decoder_forward.4} parent=1 // pred_region
      %s27 = ssub.s32 512, 512
      %28 = vsyncadd [#allocation5], %s27
      %s30 = sshll.u32 [#allocation4], 4
      %s31 = int_to_ptr.vmem [resolvable:$true] %s30
      %33 = dma.hbm_to_vmem [thread:$0]  %s2, 512, %s31, [#allocation5]
    $region13: #{vae_decoder_forward.4} parent=1 // pred_fallthru
      _
    // Predicated region
    $region14: #{vae_decoder_forward.4} parent=1 // pred_check
      _
    $region15: #{vae_decoder_forward.4} parent=1 // pred_check_branch
      %35 = sbr.rel (0) target = $region17
    $region16: #{vae_decoder_forward.4} parent=1 // pred_region
      %36 = dma.done [#allocation3], 32768
    $region17: #{vae_decoder_forward.4} parent=1 // pred_fallthru
      _
    // Predicated region
    $region18: #{vae_decoder_forward.4} parent=1 // pred_check
      _
    $region19: #{vae_decoder_forward.4} parent=1 // pred_check_branch
      %38 = sbr.rel (0) target = $region21
    $region20: #{vae_decoder_forward.4} parent=1 // pred_region
      %39 = dma.done [#allocation5], 512
    $region21: #{vae_decoder_forward.4} parent=1 // pred_fallthru
      _
    %v41 = vld [vmem:[%s0] sm:$0xf]
    %v42 = vld [vmem:[#allocation2] sm:$0xff]
    %v43 = vld [vmem:[#allocation2 + $0x8] sm:$0xff]
    %v44 = vld [vmem:[#allocation2 + $0x10] sm:$0xff]
    %v45 = vld [vmem:[#allocation2 + $0x18] sm:$0xff]
    %v46 = vld [vmem:[#allocation2 + $0x20] sm:$0xff]
    %v47 = vld [vmem:[#allocation2 + $0x28] sm:$0xff]
    %v48 = vld [vmem:[#allocation2 + $0x30] sm:$0xff]
    %v49 = vld [vmem:[#allocation2 + $0x38] sm:$0xff]
    %v50 = vld [vmem:[#allocation2 + $0x40] sm:$0xff]
    %v51 = vld [vmem:[#allocation2 + $0x48] sm:$0xff]
    %v52 = vld [vmem:[#allocation2 + $0x50] sm:$0xff]
    %v53 = vld [vmem:[#allocation2 + $0x58] sm:$0xff]
    %v54 = vld [vmem:[#allocation2 + $0x60] sm:$0xff]
    %v55 = vld [vmem:[#allocation2 + $0x68] sm:$0xff]
    %v56 = vld [vmem:[#allocation2 + $0x70] sm:$0xff]
    %v57 = vld [vmem:[#allocation2 + $0x78] sm:$0xff]
    %v58 = vld [vmem:[#allocation2 + $0x80] sm:$0xff]
    %v59 = vld [vmem:[#allocation2 + $0x88] sm:$0xff]
    %v60 = vld [vmem:[#allocation2 + $0x90] sm:$0xff]
    %v61 = vld [vmem:[#allocation2 + $0x98] sm:$0xff]
    %v62 = vld [vmem:[#allocation2 + $0xa0] sm:$0xff]
    %v63 = vld [vmem:[#allocation2 + $0xa8] sm:$0xff]
    %v64 = vld [vmem:[#allocation2 + $0xb0] sm:$0xff]
    %v65 = vld [vmem:[#allocation2 + $0xb8] sm:$0xff]
    %v66 = vld [vmem:[#allocation2 + $0xc0] sm:$0xff]
    %v67 = vld [vmem:[#allocation2 + $0xc8] sm:$0xff]
    %v68 = vld [vmem:[#allocation2 + $0xd0] sm:$0xff]
    %v69 = vld [vmem:[#allocation2 + $0xd8] sm:$0xff]
    %v70 = vld [vmem:[#allocation2 + $0xe0] sm:$0xff]
    %v71 = vld [vmem:[#allocation2 + $0xe8] sm:$0xff]
    %v72 = vld [vmem:[#allocation2 + $0xf0] sm:$0xff]
    %v73 = vld [vmem:[#allocation2 + $0xf8] sm:$0xff]
    %v74 = vld [vmem:[#allocation2 + $0x100] sm:$0xff]
    %v75 = vld [vmem:[#allocation2 + $0x108] sm:$0xff]
    %v76 = vld [vmem:[#allocation2 + $0x110] sm:$0xff]
    %v77 = vld [vmem:[#allocation2 + $0x118] sm:$0xff]
    %v78 = vld [vmem:[#allocation2 + $0x120] sm:$0xff]
    %v79 = vld [vmem:[#allocation2 + $0x128] sm:$0xff]
    %v80 = vld [vmem:[#allocation2 + $0x130] sm:$0xff]
    %v81 = vld [vmem:[#allocation2 + $0x138] sm:$0xff]
    %v82 = vld [vmem:[#allocation2 + $0x140] sm:$0xff]
    %v83 = vld [vmem:[#allocation2 + $0x148] sm:$0xff]
    %v84 = vld [vmem:[#allocation2 + $0x150] sm:$0xff]
    %v85 = vld [vmem:[#allocation2 + $0x158] sm:$0xff]
    %v86 = vld [vmem:[#allocation2 + $0x160] sm:$0xff]
    %v87 = vld [vmem:[#allocation2 + $0x168] sm:$0xff]
    %v88 = vld [vmem:[#allocation2 + $0x170] sm:$0xff]
    %v89 = vld [vmem:[#allocation2 + $0x178] sm:$0xff]
    %v90 = vld [vmem:[#allocation2 + $0x180] sm:$0xff]
    %v91 = vld [vmem:[#allocation2 + $0x188] sm:$0xff]
    %v92 = vld [vmem:[#allocation2 + $0x190] sm:$0xff]
    %v93 = vld [vmem:[#allocation2 + $0x198] sm:$0xff]
    %v94 = vld [vmem:[#allocation2 + $0x1a0] sm:$0xff]
    %v95 = vld [vmem:[#allocation2 + $0x1a8] sm:$0xff]
    %v96 = vld [vmem:[#allocation2 + $0x1b0] sm:$0xff]
    %v97 = vld [vmem:[#allocation2 + $0x1b8] sm:$0xff]
    %v98 = vld [vmem:[#allocation2 + $0x1c0] sm:$0xff]
    %v99 = vld [vmem:[#allocation2 + $0x1c8] sm:$0xff]
    %v100 = vld [vmem:[#allocation2 + $0x1d0] sm:$0xff]
    %v101 = vld [vmem:[#allocation2 + $0x1d8] sm:$0xff]
    %v102 = vld [vmem:[#allocation2 + $0x1e0] sm:$0xff]
    %v103 = vld [vmem:[#allocation2 + $0x1e8] sm:$0xff]
    %v104 = vld [vmem:[#allocation2 + $0x1f0] sm:$0xff]
    %v105 = vld [vmem:[#allocation2 + $0x1f8] sm:$0xff]
    %v106 = vld [vmem:[#allocation2 + $0x200] sm:$0xff]
    %v107 = vld [vmem:[#allocation2 + $0x208] sm:$0xff]
    %v108 = vld [vmem:[#allocation2 + $0x210] sm:$0xff]
    %v109 = vld [vmem:[#allocation2 + $0x218] sm:$0xff]
    %v110 = vld [vmem:[#allocation2 + $0x220] sm:$0xff]
    %v111 = vld [vmem:[#allocation2 + $0x228] sm:$0xff]
    %v112 = vld [vmem:[#allocation2 + $0x230] sm:$0xff]
    %v113 = vld [vmem:[#allocation2 + $0x238] sm:$0xff]
    %v114 = vld [vmem:[#allocation2 + $0x240] sm:$0xff]
    %v115 = vld [vmem:[#allocation2 + $0x248] sm:$0xff]
    %v116 = vld [vmem:[#allocation2 + $0x250] sm:$0xff]
    %v117 = vld [vmem:[#allocation2 + $0x258] sm:$0xff]
    %v118 = vld [vmem:[#allocation2 + $0x260] sm:$0xff]
    %v119 = vld [vmem:[#allocation2 + $0x268] sm:$0xff]
    %v120 = vld [vmem:[#allocation2 + $0x270] sm:$0xff]
    %v121 = vld [vmem:[#allocation2 + $0x278] sm:$0xff]
    %v122 = vld [vmem:[#allocation2 + $0x280] sm:$0xff]
    %v123 = vld [vmem:[#allocation2 + $0x288] sm:$0xff]
    %v124 = vld [vmem:[#allocation2 + $0x290] sm:$0xff]
    %v125 = vld [vmem:[#allocation2 + $0x298] sm:$0xff]
    %v126 = vld [vmem:[#allocation2 + $0x2a0] sm:$0xff]
    %v127 = vld [vmem:[#allocation2 + $0x2a8] sm:$0xff]
    %v128 = vld [vmem:[#allocation2 + $0x2b0] sm:$0xff]
    %v129 = vld [vmem:[#allocation2 + $0x2b8] sm:$0xff]
    %v130 = vld [vmem:[#allocation2 + $0x2c0] sm:$0xff]
    %v131 = vld [vmem:[#allocation2 + $0x2c8] sm:$0xff]
    %v132 = vld [vmem:[#allocation2 + $0x2d0] sm:$0xff]
    %v133 = vld [vmem:[#allocation2 + $0x2d8] sm:$0xff]
    %v134 = vld [vmem:[#allocation2 + $0x2e0] sm:$0xff]
    %v135 = vld [vmem:[#allocation2 + $0x2e8] sm:$0xff]
    %v136 = vld [vmem:[#allocation2 + $0x2f0] sm:$0xff]
    %v137 = vld [vmem:[#allocation2 + $0x2f8] sm:$0xff]
    %v138 = vld [vmem:[#allocation2 + $0x300] sm:$0xff]
    %v139 = vld [vmem:[#allocation2 + $0x308] sm:$0xff]
    %v140 = vld [vmem:[#allocation2 + $0x310] sm:$0xff]
    %v141 = vld [vmem:[#allocation2 + $0x318] sm:$0xff]
    %v142 = vld [vmem:[#allocation2 + $0x320] sm:$0xff]
    %v143 = vld [vmem:[#allocation2 + $0x328] sm:$0xff]
    %v144 = vld [vmem:[#allocation2 + $0x330] sm:$0xff]
    %v145 = vld [vmem:[#allocation2 + $0x338] sm:$0xff]
    %v146 = vld [vmem:[#allocation2 + $0x340] sm:$0xff]
    %v147 = vld [vmem:[#allocation2 + $0x348] sm:$0xff]
    %v148 = vld [vmem:[#allocation2 + $0x350] sm:$0xff]
    %v149 = vld [vmem:[#allocation2 + $0x358] sm:$0xff]
    %v150 = vld [vmem:[#allocation2 + $0x360] sm:$0xff]
    %v151 = vld [vmem:[#allocation2 + $0x368] sm:$0xff]
    %v152 = vld [vmem:[#allocation2 + $0x370] sm:$0xff]
    %v153 = vld [vmem:[#allocation2 + $0x378] sm:$0xff]
    %v154 = vld [vmem:[#allocation2 + $0x380] sm:$0xff]
    %v155 = vld [vmem:[#allocation2 + $0x388] sm:$0xff]
    %v156 = vld [vmem:[#allocation2 + $0x390] sm:$0xff]
    %v157 = vld [vmem:[#allocation2 + $0x398] sm:$0xff]
    %v158 = vld [vmem:[#allocation2 + $0x3a0] sm:$0xff]
    %v159 = vld [vmem:[#allocation2 + $0x3a8] sm:$0xff]
    %v160 = vld [vmem:[#allocation2 + $0x3b0] sm:$0xff]
    %v161 = vld [vmem:[#allocation2 + $0x3b8] sm:$0xff]
    %v162 = vld [vmem:[#allocation2 + $0x3c0] sm:$0xff]
    %v163 = vld [vmem:[#allocation2 + $0x3c8] sm:$0xff]
    %v164 = vld [vmem:[#allocation2 + $0x3d0] sm:$0xff]
    %v165 = vld [vmem:[#allocation2 + $0x3d8] sm:$0xff]
    %v166 = vld [vmem:[#allocation2 + $0x3e0] sm:$0xff]
    %v167 = vld [vmem:[#allocation2 + $0x3e8] sm:$0xff]
    %v168 = vld [vmem:[#allocation2 + $0x3f0] sm:$0xff]
    %v169 = vld [vmem:[#allocation2 + $0x3f8] sm:$0xff]
    %v170 = vld [vmem:[#allocation2 + $0x400] sm:$0xff]
    %v171 = vld [vmem:[#allocation2 + $0x408] sm:$0xff]
    %v172 = vld [vmem:[#allocation2 + $0x410] sm:$0xff]
    %v173 = vld [vmem:[#allocation2 + $0x418] sm:$0xff]
    %v174 = vld [vmem:[#allocation2 + $0x420] sm:$0xff]
    %v175 = vld [vmem:[#allocation2 + $0x428] sm:$0xff]
    %v176 = vld [vmem:[#allocation2 + $0x430] sm:$0xff]
    %v177 = vld [vmem:[#allocation2 + $0x438] sm:$0xff]
    %v178 = vld [vmem:[#allocation2 + $0x440] sm:$0xff]
    %v179 = vld [vmem:[#allocation2 + $0x448] sm:$0xff]
    %v180 = vld [vmem:[#allocation2 + $0x450] sm:$0xff]
    %v181 = vld [vmem:[#allocation2 + $0x458] sm:$0xff]
    %v182 = vld [vmem:[#allocation2 + $0x460] sm:$0xff]
    %v183 = vld [vmem:[#allocation2 + $0x468] sm:$0xff]
    %v184 = vld [vmem:[#allocation2 + $0x470] sm:$0xff]
    %v185 = vld [vmem:[#allocation2 + $0x478] sm:$0xff]
    %v186 = vld [vmem:[#allocation2 + $0x480] sm:$0xff]
    %v187 = vld [vmem:[#allocation2 + $0x488] sm:$0xff]
    %v188 = vld [vmem:[#allocation2 + $0x490] sm:$0xff]
    %v189 = vld [vmem:[#allocation2 + $0x498] sm:$0xff]
    %v190 = vld [vmem:[#allocation2 + $0x4a0] sm:$0xff]
    %v191 = vld [vmem:[#allocation2 + $0x4a8] sm:$0xff]
    %v192 = vld [vmem:[#allocation2 + $0x4b0] sm:$0xff]
    %v193 = vld [vmem:[#allocation2 + $0x4b8] sm:$0xff]
    %v194 = vld [vmem:[#allocation2 + $0x4c0] sm:$0xff]
    %v195 = vld [vmem:[#allocation2 + $0x4c8] sm:$0xff]
    %v196 = vld [vmem:[#allocation2 + $0x4d0] sm:$0xff]
    %v197 = vld [vmem:[#allocation2 + $0x4d8] sm:$0xff]
    %v198 = vld [vmem:[#allocation2 + $0x4e0] sm:$0xff]
    %v199 = vld [vmem:[#allocation2 + $0x4e8] sm:$0xff]
    %v200 = vld [vmem:[#allocation2 + $0x4f0] sm:$0xff]
    %v201 = vld [vmem:[#allocation2 + $0x4f8] sm:$0xff]
    %v202 = vld [vmem:[#allocation2 + $0x500] sm:$0xff]
    %v203 = vld [vmem:[#allocation2 + $0x508] sm:$0xff]
    %v204 = vld [vmem:[#allocation2 + $0x510] sm:$0xff]
    %v205 = vld [vmem:[#allocation2 + $0x518] sm:$0xff]
    %v206 = vld [vmem:[#allocation2 + $0x520] sm:$0xff]
    %v207 = vld [vmem:[#allocation2 + $0x528] sm:$0xff]
    %v208 = vld [vmem:[#allocation2 + $0x530] sm:$0xff]
    %v209 = vld [vmem:[#allocation2 + $0x538] sm:$0xff]
    %v210 = vld [vmem:[#allocation2 + $0x540] sm:$0xff]
    %v211 = vld [vmem:[#allocation2 + $0x548] sm:$0xff]
    %v212 = vld [vmem:[#allocation2 + $0x550] sm:$0xff]
    %v213 = vld [vmem:[#allocation2 + $0x558] sm:$0xff]
    %v214 = vld [vmem:[#allocation2 + $0x560] sm:$0xff]
    %v215 = vld [vmem:[#allocation2 + $0x568] sm:$0xff]
    %v216 = vld [vmem:[#allocation2 + $0x570] sm:$0xff]
    %v217 = vld [vmem:[#allocation2 + $0x578] sm:$0xff]
    %v218 = vld [vmem:[#allocation2 + $0x580] sm:$0xff]
    %v219 = vld [vmem:[#allocation2 + $0x588] sm:$0xff]
    %v220 = vld [vmem:[#allocation2 + $0x590] sm:$0xff]
    %v221 = vld [vmem:[#allocation2 + $0x598] sm:$0xff]
    %v222 = vld [vmem:[#allocation2 + $0x5a0] sm:$0xff]
    %v223 = vld [vmem:[#allocation2 + $0x5a8] sm:$0xff]
    %v224 = vld [vmem:[#allocation2 + $0x5b0] sm:$0xff]
    %v225 = vld [vmem:[#allocation2 + $0x5b8] sm:$0xff]
    %v226 = vld [vmem:[#allocation2 + $0x5c0] sm:$0xff]
    %v227 = vld [vmem:[#allocation2 + $0x5c8] sm:$0xff]
    %v228 = vld [vmem:[#allocation2 + $0x5d0] sm:$0xff]
    %v229 = vld [vmem:[#allocation2 + $0x5d8] sm:$0xff]
    %v230 = vld [vmem:[#allocation2 + $0x5e0] sm:$0xff]
    %v231 = vld [vmem:[#allocation2 + $0x5e8] sm:$0xff]
    %v232 = vld [vmem:[#allocation2 + $0x5f0] sm:$0xff]
    %v233 = vld [vmem:[#allocation2 + $0x5f8] sm:$0xff]
    %v234 = vld [vmem:[#allocation2 + $0x600] sm:$0xff]
    %v235 = vld [vmem:[#allocation2 + $0x608] sm:$0xff]
    %v236 = vld [vmem:[#allocation2 + $0x610] sm:$0xff]
    %v237 = vld [vmem:[#allocation2 + $0x618] sm:$0xff]
    %v238 = vld [vmem:[#allocation2 + $0x620] sm:$0xff]
    %v239 = vld [vmem:[#allocation2 + $0x628] sm:$0xff]
    %v240 = vld [vmem:[#allocation2 + $0x630] sm:$0xff]
    %v241 = vld [vmem:[#allocation2 + $0x638] sm:$0xff]
    %v242 = vld [vmem:[#allocation2 + $0x640] sm:$0xff]
    %v243 = vld [vmem:[#allocation2 + $0x648] sm:$0xff]
    %v244 = vld [vmem:[#allocation2 + $0x650] sm:$0xff]
    %v245 = vld [vmem:[#allocation2 + $0x658] sm:$0xff]
    %v246 = vld [vmem:[#allocation2 + $0x660] sm:$0xff]
    %v247 = vld [vmem:[#allocation2 + $0x668] sm:$0xff]
    %v248 = vld [vmem:[#allocation2 + $0x670] sm:$0xff]
    %v249 = vld [vmem:[#allocation2 + $0x678] sm:$0xff]
    %v250 = vld [vmem:[#allocation2 + $0x680] sm:$0xff]
    %v251 = vld [vmem:[#allocation2 + $0x688] sm:$0xff]
    %v252 = vld [vmem:[#allocation2 + $0x690] sm:$0xff]
    %v253 = vld [vmem:[#allocation2 + $0x698] sm:$0xff]
    %v254 = vld [vmem:[#allocation2 + $0x6a0] sm:$0xff]
    %v255 = vld [vmem:[#allocation2 + $0x6a8] sm:$0xff]
    %v256 = vld [vmem:[#allocation2 + $0x6b0] sm:$0xff]
    %v257 = vld [vmem:[#allocation2 + $0x6b8] sm:$0xff]
    %v258 = vld [vmem:[#allocation2 + $0x6c0] sm:$0xff]
    %v259 = vld [vmem:[#allocation2 + $0x6c8] sm:$0xff]
    %v260 = vld [vmem:[#allocation2 + $0x6d0] sm:$0xff]
    %v261 = vld [vmem:[#allocation2 + $0x6d8] sm:$0xff]
    %v262 = vld [vmem:[#allocation2 + $0x6e0] sm:$0xff]
    %v263 = vld [vmem:[#allocation2 + $0x6e8] sm:$0xff]
    %v264 = vld [vmem:[#allocation2 + $0x6f0] sm:$0xff]
    %v265 = vld [vmem:[#allocation2 + $0x6f8] sm:$0xff]
    %v266 = vld [vmem:[#allocation2 + $0x700] sm:$0xff]
    %v267 = vld [vmem:[#allocation2 + $0x708] sm:$0xff]
    %v268 = vld [vmem:[#allocation2 + $0x710] sm:$0xff]
    %v269 = vld [vmem:[#allocation2 + $0x718] sm:$0xff]
    %v270 = vld [vmem:[#allocation2 + $0x720] sm:$0xff]
    %v271 = vld [vmem:[#allocation2 + $0x728] sm:$0xff]
    %v272 = vld [vmem:[#allocation2 + $0x730] sm:$0xff]
    %v273 = vld [vmem:[#allocation2 + $0x738] sm:$0xff]
    %v274 = vld [vmem:[#allocation2 + $0x740] sm:$0xff]
    %v275 = vld [vmem:[#allocation2 + $0x748] sm:$0xff]
    %v276 = vld [vmem:[#allocation2 + $0x750] sm:$0xff]
    %v277 = vld [vmem:[#allocation2 + $0x758] sm:$0xff]
    %v278 = vld [vmem:[#allocation2 + $0x760] sm:$0xff]
    %v279 = vld [vmem:[#allocation2 + $0x768] sm:$0xff]
    %v280 = vld [vmem:[#allocation2 + $0x770] sm:$0xff]
    %v281 = vld [vmem:[#allocation2 + $0x778] sm:$0xff]
    %v282 = vld [vmem:[#allocation2 + $0x780] sm:$0xff]
    %v283 = vld [vmem:[#allocation2 + $0x788] sm:$0xff]
    %v284 = vld [vmem:[#allocation2 + $0x790] sm:$0xff]
    %v285 = vld [vmem:[#allocation2 + $0x798] sm:$0xff]
    %v286 = vld [vmem:[#allocation2 + $0x7a0] sm:$0xff]
    %v287 = vld [vmem:[#allocation2 + $0x7a8] sm:$0xff]
    %v288 = vld [vmem:[#allocation2 + $0x7b0] sm:$0xff]
    %v289 = vld [vmem:[#allocation2 + $0x7b8] sm:$0xff]
    %v290 = vld [vmem:[#allocation2 + $0x7c0] sm:$0xff]
    %v291 = vld [vmem:[#allocation2 + $0x7c8] sm:$0xff]
    %v292 = vld [vmem:[#allocation2 + $0x7d0] sm:$0xff]
    %v293 = vld [vmem:[#allocation2 + $0x7d8] sm:$0xff]
    %v294 = vld [vmem:[#allocation2 + $0x7e0] sm:$0xff]
    %v295 = vld [vmem:[#allocation2 + $0x7e8] sm:$0xff]
    %v296 = vld [vmem:[#allocation2 + $0x7f0] sm:$0xff]
    %v297 = vld [vmem:[#allocation2 + $0x7f8] sm:$0xff]
    %v298 = vld [vmem:[#allocation4] sm:$0xff]
    %v299 = vld [vmem:[#allocation4 + $0x8] sm:$0xff]
    %v300 = vld [vmem:[#allocation4 + $0x10] sm:$0xff]
    %v301 = vld [vmem:[#allocation4 + $0x18] sm:$0xff]
    %v306 = vlaneseq
    %v307 = vshrl.u32 %v306, 7
    %v308 = vsub.s32 0, %v307
    %v309 = vrot.slane %v298, %v308
    %v310 = vlaneseq
    %v311 = vshrl.u32 %v310, 7
    %v312 = vsub.s32 1, %v311
    %v313 = vrot.slane %v298, %v312
    %v314 = vlaneseq
    %v315 = vshrl.u32 %v314, 7
    %v316 = vsub.s32 2, %v315
    %v317 = vrot.slane %v298, %v316
    %v318 = vlaneseq
    %v319 = vshrl.u32 %v318, 7
    %v320 = vsub.s32 3, %v319
    %v321 = vrot.slane %v298, %v320
    %v322 = vlaneseq
    %v323 = vshrl.u32 %v322, 7
    %v324 = vsub.s32 4, %v323
    %v325 = vrot.slane %v298, %v324
    %v326 = vlaneseq
    %v327 = vshrl.u32 %v326, 7
    %v328 = vsub.s32 5, %v327
    %v329 = vrot.slane %v298, %v328
    %v330 = vlaneseq
    %v331 = vshrl.u32 %v330, 7
    %v332 = vsub.s32 6, %v331
    %v333 = vrot.slane %v298, %v332
    %v334 = vlaneseq
    %v335 = vshrl.u32 %v334, 7
    %v336 = vsub.s32 7, %v335
    %v337 = vrot.slane %v298, %v336
    %v338 = vlaneseq
    %v339 = vshrl.u32 %v338, 7
    %v340 = vsub.s32 0, %v339
    %v341 = vrot.slane %v299, %v340
    %v342 = vlaneseq
    %v343 = vshrl.u32 %v342, 7
    %v344 = vsub.s32 1, %v343
    %v345 = vrot.slane %v299, %v344
    %v346 = vlaneseq
    %v347 = vshrl.u32 %v346, 7
    %v348 = vsub.s32 2, %v347
    %v349 = vrot.slane %v299, %v348
    %v350 = vlaneseq
    %v351 = vshrl.u32 %v350, 7
    %v352 = vsub.s32 3, %v351
    %v353 = vrot.slane %v299, %v352
    %v354 = vlaneseq
    %v355 = vshrl.u32 %v354, 7
    %v356 = vsub.s32 4, %v355
    %v357 = vrot.slane %v299, %v356
    %v358 = vlaneseq
    %v359 = vshrl.u32 %v358, 7
    %v360 = vsub.s32 5, %v359
    %v361 = vrot.slane %v299, %v360
    %v362 = vlaneseq
    %v363 = vshrl.u32 %v362, 7
    %v364 = vsub.s32 6, %v363
    %v365 = vrot.slane %v299, %v364
    %v366 = vlaneseq
    %v367 = vshrl.u32 %v366, 7
    %v368 = vsub.s32 7, %v367
    %v369 = vrot.slane %v299, %v368
    %v370 = vlaneseq
    %v371 = vshrl.u32 %v370, 7
    %v372 = vsub.s32 0, %v371
    %v373 = vrot.slane %v300, %v372
    %v374 = vlaneseq
    %v375 = vshrl.u32 %v374, 7
    %v376 = vsub.s32 1, %v375
    %v377 = vrot.slane %v300, %v376
    %v378 = vlaneseq
    %v379 = vshrl.u32 %v378, 7
    %v380 = vsub.s32 2, %v379
    %v381 = vrot.slane %v300, %v380
    %v382 = vlaneseq
    %v383 = vshrl.u32 %v382, 7
    %v384 = vsub.s32 3, %v383
    %v385 = vrot.slane %v300, %v384
    %v386 = vlaneseq
    %v387 = vshrl.u32 %v386, 7
    %v388 = vsub.s32 4, %v387
    %v389 = vrot.slane %v300, %v388
    %v390 = vlaneseq
    %v391 = vshrl.u32 %v390, 7
    %v392 = vsub.s32 5, %v391
    %v393 = vrot.slane %v300, %v392
    %v394 = vlaneseq
    %v395 = vshrl.u32 %v394, 7
    %v396 = vsub.s32 6, %v395
    %v397 = vrot.slane %v300, %v396
    %v398 = vlaneseq
    %v399 = vshrl.u32 %v398, 7
    %v400 = vsub.s32 7, %v399
    %v401 = vrot.slane %v300, %v400
    %v402 = vlaneseq
    %v403 = vshrl.u32 %v402, 7
    %v404 = vsub.s32 0, %v403
    %v405 = vrot.slane %v301, %v404
    %v406 = vlaneseq
    %v407 = vshrl.u32 %v406, 7
    %v408 = vsub.s32 1, %v407
    %v409 = vrot.slane %v301, %v408
    %v410 = vlaneseq
    %v411 = vshrl.u32 %v410, 7
    %v412 = vsub.s32 2, %v411
    %v413 = vrot.slane %v301, %v412
    %v414 = vlaneseq
    %v415 = vshrl.u32 %v414, 7
    %v416 = vsub.s32 3, %v415
    %v417 = vrot.slane %v301, %v416
    %v418 = vlaneseq
    %v419 = vshrl.u32 %v418, 7
    %v420 = vsub.s32 4, %v419
    %v421 = vrot.slane %v301, %v420
    %v422 = vlaneseq
    %v423 = vshrl.u32 %v422, 7
    %v424 = vsub.s32 5, %v423
    %v425 = vrot.slane %v301, %v424
    %v426 = vlaneseq
    %v427 = vshrl.u32 %v426, 7
    %v428 = vsub.s32 6, %v427
    %v429 = vrot.slane %v301, %v428
    %v430 = vlaneseq
    %v431 = vshrl.u32 %v430, 7
    %v432 = vsub.s32 7, %v431
    %v433 = vrot.slane %v301, %v432
    %v722 = vunpack.c.l.b16 %v42
    %v723 = vunpack.c.h.b16 %v42
    %v724 = vunpack.c.l.b16 %v43
    %v725 = vunpack.c.h.b16 %v43
    %v726 = vunpack.c.l.b16 %v44
    %v727 = vunpack.c.h.b16 %v44
    %v728 = vunpack.c.l.b16 %v45
    %v729 = vunpack.c.h.b16 %v45
    %v730 = vunpack.c.l.b16 %v46
    %v731 = vunpack.c.h.b16 %v46
    %v732 = vunpack.c.l.b16 %v47
    %v733 = vunpack.c.h.b16 %v47
    %v734 = vunpack.c.l.b16 %v48
    %v735 = vunpack.c.h.b16 %v48
    %v736 = vunpack.c.l.b16 %v49
    %v737 = vunpack.c.h.b16 %v49
    %v738 = vunpack.c.l.b16 %v50
    %v739 = vunpack.c.h.b16 %v50
    %v740 = vunpack.c.l.b16 %v51
    %v741 = vunpack.c.h.b16 %v51
    %v742 = vunpack.c.l.b16 %v52
    %v743 = vunpack.c.h.b16 %v52
    %v744 = vunpack.c.l.b16 %v53
    %v745 = vunpack.c.h.b16 %v53
    %v746 = vunpack.c.l.b16 %v54
    %v747 = vunpack.c.h.b16 %v54
    %v748 = vunpack.c.l.b16 %v55
    %v749 = vunpack.c.h.b16 %v55
    %v750 = vunpack.c.l.b16 %v56
    %v751 = vunpack.c.h.b16 %v56
    %v752 = vunpack.c.l.b16 %v57
    %v753 = vunpack.c.h.b16 %v57
    %v754 = vunpack.c.l.b16 %v58
    %v755 = vunpack.c.h.b16 %v58
    %v756 = vunpack.c.l.b16 %v59
    %v757 = vunpack.c.h.b16 %v59
    %v758 = vunpack.c.l.b16 %v60
    %v759 = vunpack.c.h.b16 %v60
    %v760 = vunpack.c.l.b16 %v61
    %v761 = vunpack.c.h.b16 %v61
    %v762 = vunpack.c.l.b16 %v62
    %v763 = vunpack.c.h.b16 %v62
    %v764 = vunpack.c.l.b16 %v63
    %v765 = vunpack.c.h.b16 %v63
    %v766 = vunpack.c.l.b16 %v64
    %v767 = vunpack.c.h.b16 %v64
    %v768 = vunpack.c.l.b16 %v65
    %v769 = vunpack.c.h.b16 %v65
    %v770 = vunpack.c.l.b16 %v66
    %v771 = vunpack.c.h.b16 %v66
    %v772 = vunpack.c.l.b16 %v67
    %v773 = vunpack.c.h.b16 %v67
    %v774 = vunpack.c.l.b16 %v68
    %v775 = vunpack.c.h.b16 %v68
    %v776 = vunpack.c.l.b16 %v69
    %v777 = vunpack.c.h.b16 %v69
    %v778 = vunpack.c.l.b16 %v70
    %v779 = vunpack.c.h.b16 %v70
    %v780 = vunpack.c.l.b16 %v71
    %v781 = vunpack.c.h.b16 %v71
    %v782 = vunpack.c.l.b16 %v72
    %v783 = vunpack.c.h.b16 %v72
    %v784 = vunpack.c.l.b16 %v73
    %v785 = vunpack.c.h.b16 %v73
    %v786 = vunpack.c.l.b16 %v74
    %v787 = vunpack.c.h.b16 %v74
    %v788 = vunpack.c.l.b16 %v75
    %v789 = vunpack.c.h.b16 %v75
    %v790 = vunpack.c.l.b16 %v76
    %v791 = vunpack.c.h.b16 %v76
    %v792 = vunpack.c.l.b16 %v77
    %v793 = vunpack.c.h.b16 %v77
    %v794 = vunpack.c.l.b16 %v78
    %v795 = vunpack.c.h.b16 %v78
    %v796 = vunpack.c.l.b16 %v79
    %v797 = vunpack.c.h.b16 %v79
    %v798 = vunpack.c.l.b16 %v80
    %v799 = vunpack.c.h.b16 %v80
    %v800 = vunpack.c.l.b16 %v81
    %v801 = vunpack.c.h.b16 %v81
    %v802 = vunpack.c.l.b16 %v82
    %v803 = vunpack.c.h.b16 %v82
    %v804 = vunpack.c.l.b16 %v83
    %v805 = vunpack.c.h.b16 %v83
    %v806 = vunpack.c.l.b16 %v84
    %v807 = vunpack.c.h.b16 %v84
    %v808 = vunpack.c.l.b16 %v85
    %v809 = vunpack.c.h.b16 %v85
    %v810 = vunpack.c.l.b16 %v86
    %v811 = vunpack.c.h.b16 %v86
    %v812 = vunpack.c.l.b16 %v87
    %v813 = vunpack.c.h.b16 %v87
    %v814 = vunpack.c.l.b16 %v88
    %v815 = vunpack.c.h.b16 %v88
    %v816 = vunpack.c.l.b16 %v89
    %v817 = vunpack.c.h.b16 %v89
    %v818 = vunpack.c.l.b16 %v90
    %v819 = vunpack.c.h.b16 %v90
    %v820 = vunpack.c.l.b16 %v91
    %v821 = vunpack.c.h.b16 %v91
    %v822 = vunpack.c.l.b16 %v92
    %v823 = vunpack.c.h.b16 %v92
    %v824 = vunpack.c.l.b16 %v93
    %v825 = vunpack.c.h.b16 %v93
    %v826 = vunpack.c.l.b16 %v94
    %v827 = vunpack.c.h.b16 %v94
    %v828 = vunpack.c.l.b16 %v95
    %v829 = vunpack.c.h.b16 %v95
    %v830 = vunpack.c.l.b16 %v96
    %v831 = vunpack.c.h.b16 %v96
    %v832 = vunpack.c.l.b16 %v97
    %v833 = vunpack.c.h.b16 %v97
    %v834 = vunpack.c.l.b16 %v98
    %v835 = vunpack.c.h.b16 %v98
    %v836 = vunpack.c.l.b16 %v99
    %v837 = vunpack.c.h.b16 %v99
    %v838 = vunpack.c.l.b16 %v100
    %v839 = vunpack.c.h.b16 %v100
    %v840 = vunpack.c.l.b16 %v101
    %v841 = vunpack.c.h.b16 %v101
    %v842 = vunpack.c.l.b16 %v102
    %v843 = vunpack.c.h.b16 %v102
    %v844 = vunpack.c.l.b16 %v103
    %v845 = vunpack.c.h.b16 %v103
    %v846 = vunpack.c.l.b16 %v104
    %v847 = vunpack.c.h.b16 %v104
    %v848 = vunpack.c.l.b16 %v105
    %v849 = vunpack.c.h.b16 %v105
    %v850 = vunpack.c.l.b16 %v106
    %v851 = vunpack.c.h.b16 %v106
    %v852 = vunpack.c.l.b16 %v107
    %v853 = vunpack.c.h.b16 %v107
    %v854 = vunpack.c.l.b16 %v108
    %v855 = vunpack.c.h.b16 %v108
    %v856 = vunpack.c.l.b16 %v109
    %v857 = vunpack.c.h.b16 %v109
    %v858 = vunpack.c.l.b16 %v110
    %v859 = vunpack.c.h.b16 %v110
    %v860 = vunpack.c.l.b16 %v111
    %v861 = vunpack.c.h.b16 %v111
    %v862 = vunpack.c.l.b16 %v112
    %v863 = vunpack.c.h.b16 %v112
    %v864 = vunpack.c.l.b16 %v113
    %v865 = vunpack.c.h.b16 %v113
    %v866 = vunpack.c.l.b16 %v114
    %v867 = vunpack.c.h.b16 %v114
    %v868 = vunpack.c.l.b16 %v115
    %v869 = vunpack.c.h.b16 %v115
    %v870 = vunpack.c.l.b16 %v116
    %v871 = vunpack.c.h.b16 %v116
    %v872 = vunpack.c.l.b16 %v117
    %v873 = vunpack.c.h.b16 %v117
    %v874 = vunpack.c.l.b16 %v118
    %v875 = vunpack.c.h.b16 %v118
    %v876 = vunpack.c.l.b16 %v119
    %v877 = vunpack.c.h.b16 %v119
    %v878 = vunpack.c.l.b16 %v120
    %v879 = vunpack.c.h.b16 %v120
    %v880 = vunpack.c.l.b16 %v121
    %v881 = vunpack.c.h.b16 %v121
    %v882 = vunpack.c.l.b16 %v122
    %v883 = vunpack.c.h.b16 %v122
    %v884 = vunpack.c.l.b16 %v123
    %v885 = vunpack.c.h.b16 %v123
    %v886 = vunpack.c.l.b16 %v124
    %v887 = vunpack.c.h.b16 %v124
    %v888 = vunpack.c.l.b16 %v125
    %v889 = vunpack.c.h.b16 %v125
    %v890 = vunpack.c.l.b16 %v126
    %v891 = vunpack.c.h.b16 %v126
    %v892 = vunpack.c.l.b16 %v127
    %v893 = vunpack.c.h.b16 %v127
    %v894 = vunpack.c.l.b16 %v128
    %v895 = vunpack.c.h.b16 %v128
    %v896 = vunpack.c.l.b16 %v129
    %v897 = vunpack.c.h.b16 %v129
    %v898 = vunpack.c.l.b16 %v130
    %v899 = vunpack.c.h.b16 %v130
    %v900 = vunpack.c.l.b16 %v131
    %v901 = vunpack.c.h.b16 %v131
    %v902 = vunpack.c.l.b16 %v132
    %v903 = vunpack.c.h.b16 %v132
    %v904 = vunpack.c.l.b16 %v133
    %v905 = vunpack.c.h.b16 %v133
    %v906 = vunpack.c.l.b16 %v134
    %v907 = vunpack.c.h.b16 %v134
    %v908 = vunpack.c.l.b16 %v135
    %v909 = vunpack.c.h.b16 %v135
    %v910 = vunpack.c.l.b16 %v136
    %v911 = vunpack.c.h.b16 %v136
    %v912 = vunpack.c.l.b16 %v137
    %v913 = vunpack.c.h.b16 %v137
    %v914 = vunpack.c.l.b16 %v138
    %v915 = vunpack.c.h.b16 %v138
    %v916 = vunpack.c.l.b16 %v139
    %v917 = vunpack.c.h.b16 %v139
    %v918 = vunpack.c.l.b16 %v140
    %v919 = vunpack.c.h.b16 %v140
    %v920 = vunpack.c.l.b16 %v141
    %v921 = vunpack.c.h.b16 %v141
    %v922 = vunpack.c.l.b16 %v142
    %v923 = vunpack.c.h.b16 %v142
    %v924 = vunpack.c.l.b16 %v143
    %v925 = vunpack.c.h.b16 %v143
    %v926 = vunpack.c.l.b16 %v144
    %v927 = vunpack.c.h.b16 %v144
    %v928 = vunpack.c.l.b16 %v145
    %v929 = vunpack.c.h.b16 %v145
    %v930 = vunpack.c.l.b16 %v146
    %v931 = vunpack.c.h.b16 %v146
    %v932 = vunpack.c.l.b16 %v147
    %v933 = vunpack.c.h.b16 %v147
    %v934 = vunpack.c.l.b16 %v148
    %v935 = vunpack.c.h.b16 %v148
    %v936 = vunpack.c.l.b16 %v149
    %v937 = vunpack.c.h.b16 %v149
    %v938 = vunpack.c.l.b16 %v150
    %v939 = vunpack.c.h.b16 %v150
    %v940 = vunpack.c.l.b16 %v151
    %v941 = vunpack.c.h.b16 %v151
    %v942 = vunpack.c.l.b16 %v152
    %v943 = vunpack.c.h.b16 %v152
    %v944 = vunpack.c.l.b16 %v153
    %v945 = vunpack.c.h.b16 %v153
    %v946 = vunpack.c.l.b16 %v154
    %v947 = vunpack.c.h.b16 %v154
    %v948 = vunpack.c.l.b16 %v155
    %v949 = vunpack.c.h.b16 %v155
    %v950 = vunpack.c.l.b16 %v156
    %v951 = vunpack.c.h.b16 %v156
    %v952 = vunpack.c.l.b16 %v157
    %v953 = vunpack.c.h.b16 %v157
    %v954 = vunpack.c.l.b16 %v158
    %v955 = vunpack.c.h.b16 %v158
    %v956 = vunpack.c.l.b16 %v159
    %v957 = vunpack.c.h.b16 %v159
    %v958 = vunpack.c.l.b16 %v160
    %v959 = vunpack.c.h.b16 %v160
    %v960 = vunpack.c.l.b16 %v161
    %v961 = vunpack.c.h.b16 %v161
    %v962 = vunpack.c.l.b16 %v162
    %v963 = vunpack.c.h.b16 %v162
    %v964 = vunpack.c.l.b16 %v163
    %v965 = vunpack.c.h.b16 %v163
    %v966 = vunpack.c.l.b16 %v164
    %v967 = vunpack.c.h.b16 %v164
    %v968 = vunpack.c.l.b16 %v165
    %v969 = vunpack.c.h.b16 %v165
    %v970 = vunpack.c.l.b16 %v166
    %v971 = vunpack.c.h.b16 %v166
    %v972 = vunpack.c.l.b16 %v167
    %v973 = vunpack.c.h.b16 %v167
    %v974 = vunpack.c.l.b16 %v168
    %v975 = vunpack.c.h.b16 %v168
    %v976 = vunpack.c.l.b16 %v169
    %v977 = vunpack.c.h.b16 %v169
    %v978 = vunpack.c.l.b16 %v170
    %v979 = vunpack.c.h.b16 %v170
    %v980 = vunpack.c.l.b16 %v171
    %v981 = vunpack.c.h.b16 %v171
    %v982 = vunpack.c.l.b16 %v172
    %v983 = vunpack.c.h.b16 %v172
    %v984 = vunpack.c.l.b16 %v173
    %v985 = vunpack.c.h.b16 %v173
    %v986 = vunpack.c.l.b16 %v174
    %v987 = vunpack.c.h.b16 %v174
    %v988 = vunpack.c.l.b16 %v175
    %v989 = vunpack.c.h.b16 %v175
    %v990 = vunpack.c.l.b16 %v176
    %v991 = vunpack.c.h.b16 %v176
    %v992 = vunpack.c.l.b16 %v177
    %v993 = vunpack.c.h.b16 %v177
    %v994 = vunpack.c.l.b16 %v178
    %v995 = vunpack.c.h.b16 %v178
    %v996 = vunpack.c.l.b16 %v179
    %v997 = vunpack.c.h.b16 %v179
    %v998 = vunpack.c.l.b16 %v180
    %v999 = vunpack.c.h.b16 %v180
    %v1000 = vunpack.c.l.b16 %v181
    %v1001 = vunpack.c.h.b16 %v181
    %v1002 = vunpack.c.l.b16 %v182
    %v1003 = vunpack.c.h.b16 %v182
    %v1004 = vunpack.c.l.b16 %v183
    %v1005 = vunpack.c.h.b16 %v183
    %v1006 = vunpack.c.l.b16 %v184
    %v1007 = vunpack.c.h.b16 %v184
    %v1008 = vunpack.c.l.b16 %v185
    %v1009 = vunpack.c.h.b16 %v185
    %v1010 = vunpack.c.l.b16 %v186
    %v1011 = vunpack.c.h.b16 %v186
    %v1012 = vunpack.c.l.b16 %v187
    %v1013 = vunpack.c.h.b16 %v187
    %v1014 = vunpack.c.l.b16 %v188
    %v1015 = vunpack.c.h.b16 %v188
    %v1016 = vunpack.c.l.b16 %v189
    %v1017 = vunpack.c.h.b16 %v189
    %v1018 = vunpack.c.l.b16 %v190
    %v1019 = vunpack.c.h.b16 %v190
    %v1020 = vunpack.c.l.b16 %v191
    %v1021 = vunpack.c.h.b16 %v191
    %v1022 = vunpack.c.l.b16 %v192
    %v1023 = vunpack.c.h.b16 %v192
    %v1024 = vunpack.c.l.b16 %v193
    %v1025 = vunpack.c.h.b16 %v193
    %v1026 = vunpack.c.l.b16 %v194
    %v1027 = vunpack.c.h.b16 %v194
    %v1028 = vunpack.c.l.b16 %v195
    %v1029 = vunpack.c.h.b16 %v195
    %v1030 = vunpack.c.l.b16 %v196
    %v1031 = vunpack.c.h.b16 %v196
    %v1032 = vunpack.c.l.b16 %v197
    %v1033 = vunpack.c.h.b16 %v197
    %v1034 = vunpack.c.l.b16 %v198
    %v1035 = vunpack.c.h.b16 %v198
    %v1036 = vunpack.c.l.b16 %v199
    %v1037 = vunpack.c.h.b16 %v199
    %v1038 = vunpack.c.l.b16 %v200
    %v1039 = vunpack.c.h.b16 %v200
    %v1040 = vunpack.c.l.b16 %v201
    %v1041 = vunpack.c.h.b16 %v201
    %v1042 = vunpack.c.l.b16 %v202
    %v1043 = vunpack.c.h.b16 %v202
    %v1044 = vunpack.c.l.b16 %v203
    %v1045 = vunpack.c.h.b16 %v203
    %v1046 = vunpack.c.l.b16 %v204
    %v1047 = vunpack.c.h.b16 %v204
    %v1048 = vunpack.c.l.b16 %v205
    %v1049 = vunpack.c.h.b16 %v205
    %v1050 = vunpack.c.l.b16 %v206
    %v1051 = vunpack.c.h.b16 %v206
    %v1052 = vunpack.c.l.b16 %v207
    %v1053 = vunpack.c.h.b16 %v207
    %v1054 = vunpack.c.l.b16 %v208
    %v1055 = vunpack.c.h.b16 %v208
    %v1056 = vunpack.c.l.b16 %v209
    %v1057 = vunpack.c.h.b16 %v209
    %v1058 = vunpack.c.l.b16 %v210
    %v1059 = vunpack.c.h.b16 %v210
    %v1060 = vunpack.c.l.b16 %v211
    %v1061 = vunpack.c.h.b16 %v211
    %v1062 = vunpack.c.l.b16 %v212
    %v1063 = vunpack.c.h.b16 %v212
    %v1064 = vunpack.c.l.b16 %v213
    %v1065 = vunpack.c.h.b16 %v213
    %v1066 = vunpack.c.l.b16 %v214
    %v1067 = vunpack.c.h.b16 %v214
    %v1068 = vunpack.c.l.b16 %v215
    %v1069 = vunpack.c.h.b16 %v215
    %v1070 = vunpack.c.l.b16 %v216
    %v1071 = vunpack.c.h.b16 %v216
    %v1072 = vunpack.c.l.b16 %v217
    %v1073 = vunpack.c.h.b16 %v217
    %v1074 = vunpack.c.l.b16 %v218
    %v1075 = vunpack.c.h.b16 %v218
    %v1076 = vunpack.c.l.b16 %v219
    %v1077 = vunpack.c.h.b16 %v219
    %v1078 = vunpack.c.l.b16 %v220
    %v1079 = vunpack.c.h.b16 %v220
    %v1080 = vunpack.c.l.b16 %v221
    %v1081 = vunpack.c.h.b16 %v221
    %v1082 = vunpack.c.l.b16 %v222
    %v1083 = vunpack.c.h.b16 %v222
    %v1084 = vunpack.c.l.b16 %v223
    %v1085 = vunpack.c.h.b16 %v223
    %v1086 = vunpack.c.l.b16 %v224
    %v1087 = vunpack.c.h.b16 %v224
    %v1088 = vunpack.c.l.b16 %v225
    %v1089 = vunpack.c.h.b16 %v225
    %v1090 = vunpack.c.l.b16 %v226
    %v1091 = vunpack.c.h.b16 %v226
    %v1092 = vunpack.c.l.b16 %v227
    %v1093 = vunpack.c.h.b16 %v227
    %v1094 = vunpack.c.l.b16 %v228
    %v1095 = vunpack.c.h.b16 %v228
    %v1096 = vunpack.c.l.b16 %v229
    %v1097 = vunpack.c.h.b16 %v229
    %v1098 = vunpack.c.l.b16 %v230
    %v1099 = vunpack.c.h.b16 %v230
    %v1100 = vunpack.c.l.b16 %v231
    %v1101 = vunpack.c.h.b16 %v231
    %v1102 = vunpack.c.l.b16 %v232
    %v1103 = vunpack.c.h.b16 %v232
    %v1104 = vunpack.c.l.b16 %v233
    %v1105 = vunpack.c.h.b16 %v233
    %v1106 = vunpack.c.l.b16 %v234
    %v1107 = vunpack.c.h.b16 %v234
    %v1108 = vunpack.c.l.b16 %v235
    %v1109 = vunpack.c.h.b16 %v235
    %v1110 = vunpack.c.l.b16 %v236
    %v1111 = vunpack.c.h.b16 %v236
    %v1112 = vunpack.c.l.b16 %v237
    %v1113 = vunpack.c.h.b16 %v237
    %v1114 = vunpack.c.l.b16 %v238
    %v1115 = vunpack.c.h.b16 %v238
    %v1116 = vunpack.c.l.b16 %v239
    %v1117 = vunpack.c.h.b16 %v239
    %v1118 = vunpack.c.l.b16 %v240
    %v1119 = vunpack.c.h.b16 %v240
    %v1120 = vunpack.c.l.b16 %v241
    %v1121 = vunpack.c.h.b16 %v241
    %v1122 = vunpack.c.l.b16 %v242
    %v1123 = vunpack.c.h.b16 %v242
    %v1124 = vunpack.c.l.b16 %v243
    %v1125 = vunpack.c.h.b16 %v243
    %v1126 = vunpack.c.l.b16 %v244
    %v1127 = vunpack.c.h.b16 %v244
    %v1128 = vunpack.c.l.b16 %v245
    %v1129 = vunpack.c.h.b16 %v245
    %v1130 = vunpack.c.l.b16 %v246
    %v1131 = vunpack.c.h.b16 %v246
    %v1132 = vunpack.c.l.b16 %v247
    %v1133 = vunpack.c.h.b16 %v247
    %v1134 = vunpack.c.l.b16 %v248
    %v1135 = vunpack.c.h.b16 %v248
    %v1136 = vunpack.c.l.b16 %v249
    %v1137 = vunpack.c.h.b16 %v249
    %v1138 = vunpack.c.l.b16 %v250
    %v1139 = vunpack.c.h.b16 %v250
    %v1140 = vunpack.c.l.b16 %v251
    %v1141 = vunpack.c.h.b16 %v251
    %v1142 = vunpack.c.l.b16 %v252
    %v1143 = vunpack.c.h.b16 %v252
    %v1144 = vunpack.c.l.b16 %v253
    %v1145 = vunpack.c.h.b16 %v253
    %v1146 = vunpack.c.l.b16 %v254
    %v1147 = vunpack.c.h.b16 %v254
    %v1148 = vunpack.c.l.b16 %v255
    %v1149 = vunpack.c.h.b16 %v255
    %v1150 = vunpack.c.l.b16 %v256
    %v1151 = vunpack.c.h.b16 %v256
    %v1152 = vunpack.c.l.b16 %v257
    %v1153 = vunpack.c.h.b16 %v257
    %v1154 = vunpack.c.l.b16 %v258
    %v1155 = vunpack.c.h.b16 %v258
    %v1156 = vunpack.c.l.b16 %v259
    %v1157 = vunpack.c.h.b16 %v259
    %v1158 = vunpack.c.l.b16 %v260
    %v1159 = vunpack.c.h.b16 %v260
    %v1160 = vunpack.c.l.b16 %v261
    %v1161 = vunpack.c.h.b16 %v261
    %v1162 = vunpack.c.l.b16 %v262
    %v1163 = vunpack.c.h.b16 %v262
    %v1164 = vunpack.c.l.b16 %v263
    %v1165 = vunpack.c.h.b16 %v263
    %v1166 = vunpack.c.l.b16 %v264
    %v1167 = vunpack.c.h.b16 %v264
    %v1168 = vunpack.c.l.b16 %v265
    %v1169 = vunpack.c.h.b16 %v265
    %v1170 = vunpack.c.l.b16 %v266
    %v1171 = vunpack.c.h.b16 %v266
    %v1172 = vunpack.c.l.b16 %v267
    %v1173 = vunpack.c.h.b16 %v267
    %v1174 = vunpack.c.l.b16 %v268
    %v1175 = vunpack.c.h.b16 %v268
    %v1176 = vunpack.c.l.b16 %v269
    %v1177 = vunpack.c.h.b16 %v269
    %v1178 = vunpack.c.l.b16 %v270
    %v1179 = vunpack.c.h.b16 %v270
    %v1180 = vunpack.c.l.b16 %v271
    %v1181 = vunpack.c.h.b16 %v271
    %v1182 = vunpack.c.l.b16 %v272
    %v1183 = vunpack.c.h.b16 %v272
    %v1184 = vunpack.c.l.b16 %v273
    %v1185 = vunpack.c.h.b16 %v273
    %v1186 = vunpack.c.l.b16 %v274
    %v1187 = vunpack.c.h.b16 %v274
    %v1188 = vunpack.c.l.b16 %v275
    %v1189 = vunpack.c.h.b16 %v275
    %v1190 = vunpack.c.l.b16 %v276
    %v1191 = vunpack.c.h.b16 %v276
    %v1192 = vunpack.c.l.b16 %v277
    %v1193 = vunpack.c.h.b16 %v277
    %v1194 = vunpack.c.l.b16 %v278
    %v1195 = vunpack.c.h.b16 %v278
    %v1196 = vunpack.c.l.b16 %v279
    %v1197 = vunpack.c.h.b16 %v279
    %v1198 = vunpack.c.l.b16 %v280
    %v1199 = vunpack.c.h.b16 %v280
    %v1200 = vunpack.c.l.b16 %v281
    %v1201 = vunpack.c.h.b16 %v281
    %v1202 = vunpack.c.l.b16 %v282
    %v1203 = vunpack.c.h.b16 %v282
    %v1204 = vunpack.c.l.b16 %v283
    %v1205 = vunpack.c.h.b16 %v283
    %v1206 = vunpack.c.l.b16 %v284
    %v1207 = vunpack.c.h.b16 %v284
    %v1208 = vunpack.c.l.b16 %v285
    %v1209 = vunpack.c.h.b16 %v285
    %v1210 = vunpack.c.l.b16 %v286
    %v1211 = vunpack.c.h.b16 %v286
    %v1212 = vunpack.c.l.b16 %v287
    %v1213 = vunpack.c.h.b16 %v287
    %v1214 = vunpack.c.l.b16 %v288
    %v1215 = vunpack.c.h.b16 %v288
    %v1216 = vunpack.c.l.b16 %v289
    %v1217 = vunpack.c.h.b16 %v289
    %v1218 = vunpack.c.l.b16 %v290
    %v1219 = vunpack.c.h.b16 %v290
    %v1220 = vunpack.c.l.b16 %v291
    %v1221 = vunpack.c.h.b16 %v291
    %v1222 = vunpack.c.l.b16 %v292
    %v1223 = vunpack.c.h.b16 %v292
    %v1224 = vunpack.c.l.b16 %v293
    %v1225 = vunpack.c.h.b16 %v293
    %v1226 = vunpack.c.l.b16 %v294
    %v1227 = vunpack.c.h.b16 %v294
    %v1228 = vunpack.c.l.b16 %v295
    %v1229 = vunpack.c.h.b16 %v295
    %v1230 = vunpack.c.l.b16 %v296
    %v1231 = vunpack.c.h.b16 %v296
    %v1232 = vunpack.c.l.b16 %v297
    %v1233 = vunpack.c.h.b16 %v297
    %v1234 = vpack.c.b16 %v754, %v722
    %v1235 = vpack.c.b16 %v755, %v723
    %v1236 = vpack.c.b16 %v756, %v724
    %v1237 = vpack.c.b16 %v757, %v725
    %v1238 = vpack.c.b16 %v758, %v726
    %v1239 = vpack.c.b16 %v759, %v727
    %v1240 = vpack.c.b16 %v760, %v728
    %v1241 = vpack.c.b16 %v761, %v729
    %v1242 = vpack.c.b16 %v762, %v730
    %v1243 = vpack.c.b16 %v763, %v731
    %v1244 = vpack.c.b16 %v764, %v732
    %v1245 = vpack.c.b16 %v765, %v733
    %v1246 = vpack.c.b16 %v766, %v734
    %v1247 = vpack.c.b16 %v767, %v735
    %v1248 = vpack.c.b16 %v768, %v736
    %v1249 = vpack.c.b16 %v769, %v737
    %v1250 = vpack.c.b16 %v770, %v738
    %v1251 = vpack.c.b16 %v771, %v739
    %v1252 = vpack.c.b16 %v772, %v740
    %v1253 = vpack.c.b16 %v773, %v741
    %v1254 = vpack.c.b16 %v774, %v742
    %v1255 = vpack.c.b16 %v775, %v743
    %v1256 = vpack.c.b16 %v776, %v744
    %v1257 = vpack.c.b16 %v777, %v745
    %v1258 = vpack.c.b16 %v778, %v746
    %v1259 = vpack.c.b16 %v779, %v747
    %v1260 = vpack.c.b16 %v780, %v748
    %v1261 = vpack.c.b16 %v781, %v749
    %v1262 = vpack.c.b16 %v782, %v750
    %v1263 = vpack.c.b16 %v783, %v751
    %v1264 = vpack.c.b16 %v784, %v752
    %v1265 = vpack.c.b16 %v785, %v753
    %v1266 = vpack.c.b16 %v818, %v786
    %v1267 = vpack.c.b16 %v819, %v787
    %v1268 = vpack.c.b16 %v820, %v788
    %v1269 = vpack.c.b16 %v821, %v789
    %v1270 = vpack.c.b16 %v822, %v790
    %v1271 = vpack.c.b16 %v823, %v791
    %v1272 = vpack.c.b16 %v824, %v792
    %v1273 = vpack.c.b16 %v825, %v793
    %v1274 = vpack.c.b16 %v826, %v794
    %v1275 = vpack.c.b16 %v827, %v795
    %v1276 = vpack.c.b16 %v828, %v796
    %v1277 = vpack.c.b16 %v829, %v797
    %v1278 = vpack.c.b16 %v830, %v798
    %v1279 = vpack.c.b16 %v831, %v799
    %v1280 = vpack.c.b16 %v832, %v800
    %v1281 = vpack.c.b16 %v833, %v801
    %v1282 = vpack.c.b16 %v834, %v802
    %v1283 = vpack.c.b16 %v835, %v803
    %v1284 = vpack.c.b16 %v836, %v804
    %v1285 = vpack.c.b16 %v837, %v805
    %v1286 = vpack.c.b16 %v838, %v806
    %v1287 = vpack.c.b16 %v839, %v807
    %v1288 = vpack.c.b16 %v840, %v808
    %v1289 = vpack.c.b16 %v841, %v809
    %v1290 = vpack.c.b16 %v842, %v810
    %v1291 = vpack.c.b16 %v843, %v811
    %v1292 = vpack.c.b16 %v844, %v812
    %v1293 = vpack.c.b16 %v845, %v813
    %v1294 = vpack.c.b16 %v846, %v814
    %v1295 = vpack.c.b16 %v847, %v815
    %v1296 = vpack.c.b16 %v848, %v816
    %v1297 = vpack.c.b16 %v849, %v817
    %v1298 = vpack.c.b16 %v882, %v850
    %v1299 = vpack.c.b16 %v883, %v851
    %v1300 = vpack.c.b16 %v884, %v852
    %v1301 = vpack.c.b16 %v885, %v853
    %v1302 = vpack.c.b16 %v886, %v854
    %v1303 = vpack.c.b16 %v887, %v855
    %v1304 = vpack.c.b16 %v888, %v856
    %v1305 = vpack.c.b16 %v889, %v857
    %v1306 = vpack.c.b16 %v890, %v858
    %v1307 = vpack.c.b16 %v891, %v859
    %v1308 = vpack.c.b16 %v892, %v860
    %v1309 = vpack.c.b16 %v893, %v861
    %v1310 = vpack.c.b16 %v894, %v862
    %v1311 = vpack.c.b16 %v895, %v863
    %v1312 = vpack.c.b16 %v896, %v864
    %v1313 = vpack.c.b16 %v897, %v865
    %v1314 = vpack.c.b16 %v898, %v866
    %v1315 = vpack.c.b16 %v899, %v867
    %v1316 = vpack.c.b16 %v900, %v868
    %v1317 = vpack.c.b16 %v901, %v869
    %v1318 = vpack.c.b16 %v902, %v870
    %v1319 = vpack.c.b16 %v903, %v871
    %v1320 = vpack.c.b16 %v904, %v872
    %v1321 = vpack.c.b16 %v905, %v873
    %v1322 = vpack.c.b16 %v906, %v874
    %v1323 = vpack.c.b16 %v907, %v875
    %v1324 = vpack.c.b16 %v908, %v876
    %v1325 = vpack.c.b16 %v909, %v877
    %v1326 = vpack.c.b16 %v910, %v878
    %v1327 = vpack.c.b16 %v911, %v879
    %v1328 = vpack.c.b16 %v912, %v880
    %v1329 = vpack.c.b16 %v913, %v881
    %v1330 = vpack.c.b16 %v946, %v914
    %v1331 = vpack.c.b16 %v947, %v915
    %v1332 = vpack.c.b16 %v948, %v916
    %v1333 = vpack.c.b16 %v949, %v917
    %v1334 = vpack.c.b16 %v950, %v918
    %v1335 = vpack.c.b16 %v951, %v919
    %v1336 = vpack.c.b16 %v952, %v920
    %v1337 = vpack.c.b16 %v953, %v921
    %v1338 = vpack.c.b16 %v954, %v922
    %v1339 = vpack.c.b16 %v955, %v923
    %v1340 = vpack.c.b16 %v956, %v924
    %v1341 = vpack.c.b16 %v957, %v925
    %v1342 = vpack.c.b16 %v958, %v926
    %v1343 = vpack.c.b16 %v959, %v927
    %v1344 = vpack.c.b16 %v960, %v928
    %v1345 = vpack.c.b16 %v961, %v929
    %v1346 = vpack.c.b16 %v962, %v930
    %v1347 = vpack.c.b16 %v963, %v931
    %v1348 = vpack.c.b16 %v964, %v932
    %v1349 = vpack.c.b16 %v965, %v933
    %v1350 = vpack.c.b16 %v966, %v934
    %v1351 = vpack.c.b16 %v967, %v935
    %v1352 = vpack.c.b16 %v968, %v936
    %v1353 = vpack.c.b16 %v969, %v937
    %v1354 = vpack.c.b16 %v970, %v938
    %v1355 = vpack.c.b16 %v971, %v939
    %v1356 = vpack.c.b16 %v972, %v940
    %v1357 = vpack.c.b16 %v973, %v941
    %v1358 = vpack.c.b16 %v974, %v942
    %v1359 = vpack.c.b16 %v975, %v943
    %v1360 = vpack.c.b16 %v976, %v944
    %v1361 = vpack.c.b16 %v977, %v945
    %v1362 = vpack.c.b16 %v1010, %v978
    %v1363 = vpack.c.b16 %v1011, %v979
    %v1364 = vpack.c.b16 %v1012, %v980
    %v1365 = vpack.c.b16 %v1013, %v981
    %v1366 = vpack.c.b16 %v1014, %v982
    %v1367 = vpack.c.b16 %v1015, %v983
    %v1368 = vpack.c.b16 %v1016, %v984
    %v1369 = vpack.c.b16 %v1017, %v985
    %v1370 = vpack.c.b16 %v1018, %v986
    %v1371 = vpack.c.b16 %v1019, %v987
    %v1372 = vpack.c.b16 %v1020, %v988
    %v1373 = vpack.c.b16 %v1021, %v989
    %v1374 = vpack.c.b16 %v1022, %v990
    %v1375 = vpack.c.b16 %v1023, %v991
    %v1376 = vpack.c.b16 %v1024, %v992
    %v1377 = vpack.c.b16 %v1025, %v993
    %v1378 = vpack.c.b16 %v1026, %v994
    %v1379 = vpack.c.b16 %v1027, %v995
    %v1380 = vpack.c.b16 %v1028, %v996
    %v1381 = vpack.c.b16 %v1029, %v997
    %v1382 = vpack.c.b16 %v1030, %v998
    %v1383 = vpack.c.b16 %v1031, %v999
    %v1384 = vpack.c.b16 %v1032, %v1000
    %v1385 = vpack.c.b16 %v1033, %v1001
    %v1386 = vpack.c.b16 %v1034, %v1002
    %v1387 = vpack.c.b16 %v1035, %v1003
    %v1388 = vpack.c.b16 %v1036, %v1004
    %v1389 = vpack.c.b16 %v1037, %v1005
    %v1390 = vpack.c.b16 %v1038, %v1006
    %v1391 = vpack.c.b16 %v1039, %v1007
    %v1392 = vpack.c.b16 %v1040, %v1008
    %v1393 = vpack.c.b16 %v1041, %v1009
    %v1394 = vpack.c.b16 %v1074, %v1042
    %v1395 = vpack.c.b16 %v1075, %v1043
    %v1396 = vpack.c.b16 %v1076, %v1044
    %v1397 = vpack.c.b16 %v1077, %v1045
    %v1398 = vpack.c.b16 %v1078, %v1046
    %v1399 = vpack.c.b16 %v1079, %v1047
    %v1400 = vpack.c.b16 %v1080, %v1048
    %v1401 = vpack.c.b16 %v1081, %v1049
    %v1402 = vpack.c.b16 %v1082, %v1050
    %v1403 = vpack.c.b16 %v1083, %v1051
    %v1404 = vpack.c.b16 %v1084, %v1052
    %v1405 = vpack.c.b16 %v1085, %v1053
    %v1406 = vpack.c.b16 %v1086, %v1054
    %v1407 = vpack.c.b16 %v1087, %v1055
    %v1408 = vpack.c.b16 %v1088, %v1056
    %v1409 = vpack.c.b16 %v1089, %v1057
    %v1410 = vpack.c.b16 %v1090, %v1058
    %v1411 = vpack.c.b16 %v1091, %v1059
    %v1412 = vpack.c.b16 %v1092, %v1060
    %v1413 = vpack.c.b16 %v1093, %v1061
    %v1414 = vpack.c.b16 %v1094, %v1062
    %v1415 = vpack.c.b16 %v1095, %v1063
    %v1416 = vpack.c.b16 %v1096, %v1064
    %v1417 = vpack.c.b16 %v1097, %v1065
    %v1418 = vpack.c.b16 %v1098, %v1066
    %v1419 = vpack.c.b16 %v1099, %v1067
    %v1420 = vpack.c.b16 %v1100, %v1068
    %v1421 = vpack.c.b16 %v1101, %v1069
    %v1422 = vpack.c.b16 %v1102, %v1070
    %v1423 = vpack.c.b16 %v1103, %v1071
    %v1424 = vpack.c.b16 %v1104, %v1072
    %v1425 = vpack.c.b16 %v1105, %v1073
    %v1426 = vpack.c.b16 %v1138, %v1106
    %v1427 = vpack.c.b16 %v1139, %v1107
    %v1428 = vpack.c.b16 %v1140, %v1108
    %v1429 = vpack.c.b16 %v1141, %v1109
    %v1430 = vpack.c.b16 %v1142, %v1110
    %v1431 = vpack.c.b16 %v1143, %v1111
    %v1432 = vpack.c.b16 %v1144, %v1112
    %v1433 = vpack.c.b16 %v1145, %v1113
    %v1434 = vpack.c.b16 %v1146, %v1114
    %v1435 = vpack.c.b16 %v1147, %v1115
    %v1436 = vpack.c.b16 %v1148, %v1116
    %v1437 = vpack.c.b16 %v1149, %v1117
    %v1438 = vpack.c.b16 %v1150, %v1118
    %v1439 = vpack.c.b16 %v1151, %v1119
    %v1440 = vpack.c.b16 %v1152, %v1120
    %v1441 = vpack.c.b16 %v1153, %v1121
    %v1442 = vpack.c.b16 %v1154, %v1122
    %v1443 = vpack.c.b16 %v1155, %v1123
    %v1444 = vpack.c.b16 %v1156, %v1124
    %v1445 = vpack.c.b16 %v1157, %v1125
    %v1446 = vpack.c.b16 %v1158, %v1126
    %v1447 = vpack.c.b16 %v1159, %v1127
    %v1448 = vpack.c.b16 %v1160, %v1128
    %v1449 = vpack.c.b16 %v1161, %v1129
    %v1450 = vpack.c.b16 %v1162, %v1130
    %v1451 = vpack.c.b16 %v1163, %v1131
    %v1452 = vpack.c.b16 %v1164, %v1132
    %v1453 = vpack.c.b16 %v1165, %v1133
    %v1454 = vpack.c.b16 %v1166, %v1134
    %v1455 = vpack.c.b16 %v1167, %v1135
    %v1456 = vpack.c.b16 %v1168, %v1136
    %v1457 = vpack.c.b16 %v1169, %v1137
    %v1458 = vpack.c.b16 %v1202, %v1170
    %v1459 = vpack.c.b16 %v1203, %v1171
    %v1460 = vpack.c.b16 %v1204, %v1172
    %v1461 = vpack.c.b16 %v1205, %v1173
    %v1462 = vpack.c.b16 %v1206, %v1174
    %v1463 = vpack.c.b16 %v1207, %v1175
    %v1464 = vpack.c.b16 %v1208, %v1176
    %v1465 = vpack.c.b16 %v1209, %v1177
    %v1466 = vpack.c.b16 %v1210, %v1178
    %v1467 = vpack.c.b16 %v1211, %v1179
    %v1468 = vpack.c.b16 %v1212, %v1180
    %v1469 = vpack.c.b16 %v1213, %v1181
    %v1470 = vpack.c.b16 %v1214, %v1182
    %v1471 = vpack.c.b16 %v1215, %v1183
    %v1472 = vpack.c.b16 %v1216, %v1184
    %v1473 = vpack.c.b16 %v1217, %v1185
    %v1474 = vpack.c.b16 %v1218, %v1186
    %v1475 = vpack.c.b16 %v1219, %v1187
    %v1476 = vpack.c.b16 %v1220, %v1188
    %v1477 = vpack.c.b16 %v1221, %v1189
    %v1478 = vpack.c.b16 %v1222, %v1190
    %v1479 = vpack.c.b16 %v1223, %v1191
    %v1480 = vpack.c.b16 %v1224, %v1192
    %v1481 = vpack.c.b16 %v1225, %v1193
    %v1482 = vpack.c.b16 %v1226, %v1194
    %v1483 = vpack.c.b16 %v1227, %v1195
    %v1484 = vpack.c.b16 %v1228, %v1196
    %v1485 = vpack.c.b16 %v1229, %v1197
    %v1486 = vpack.c.b16 %v1230, %v1198
    %v1487 = vpack.c.b16 %v1231, %v1199
    %v1488 = vpack.c.b16 %v1232, %v1200
    %v1489 = vpack.c.b16 %v1233, %v1201
    %1746 = vmatprep.subr.bf16.mxu0 %v1459
    %1747 = vmatpush1.bf16.msra.mxu0 %v1458
    %1748 = vmatprep.subr.bf16.mxu0 %v1427
    %1749 = vmatpush1.bf16.msra.mxu0 %v1426
    %1750 = vmatprep.subr.bf16.mxu0 %v1395
    %1751 = vmatpush1.bf16.msra.mxu0 %v1394
    %1752 = vmatprep.subr.bf16.mxu0 %v1363
    %1753 = vmatpush1.bf16.msra.mxu0 %v1362
    %1754 = vmatprep.subr.bf16.mxu0 %v1331
    %1755 = vmatpush1.bf16.msra.mxu0 %v1330
    %1756 = vmatprep.subr.bf16.mxu0 %v1299
    %1757 = vmatpush1.bf16.msra.mxu0 %v1298
    %1758 = vmatprep.subr.bf16.mxu0 %v1267
    %1759 = vmatpush1.bf16.msra.mxu0 %v1266
    %1760 = vmatprep.subr.bf16.mxu0 %v1235
    %1761 = vmatpush1.bf16.msra.mxu0 %v1234
    %1762 = vmatprep.subr.bf16.mxu0 0
    %1763 = vmatpush2.bf16.msra.mxu0 0
    %1764 = vmatprep.subr.bf16.mxu0 0
    %1765 = vmatpush2.bf16.msra.mxu0 0
    %1766 = vmatprep.subr.bf16.mxu0 0
    %1767 = vmatpush2.bf16.msra.mxu0 0
    %1768 = vmatprep.subr.bf16.mxu0 0
    %1769 = vmatpush2.bf16.msra.mxu0 0
    %1770 = vmatprep.subr.bf16.mxu0 0
    %1771 = vmatpush2.bf16.msra.mxu0 0
    %1772 = vmatprep.subr.bf16.mxu0 0
    %1773 = vmatpush2.bf16.msra.mxu0 0
    %1774 = vmatprep.subr.bf16.mxu0 0
    %1775 = vmatpush2.bf16.msra.mxu0 0
    %1776 = vmatprep.subr.bf16.mxu0 0
    %1777 = vmatpush2.bf16.msra.mxu0 0
    %1778 = vmatprep.mubr.bf16.mxu0 0
    %1779 = vmatmul.mubr.bf16.gmra.mxu0 %v41
    %v1780 = vpop.f32.mrf.mxu0
    %v1781 = vadd.f32 %v309, %v1780
    %v1782 = vpop.f32.mrf.mxu0
    %v1783 = vadd.f32 %v313, %v1782
    %v1784 = vpop.f32.mrf.mxu0
    %v1785 = vpop.f32.mrf.mxu0
    %1786 = vdwg.mxu0
    %1787 = vmatprep.subr.bf16.mxu0 %v1461
    %1788 = vmatpush1.bf16.msra.mxu0 %v1460
    %1789 = vmatprep.subr.bf16.mxu0 %v1429
    %1790 = vmatpush1.bf16.msra.mxu0 %v1428
    %1791 = vmatprep.subr.bf16.mxu0 %v1397
    %1792 = vmatpush1.bf16.msra.mxu0 %v1396
    %1793 = vmatprep.subr.bf16.mxu0 %v1365
    %1794 = vmatpush1.bf16.msra.mxu0 %v1364
    %1795 = vmatprep.subr.bf16.mxu0 %v1333
    %1796 = vmatpush1.bf16.msra.mxu0 %v1332
    %1797 = vmatprep.subr.bf16.mxu0 %v1301
    %1798 = vmatpush1.bf16.msra.mxu0 %v1300
    %1799 = vmatprep.subr.bf16.mxu0 %v1269
    %1800 = vmatpush1.bf16.msra.mxu0 %v1268
    %1801 = vmatprep.subr.bf16.mxu0 %v1237
    %1802 = vmatpush1.bf16.msra.mxu0 %v1236
    %1803 = vmatprep.subr.bf16.mxu0 0
    %1804 = vmatpush2.bf16.msra.mxu0 0
    %1805 = vmatprep.subr.bf16.mxu0 0
    %1806 = vmatpush2.bf16.msra.mxu0 0
    %1807 = vmatprep.subr.bf16.mxu0 0
    %1808 = vmatpush2.bf16.msra.mxu0 0
    %1809 = vmatprep.subr.bf16.mxu0 0
    %1810 = vmatpush2.bf16.msra.mxu0 0
    %1811 = vmatprep.subr.bf16.mxu0 0
    %1812 = vmatpush2.bf16.msra.mxu0 0
    %1813 = vmatprep.subr.bf16.mxu0 0
    %1814 = vmatpush2.bf16.msra.mxu0 0
    %1815 = vmatprep.subr.bf16.mxu0 0
    %1816 = vmatpush2.bf16.msra.mxu0 0
    %1817 = vmatprep.subr.bf16.mxu0 0
    %1818 = vmatpush2.bf16.msra.mxu0 0
    %1819 = vmatprep.mubr.bf16.mxu0 0
    %1820 = vmatmul.mubr.bf16.gmra.mxu0 %v41
    %v1821 = vpop.f32.mrf.mxu0
    %v1822 = vadd.f32 %v317, %v1821
    %v1823 = vpop.f32.mrf.mxu0
    %v1824 = vadd.f32 %v321, %v1823
    %v1825 = vpop.f32.mrf.mxu0
    %v1826 = vpop.f32.mrf.mxu0
    %1827 = vdwg.mxu0
    %1828 = vmatprep.subr.bf16.mxu0 %v1463
    %1829 = vmatpush1.bf16.msra.mxu0 %v1462
    %1830 = vmatprep.subr.bf16.mxu0 %v1431
    %1831 = vmatpush1.bf16.msra.mxu0 %v1430
    %1832 = vmatprep.subr.bf16.mxu0 %v1399
    %1833 = vmatpush1.bf16.msra.mxu0 %v1398
    %1834 = vmatprep.subr.bf16.mxu0 %v1367
    %1835 = vmatpush1.bf16.msra.mxu0 %v1366
    %1836 = vmatprep.subr.bf16.mxu0 %v1335
    %1837 = vmatpush1.bf16.msra.mxu0 %v1334
    %1838 = vmatprep.subr.bf16.mxu0 %v1303
    %1839 = vmatpush1.bf16.msra.mxu0 %v1302
    %1840 = vmatprep.subr.bf16.mxu0 %v1271
    %1841 = vmatpush1.bf16.msra.mxu0 %v1270
    %1842 = vmatprep.subr.bf16.mxu0 %v1239
    %1843 = vmatpush1.bf16.msra.mxu0 %v1238
    %1844 = vmatprep.subr.bf16.mxu0 0
    %1845 = vmatpush2.bf16.msra.mxu0 0
    %1846 = vmatprep.subr.bf16.mxu0 0
    %1847 = vmatpush2.bf16.msra.mxu0 0
    %1848 = vmatprep.subr.bf16.mxu0 0
    %1849 = vmatpush2.bf16.msra.mxu0 0
    %1850 = vmatprep.subr.bf16.mxu0 0
    %1851 = vmatpush2.bf16.msra.mxu0 0
    %1852 = vmatprep.subr.bf16.mxu0 0
    %1853 = vmatpush2.bf16.msra.mxu0 0
    %1854 = vmatprep.subr.bf16.mxu0 0
    %1855 = vmatpush2.bf16.msra.mxu0 0
    %1856 = vmatprep.subr.bf16.mxu0 0
    %1857 = vmatpush2.bf16.msra.mxu0 0
    %1858 = vmatprep.subr.bf16.mxu0 0
    %1859 = vmatpush2.bf16.msra.mxu0 0
    %1860 = vmatprep.mubr.bf16.mxu0 0
    %1861 = vmatmul.mubr.bf16.gmra.mxu0 %v41
    %v1862 = vpop.f32.mrf.mxu0
    %v1863 = vadd.f32 %v325, %v1862
    %v1864 = vpop.f32.mrf.mxu0
    %v1865 = vadd.f32 %v329, %v1864
    %v1866 = vpop.f32.mrf.mxu0
    %v1867 = vpop.f32.mrf.mxu0
    %1868 = vdwg.mxu0
    %1869 = vmatprep.subr.bf16.mxu0 %v1465
    %1870 = vmatpush1.bf16.msra.mxu0 %v1464
    %1871 = vmatprep.subr.bf16.mxu0 %v1433
    %1872 = vmatpush1.bf16.msra.mxu0 %v1432
    %1873 = vmatprep.subr.bf16.mxu0 %v1401
    %1874 = vmatpush1.bf16.msra.mxu0 %v1400
    %1875 = vmatprep.subr.bf16.mxu0 %v1369
    %1876 = vmatpush1.bf16.msra.mxu0 %v1368
    %1877 = vmatprep.subr.bf16.mxu0 %v1337
    %1878 = vmatpush1.bf16.msra.mxu0 %v1336
    %1879 = vmatprep.subr.bf16.mxu0 %v1305
    %1880 = vmatpush1.bf16.msra.mxu0 %v1304
    %1881 = vmatprep.subr.bf16.mxu0 %v1273
    %1882 = vmatpush1.bf16.msra.mxu0 %v1272
    %1883 = vmatprep.subr.bf16.mxu0 %v1241
    %1884 = vmatpush1.bf16.msra.mxu0 %v1240
    %1885 = vmatprep.subr.bf16.mxu0 0
    %1886 = vmatpush2.bf16.msra.mxu0 0
    %1887 = vmatprep.subr.bf16.mxu0 0
    %1888 = vmatpush2.bf16.msra.mxu0 0
    %1889 = vmatprep.subr.bf16.mxu0 0
    %1890 = vmatpush2.bf16.msra.mxu0 0
    %1891 = vmatprep.subr.bf16.mxu0 0
    %1892 = vmatpush2.bf16.msra.mxu0 0
    %1893 = vmatprep.subr.bf16.mxu0 0
    %1894 = vmatpush2.bf16.msra.mxu0 0
    %1895 = vmatprep.subr.bf16.mxu0 0
    %1896 = vmatpush2.bf16.msra.mxu0 0
    %1897 = vmatprep.subr.bf16.mxu0 0
    %1898 = vmatpush2.bf16.msra.mxu0 0
    %1899 = vmatprep.subr.bf16.mxu0 0
    %1900 = vmatpush2.bf16.msra.mxu0 0
    %1901 = vmatprep.mubr.bf16.mxu0 0
    %1902 = vmatmul.mubr.bf16.gmra.mxu0 %v41
    %v1903 = vpop.f32.mrf.mxu0
    %v1904 = vadd.f32 %v333, %v1903
    %v1905 = vpop.f32.mrf.mxu0
    %v1906 = vadd.f32 %v337, %v1905
    %v1907 = vpop.f32.mrf.mxu0
    %v1908 = vpop.f32.mrf.mxu0
    %1909 = vdwg.mxu0
    %1910 = vmatprep.subr.bf16.mxu0 %v1467
    %1911 = vmatpush1.bf16.msra.mxu0 %v1466
    %1912 = vmatprep.subr.bf16.mxu0 %v1435
    %1913 = vmatpush1.bf16.msra.mxu0 %v1434
    %1914 = vmatprep.subr.bf16.mxu0 %v1403
    %1915 = vmatpush1.bf16.msra.mxu0 %v1402
    %1916 = vmatprep.subr.bf16.mxu0 %v1371
    %1917 = vmatpush1.bf16.msra.mxu0 %v1370
    %1918 = vmatprep.subr.bf16.mxu0 %v1339
    %1919 = vmatpush1.bf16.msra.mxu0 %v1338
    %1920 = vmatprep.subr.bf16.mxu0 %v1307
    %1921 = vmatpush1.bf16.msra.mxu0 %v1306
    %1922 = vmatprep.subr.bf16.mxu0 %v1275
    %1923 = vmatpush1.bf16.msra.mxu0 %v1274
    %1924 = vmatprep.subr.bf16.mxu0 %v1243
    %1925 = vmatpush1.bf16.msra.mxu0 %v1242
    %1926 = vmatprep.subr.bf16.mxu0 0
    %1927 = vmatpush2.bf16.msra.mxu0 0
    %1928 = vmatprep.subr.bf16.mxu0 0
    %1929 = vmatpush2.bf16.msra.mxu0 0
    %1930 = vmatprep.subr.bf16.mxu0 0
    %1931 = vmatpush2.bf16.msra.mxu0 0
    %1932 = vmatprep.subr.bf16.mxu0 0
    %1933 = vmatpush2.bf16.msra.mxu0 0
    %1934 = vmatprep.subr.bf16.mxu0 0
    %1935 = vmatpush2.bf16.msra.mxu0 0
    %1936 = vmatprep.subr.bf16.mxu0 0
    %1937 = vmatpush2.bf16.msra.mxu0 0
    %1938 = vmatprep.subr.bf16.mxu0 0
    %1939 = vmatpush2.bf16.msra.mxu0 0
    %1940 = vmatprep.subr.bf16.mxu0 0
    %1941 = vmatpush2.bf16.msra.mxu0 0
    %1942 = vmatprep.mubr.bf16.mxu0 0
    %1943 = vmatmul.mubr.bf16.gmra.mxu0 %v41
    %v1944 = vpop.f32.mrf.mxu0
    %v1945 = vadd.f32 %v341, %v1944
    %v1946 = vpop.f32.mrf.mxu0
    %v1947 = vadd.f32 %v345, %v1946
    %v1948 = vpop.f32.mrf.mxu0
    %v1949 = vpop.f32.mrf.mxu0
    %1950 = vdwg.mxu0
    %1951 = vmatprep.subr.bf16.mxu0 %v1469
    %1952 = vmatpush1.bf16.msra.mxu0 %v1468
    %1953 = vmatprep.subr.bf16.mxu0 %v1437
    %1954 = vmatpush1.bf16.msra.mxu0 %v1436
    %1955 = vmatprep.subr.bf16.mxu0 %v1405
    %1956 = vmatpush1.bf16.msra.mxu0 %v1404
    %1957 = vmatprep.subr.bf16.mxu0 %v1373
    %1958 = vmatpush1.bf16.msra.mxu0 %v1372
    %1959 = vmatprep.subr.bf16.mxu0 %v1341
    %1960 = vmatpush1.bf16.msra.mxu0 %v1340
    %1961 = vmatprep.subr.bf16.mxu0 %v1309
    %1962 = vmatpush1.bf16.msra.mxu0 %v1308
    %1963 = vmatprep.subr.bf16.mxu0 %v1277
    %1964 = vmatpush1.bf16.msra.mxu0 %v1276
    %1965 = vmatprep.subr.bf16.mxu0 %v1245
    %1966 = vmatpush1.bf16.msra.mxu0 %v1244
    %1967 = vmatprep.subr.bf16.mxu0 0
    %1968 = vmatpush2.bf16.msra.mxu0 0
    %1969 = vmatprep.subr.bf16.mxu0 0
    %1970 = vmatpush2.bf16.msra.mxu0 0
    %1971 = vmatprep.subr.bf16.mxu0 0
    %1972 = vmatpush2.bf16.msra.mxu0 0
    %1973 = vmatprep.subr.bf16.mxu0 0
    %1974 = vmatpush2.bf16.msra.mxu0 0
    %1975 = vmatprep.subr.bf16.mxu0 0
    %1976 = vmatpush2.bf16.msra.mxu0 0
    %1977 = vmatprep.subr.bf16.mxu0 0
    %1978 = vmatpush2.bf16.msra.mxu0 0
    %1979 = vmatprep.subr.bf16.mxu0 0
    %1980 = vmatpush2.bf16.msra.mxu0 0
    %1981 = vmatprep.subr.bf16.mxu0 0
    %1982 = vmatpush2.bf16.msra.mxu0 0
    %1983 = vmatprep.mubr.bf16.mxu0 0
    %1984 = vmatmul.mubr.bf16.gmra.mxu0 %v41
    %v1985 = vpop.f32.mrf.mxu0
    %v1986 = vadd.f32 %v349, %v1985
    %v1987 = vpop.f32.mrf.mxu0
    %v1988 = vadd.f32 %v353, %v1987
    %v1989 = vpop.f32.mrf.mxu0
    %v1990 = vpop.f32.mrf.mxu0
    %1991 = vdwg.mxu0
    %1992 = vmatprep.subr.bf16.mxu0 %v1471
    %1993 = vmatpush1.bf16.msra.mxu0 %v1470
    %1994 = vmatprep.subr.bf16.mxu0 %v1439
    %1995 = vmatpush1.bf16.msra.mxu0 %v1438
    %1996 = vmatprep.subr.bf16.mxu0 %v1407
    %1997 = vmatpush1.bf16.msra.mxu0 %v1406
    %1998 = vmatprep.subr.bf16.mxu0 %v1375
    %1999 = vmatpush1.bf16.msra.mxu0 %v1374
    %2000 = vmatprep.subr.bf16.mxu0 %v1343
    %2001 = vmatpush1.bf16.msra.mxu0 %v1342
    %2002 = vmatprep.subr.bf16.mxu0 %v1311
    %2003 = vmatpush1.bf16.msra.mxu0 %v1310
    %2004 = vmatprep.subr.bf16.mxu0 %v1279
    %2005 = vmatpush1.bf16.msra.mxu0 %v1278
    %2006 = vmatprep.subr.bf16.mxu0 %v1247
    %2007 = vmatpush1.bf16.msra.mxu0 %v1246
    %2008 = vmatprep.subr.bf16.mxu0 0
    %2009 = vmatpush2.bf16.msra.mxu0 0
    %2010 = vmatprep.subr.bf16.mxu0 0
    %2011 = vmatpush2.bf16.msra.mxu0 0
    %2012 = vmatprep.subr.bf16.mxu0 0
    %2013 = vmatpush2.bf16.msra.mxu0 0
    %2014 = vmatprep.subr.bf16.mxu0 0
    %2015 = vmatpush2.bf16.msra.mxu0 0
    %2016 = vmatprep.subr.bf16.mxu0 0
    %2017 = vmatpush2.bf16.msra.mxu0 0
    %2018 = vmatprep.subr.bf16.mxu0 0
    %2019 = vmatpush2.bf16.msra.mxu0 0
    %2020 = vmatprep.subr.bf16.mxu0 0
    %2021 = vmatpush2.bf16.msra.mxu0 0
    %2022 = vmatprep.subr.bf16.mxu0 0
    %2023 = vmatpush2.bf16.msra.mxu0 0
    %2024 = vmatprep.mubr.bf16.mxu0 0
    %2025 = vmatmul.mubr.bf16.gmra.mxu0 %v41
    %v2026 = vpop.f32.mrf.mxu0
    %v2027 = vadd.f32 %v357, %v2026
    %v2028 = vpop.f32.mrf.mxu0
    %v2029 = vadd.f32 %v361, %v2028
    %v2030 = vpop.f32.mrf.mxu0
    %v2031 = vpop.f32.mrf.mxu0
    %2032 = vdwg.mxu0
    %2033 = vmatprep.subr.bf16.mxu0 %v1473
    %2034 = vmatpush1.bf16.msra.mxu0 %v1472
    %2035 = vmatprep.subr.bf16.mxu0 %v1441
    %2036 = vmatpush1.bf16.msra.mxu0 %v1440
    %2037 = vmatprep.subr.bf16.mxu0 %v1409
    %2038 = vmatpush1.bf16.msra.mxu0 %v1408
    %2039 = vmatprep.subr.bf16.mxu0 %v1377
    %2040 = vmatpush1.bf16.msra.mxu0 %v1376
    %2041 = vmatprep.subr.bf16.mxu0 %v1345
    %2042 = vmatpush1.bf16.msra.mxu0 %v1344
    %2043 = vmatprep.subr.bf16.mxu0 %v1313
    %2044 = vmatpush1.bf16.msra.mxu0 %v1312
    %2045 = vmatprep.subr.bf16.mxu0 %v1281
    %2046 = vmatpush1.bf16.msra.mxu0 %v1280
    %2047 = vmatprep.subr.bf16.mxu0 %v1249
    %2048 = vmatpush1.bf16.msra.mxu0 %v1248
    %2049 = vmatprep.subr.bf16.mxu0 0
    %2050 = vmatpush2.bf16.msra.mxu0 0
    %2051 = vmatprep.subr.bf16.mxu0 0
    %2052 = vmatpush2.bf16.msra.mxu0 0
    %2053 = vmatprep.subr.bf16.mxu0 0
    %2054 = vmatpush2.bf16.msra.mxu0 0
    %2055 = vmatprep.subr.bf16.mxu0 0
    %2056 = vmatpush2.bf16.msra.mxu0 0
    %2057 = vmatprep.subr.bf16.mxu0 0
    %2058 = vmatpush2.bf16.msra.mxu0 0
    %2059 = vmatprep.subr.bf16.mxu0 0
    %2060 = vmatpush2.bf16.msra.mxu0 0
    %2061 = vmatprep.subr.bf16.mxu0 0
    %2062 = vmatpush2.bf16.msra.mxu0 0
    %2063 = vmatprep.subr.bf16.mxu0 0
    %2064 = vmatpush2.bf16.msra.mxu0 0
    %2065 = vmatprep.mubr.bf16.mxu0 0
    %2066 = vmatmul.mubr.bf16.gmra.mxu0 %v41
    %v2067 = vpop.f32.mrf.mxu0
    %v2068 = vadd.f32 %v365, %v2067
    %v2069 = vpop.f32.mrf.mxu0
    %v2070 = vadd.f32 %v369, %v2069
    %v2071 = vpop.f32.mrf.mxu0
    %v2072 = vpop.f32.mrf.mxu0
    %2073 = vdwg.mxu0
    %2074 = vmatprep.subr.bf16.mxu0 %v1475
    %2075 = vmatpush1.bf16.msra.mxu0 %v1474
    %2076 = vmatprep.subr.bf16.mxu0 %v1443
    %2077 = vmatpush1.bf16.msra.mxu0 %v1442
    %2078 = vmatprep.subr.bf16.mxu0 %v1411
    %2079 = vmatpush1.bf16.msra.mxu0 %v1410
    %2080 = vmatprep.subr.bf16.mxu0 %v1379
    %2081 = vmatpush1.bf16.msra.mxu0 %v1378
    %2082 = vmatprep.subr.bf16.mxu0 %v1347
    %2083 = vmatpush1.bf16.msra.mxu0 %v1346
    %2084 = vmatprep.subr.bf16.mxu0 %v1315
    %2085 = vmatpush1.bf16.msra.mxu0 %v1314
    %2086 = vmatprep.subr.bf16.mxu0 %v1283
    %2087 = vmatpush1.bf16.msra.mxu0 %v1282
    %2088 = vmatprep.subr.bf16.mxu0 %v1251
    %2089 = vmatpush1.bf16.msra.mxu0 %v1250
    %2090 = vmatprep.subr.bf16.mxu0 0
    %2091 = vmatpush2.bf16.msra.mxu0 0
    %2092 = vmatprep.subr.bf16.mxu0 0
    %2093 = vmatpush2.bf16.msra.mxu0 0
    %2094 = vmatprep.subr.bf16.mxu0 0
    %2095 = vmatpush2.bf16.msra.mxu0 0
    %2096 = vmatprep.subr.bf16.mxu0 0
    %2097 = vmatpush2.bf16.msra.mxu0 0
    %2098 = vmatprep.subr.bf16.mxu0 0
    %2099 = vmatpush2.bf16.msra.mxu0 0
    %2100 = vmatprep.subr.bf16.mxu0 0
    %2101 = vmatpush2.bf16.msra.mxu0 0
    %2102 = vmatprep.subr.bf16.mxu0 0
    %2103 = vmatpush2.bf16.msra.mxu0 0
    %2104 = vmatprep.subr.bf16.mxu0 0
    %2105 = vmatpush2.bf16.msra.mxu0 0
    %2106 = vmatprep.mubr.bf16.mxu0 0
    %2107 = vmatmul.mubr.bf16.gmra.mxu0 %v41
    %v2108 = vpop.f32.mrf.mxu0
    %v2109 = vadd.f32 %v373, %v2108
    %v2110 = vpop.f32.mrf.mxu0
    %v2111 = vadd.f32 %v377, %v2110
    %v2112 = vpop.f32.mrf.mxu0
    %v2113 = vpop.f32.mrf.mxu0
    %2114 = vdwg.mxu0
    %2115 = vmatprep.subr.bf16.mxu0 %v1477
    %2116 = vmatpush1.bf16.msra.mxu0 %v1476
    %2117 = vmatprep.subr.bf16.mxu0 %v1445
    %2118 = vmatpush1.bf16.msra.mxu0 %v1444
    %2119 = vmatprep.subr.bf16.mxu0 %v1413
    %2120 = vmatpush1.bf16.msra.mxu0 %v1412
    %2121 = vmatprep.subr.bf16.mxu0 %v1381
    %2122 = vmatpush1.bf16.msra.mxu0 %v1380
    %2123 = vmatprep.subr.bf16.mxu0 %v1349
    %2124 = vmatpush1.bf16.msra.mxu0 %v1348
    %2125 = vmatprep.subr.bf16.mxu0 %v1317
    %2126 = vmatpush1.bf16.msra.mxu0 %v1316
    %2127 = vmatprep.subr.bf16.mxu0 %v1285
    %2128 = vmatpush1.bf16.msra.mxu0 %v1284
    %2129 = vmatprep.subr.bf16.mxu0 %v1253
    %2130 = vmatpush1.bf16.msra.mxu0 %v1252
    %2131 = vmatprep.subr.bf16.mxu0 0
    %2132 = vmatpush2.bf16.msra.mxu0 0
    %2133 = vmatprep.subr.bf16.mxu0 0
    %2134 = vmatpush2.bf16.msra.mxu0 0
    %2135 = vmatprep.subr.bf16.mxu0 0
    %2136 = vmatpush2.bf16.msra.mxu0 0
    %2137 = vmatprep.subr.bf16.mxu0 0
    %2138 = vmatpush2.bf16.msra.mxu0 0
    %2139 = vmatprep.subr.bf16.mxu0 0
    %2140 = vmatpush2.bf16.msra.mxu0 0
    %2141 = vmatprep.subr.bf16.mxu0 0
    %2142 = vmatpush2.bf16.msra.mxu0 0
    %2143 = vmatprep.subr.bf16.mxu0 0
    %2144 = vmatpush2.bf16.msra.mxu0 0
    %2145 = vmatprep.subr.bf16.mxu0 0
    %2146 = vmatpush2.bf16.msra.mxu0 0
    %2147 = vmatprep.mubr.bf16.mxu0 0
    %2148 = vmatmul.mubr.bf16.gmra.mxu0 %v41
    %v2149 = vpop.f32.mrf.mxu0
    %v2150 = vadd.f32 %v381, %v2149
    %v2151 = vpop.f32.mrf.mxu0
    %v2152 = vadd.f32 %v385, %v2151
    %v2153 = vpop.f32.mrf.mxu0
    %v2154 = vpop.f32.mrf.mxu0
    %2155 = vdwg.mxu0
    %2156 = vmatprep.subr.bf16.mxu0 %v1479
    %2157 = vmatpush1.bf16.msra.mxu0 %v1478
    %2158 = vmatprep.subr.bf16.mxu0 %v1447
    %2159 = vmatpush1.bf16.msra.mxu0 %v1446
    %2160 = vmatprep.subr.bf16.mxu0 %v1415
    %2161 = vmatpush1.bf16.msra.mxu0 %v1414
    %2162 = vmatprep.subr.bf16.mxu0 %v1383
    %2163 = vmatpush1.bf16.msra.mxu0 %v1382
    %2164 = vmatprep.subr.bf16.mxu0 %v1351
    %2165 = vmatpush1.bf16.msra.mxu0 %v1350
    %2166 = vmatprep.subr.bf16.mxu0 %v1319
    %2167 = vmatpush1.bf16.msra.mxu0 %v1318
    %2168 = vmatprep.subr.bf16.mxu0 %v1287
    %2169 = vmatpush1.bf16.msra.mxu0 %v1286
    %2170 = vmatprep.subr.bf16.mxu0 %v1255
    %2171 = vmatpush1.bf16.msra.mxu0 %v1254
    %2172 = vmatprep.subr.bf16.mxu0 0
    %2173 = vmatpush2.bf16.msra.mxu0 0
    %2174 = vmatprep.subr.bf16.mxu0 0
    %2175 = vmatpush2.bf16.msra.mxu0 0
    %2176 = vmatprep.subr.bf16.mxu0 0
    %2177 = vmatpush2.bf16.msra.mxu0 0
    %2178 = vmatprep.subr.bf16.mxu0 0
    %2179 = vmatpush2.bf16.msra.mxu0 0
    %2180 = vmatprep.subr.bf16.mxu0 0
    %2181 = vmatpush2.bf16.msra.mxu0 0
    %2182 = vmatprep.subr.bf16.mxu0 0
    %2183 = vmatpush2.bf16.msra.mxu0 0
    %2184 = vmatprep.subr.bf16.mxu0 0
    %2185 = vmatpush2.bf16.msra.mxu0 0
    %2186 = vmatprep.subr.bf16.mxu0 0
    %2187 = vmatpush2.bf16.msra.mxu0 0
    %2188 = vmatprep.mubr.bf16.mxu0 0
    %2189 = vmatmul.mubr.bf16.gmra.mxu0 %v41
    %v2190 = vpop.f32.mrf.mxu0
    %v2191 = vadd.f32 %v389, %v2190
    %v2192 = vpop.f32.mrf.mxu0
    %v2193 = vadd.f32 %v393, %v2192
    %v2194 = vpop.f32.mrf.mxu0
    %v2195 = vpop.f32.mrf.mxu0
    %2196 = vdwg.mxu0
    %2197 = vmatprep.subr.bf16.mxu0 %v1481
    %2198 = vmatpush1.bf16.msra.mxu0 %v1480
    %2199 = vmatprep.subr.bf16.mxu0 %v1449
    %2200 = vmatpush1.bf16.msra.mxu0 %v1448
    %2201 = vmatprep.subr.bf16.mxu0 %v1417
    %2202 = vmatpush1.bf16.msra.mxu0 %v1416
    %2203 = vmatprep.subr.bf16.mxu0 %v1385
    %2204 = vmatpush1.bf16.msra.mxu0 %v1384
    %2205 = vmatprep.subr.bf16.mxu0 %v1353
    %2206 = vmatpush1.bf16.msra.mxu0 %v1352
    %2207 = vmatprep.subr.bf16.mxu0 %v1321
    %2208 = vmatpush1.bf16.msra.mxu0 %v1320
    %2209 = vmatprep.subr.bf16.mxu0 %v1289
    %2210 = vmatpush1.bf16.msra.mxu0 %v1288
    %2211 = vmatprep.subr.bf16.mxu0 %v1257
    %2212 = vmatpush1.bf16.msra.mxu0 %v1256
    %2213 = vmatprep.subr.bf16.mxu0 0
    %2214 = vmatpush2.bf16.msra.mxu0 0
    %2215 = vmatprep.subr.bf16.mxu0 0
    %2216 = vmatpush2.bf16.msra.mxu0 0
    %2217 = vmatprep.subr.bf16.mxu0 0
    %2218 = vmatpush2.bf16.msra.mxu0 0
    %2219 = vmatprep.subr.bf16.mxu0 0
    %2220 = vmatpush2.bf16.msra.mxu0 0
    %2221 = vmatprep.subr.bf16.mxu0 0
    %2222 = vmatpush2.bf16.msra.mxu0 0
    %2223 = vmatprep.subr.bf16.mxu0 0
    %2224 = vmatpush2.bf16.msra.mxu0 0
    %2225 = vmatprep.subr.bf16.mxu0 0
    %2226 = vmatpush2.bf16.msra.mxu0 0
    %2227 = vmatprep.subr.bf16.mxu0 0
    %2228 = vmatpush2.bf16.msra.mxu0 0
    %2229 = vmatprep.mubr.bf16.mxu0 0
    %2230 = vmatmul.mubr.bf16.gmra.mxu0 %v41
    %v2231 = vpop.f32.mrf.mxu0
    %v2232 = vadd.f32 %v397, %v2231
    %v2233 = vpop.f32.mrf.mxu0
    %v2234 = vadd.f32 %v401, %v2233
    %v2235 = vpop.f32.mrf.mxu0
    %v2236 = vpop.f32.mrf.mxu0
    %2237 = vdwg.mxu0
    %2238 = vmatprep.subr.bf16.mxu0 %v1483
    %2239 = vmatpush1.bf16.msra.mxu0 %v1482
    %2240 = vmatprep.subr.bf16.mxu0 %v1451
    %2241 = vmatpush1.bf16.msra.mxu0 %v1450
    %2242 = vmatprep.subr.bf16.mxu0 %v1419
    %2243 = vmatpush1.bf16.msra.mxu0 %v1418
    %2244 = vmatprep.subr.bf16.mxu0 %v1387
    %2245 = vmatpush1.bf16.msra.mxu0 %v1386
    %2246 = vmatprep.subr.bf16.mxu0 %v1355
    %2247 = vmatpush1.bf16.msra.mxu0 %v1354
    %2248 = vmatprep.subr.bf16.mxu0 %v1323
    %2249 = vmatpush1.bf16.msra.mxu0 %v1322
    %2250 = vmatprep.subr.bf16.mxu0 %v1291
    %2251 = vmatpush1.bf16.msra.mxu0 %v1290
    %2252 = vmatprep.subr.bf16.mxu0 %v1259
    %2253 = vmatpush1.bf16.msra.mxu0 %v1258
    %2254 = vmatprep.subr.bf16.mxu0 0
    %2255 = vmatpush2.bf16.msra.mxu0 0
    %2256 = vmatprep.subr.bf16.mxu0 0
    %2257 = vmatpush2.bf16.msra.mxu0 0
    %2258 = vmatprep.subr.bf16.mxu0 0
    %2259 = vmatpush2.bf16.msra.mxu0 0
    %2260 = vmatprep.subr.bf16.mxu0 0
    %2261 = vmatpush2.bf16.msra.mxu0 0
    %2262 = vmatprep.subr.bf16.mxu0 0
    %2263 = vmatpush2.bf16.msra.mxu0 0
    %2264 = vmatprep.subr.bf16.mxu0 0
    %2265 = vmatpush2.bf16.msra.mxu0 0
    %2266 = vmatprep.subr.bf16.mxu0 0
    %2267 = vmatpush2.bf16.msra.mxu0 0
    %2268 = vmatprep.subr.bf16.mxu0 0
    %2269 = vmatpush2.bf16.msra.mxu0 0
    %2270 = vmatprep.mubr.bf16.mxu0 0
    %2271 = vmatmul.mubr.bf16.gmra.mxu0 %v41
    %v2272 = vpop.f32.mrf.mxu0
    %v2273 = vadd.f32 %v405, %v2272
    %v2274 = vpop.f32.mrf.mxu0
    %v2275 = vadd.f32 %v409, %v2274
    %v2276 = vpop.f32.mrf.mxu0
    %v2277 = vpop.f32.mrf.mxu0
    %2278 = vdwg.mxu0
    %2279 = vmatprep.subr.bf16.mxu0 %v1485
    %2280 = vmatpush1.bf16.msra.mxu0 %v1484
    %2281 = vmatprep.subr.bf16.mxu0 %v1453
    %2282 = vmatpush1.bf16.msra.mxu0 %v1452
    %2283 = vmatprep.subr.bf16.mxu0 %v1421
    %2284 = vmatpush1.bf16.msra.mxu0 %v1420
    %2285 = vmatprep.subr.bf16.mxu0 %v1389
    %2286 = vmatpush1.bf16.msra.mxu0 %v1388
    %2287 = vmatprep.subr.bf16.mxu0 %v1357
    %2288 = vmatpush1.bf16.msra.mxu0 %v1356
    %2289 = vmatprep.subr.bf16.mxu0 %v1325
    %2290 = vmatpush1.bf16.msra.mxu0 %v1324
    %2291 = vmatprep.subr.bf16.mxu0 %v1293
    %2292 = vmatpush1.bf16.msra.mxu0 %v1292
    %2293 = vmatprep.subr.bf16.mxu0 %v1261
    %2294 = vmatpush1.bf16.msra.mxu0 %v1260
    %2295 = vmatprep.subr.bf16.mxu0 0
    %2296 = vmatpush2.bf16.msra.mxu0 0
    %2297 = vmatprep.subr.bf16.mxu0 0
    %2298 = vmatpush2.bf16.msra.mxu0 0
    %2299 = vmatprep.subr.bf16.mxu0 0
    %2300 = vmatpush2.bf16.msra.mxu0 0
    %2301 = vmatprep.subr.bf16.mxu0 0
    %2302 = vmatpush2.bf16.msra.mxu0 0
    %2303 = vmatprep.subr.bf16.mxu0 0
    %2304 = vmatpush2.bf16.msra.mxu0 0
    %2305 = vmatprep.subr.bf16.mxu0 0
    %2306 = vmatpush2.bf16.msra.mxu0 0
    %2307 = vmatprep.subr.bf16.mxu0 0
    %2308 = vmatpush2.bf16.msra.mxu0 0
    %2309 = vmatprep.subr.bf16.mxu0 0
    %2310 = vmatpush2.bf16.msra.mxu0 0
    %2311 = vmatprep.mubr.bf16.mxu0 0
    %2312 = vmatmul.mubr.bf16.gmra.mxu0 %v41
    %v2313 = vpop.f32.mrf.mxu0
    %v2314 = vadd.f32 %v413, %v2313
    %v2315 = vpop.f32.mrf.mxu0
    %v2316 = vadd.f32 %v417, %v2315
    %v2317 = vpop.f32.mrf.mxu0
    %v2318 = vpop.f32.mrf.mxu0
    %2319 = vdwg.mxu0
    %2320 = vmatprep.subr.bf16.mxu0 %v1487
    %2321 = vmatpush1.bf16.msra.mxu0 %v1486
    %2322 = vmatprep.subr.bf16.mxu0 %v1455
    %2323 = vmatpush1.bf16.msra.mxu0 %v1454
    %2324 = vmatprep.subr.bf16.mxu0 %v1423
    %2325 = vmatpush1.bf16.msra.mxu0 %v1422
    %2326 = vmatprep.subr.bf16.mxu0 %v1391
    %2327 = vmatpush1.bf16.msra.mxu0 %v1390
    %2328 = vmatprep.subr.bf16.mxu0 %v1359
    %2329 = vmatpush1.bf16.msra.mxu0 %v1358
    %2330 = vmatprep.subr.bf16.mxu0 %v1327
    %2331 = vmatpush1.bf16.msra.mxu0 %v1326
    %2332 = vmatprep.subr.bf16.mxu0 %v1295
    %2333 = vmatpush1.bf16.msra.mxu0 %v1294
    %2334 = vmatprep.subr.bf16.mxu0 %v1263
    %2335 = vmatpush1.bf16.msra.mxu0 %v1262
    %2336 = vmatprep.subr.bf16.mxu0 0
    %2337 = vmatpush2.bf16.msra.mxu0 0
    %2338 = vmatprep.subr.bf16.mxu0 0
    %2339 = vmatpush2.bf16.msra.mxu0 0
    %2340 = vmatprep.subr.bf16.mxu0 0
    %2341 = vmatpush2.bf16.msra.mxu0 0
    %2342 = vmatprep.subr.bf16.mxu0 0
    %2343 = vmatpush2.bf16.msra.mxu0 0
    %2344 = vmatprep.subr.bf16.mxu0 0
    %2345 = vmatpush2.bf16.msra.mxu0 0
    %2346 = vmatprep.subr.bf16.mxu0 0
    %2347 = vmatpush2.bf16.msra.mxu0 0
    %2348 = vmatprep.subr.bf16.mxu0 0
    %2349 = vmatpush2.bf16.msra.mxu0 0
    %2350 = vmatprep.subr.bf16.mxu0 0
    %2351 = vmatpush2.bf16.msra.mxu0 0
    %2352 = vmatprep.mubr.bf16.mxu0 0
    %2353 = vmatmul.mubr.bf16.gmra.mxu0 %v41
    %v2354 = vpop.f32.mrf.mxu0
    %v2355 = vadd.f32 %v421, %v2354
    %v2356 = vpop.f32.mrf.mxu0
    %v2357 = vadd.f32 %v425, %v2356
    %v2358 = vpop.f32.mrf.mxu0
    %v2359 = vpop.f32.mrf.mxu0
    %2360 = vdwg.mxu0
    %2361 = vmatprep.subr.bf16.mxu0 %v1489
    %2362 = vmatpush1.bf16.msra.mxu0 %v1488
    %2363 = vmatprep.subr.bf16.mxu0 %v1457
    %2364 = vmatpush1.bf16.msra.mxu0 %v1456
    %2365 = vmatprep.subr.bf16.mxu0 %v1425
    %2366 = vmatpush1.bf16.msra.mxu0 %v1424
    %2367 = vmatprep.subr.bf16.mxu0 %v1393
    %2368 = vmatpush1.bf16.msra.mxu0 %v1392
    %2369 = vmatprep.subr.bf16.mxu0 %v1361
    %2370 = vmatpush1.bf16.msra.mxu0 %v1360
    %2371 = vmatprep.subr.bf16.mxu0 %v1329
    %2372 = vmatpush1.bf16.msra.mxu0 %v1328
    %2373 = vmatprep.subr.bf16.mxu0 %v1297
    %2374 = vmatpush1.bf16.msra.mxu0 %v1296
    %2375 = vmatprep.subr.bf16.mxu0 %v1265
    %2376 = vmatpush1.bf16.msra.mxu0 %v1264
    %2377 = vmatprep.subr.bf16.mxu0 0
    %2378 = vmatpush2.bf16.msra.mxu0 0
    %2379 = vmatprep.subr.bf16.mxu0 0
    %2380 = vmatpush2.bf16.msra.mxu0 0
    %2381 = vmatprep.subr.bf16.mxu0 0
    %2382 = vmatpush2.bf16.msra.mxu0 0
    %2383 = vmatprep.subr.bf16.mxu0 0
    %2384 = vmatpush2.bf16.msra.mxu0 0
    %2385 = vmatprep.subr.bf16.mxu0 0
    %2386 = vmatpush2.bf16.msra.mxu0 0
    %2387 = vmatprep.subr.bf16.mxu0 0
    %2388 = vmatpush2.bf16.msra.mxu0 0
    %2389 = vmatprep.subr.bf16.mxu0 0
    %2390 = vmatpush2.bf16.msra.mxu0 0
    %2391 = vmatprep.subr.bf16.mxu0 0
    %2392 = vmatpush2.bf16.msra.mxu0 0
    %2393 = vmatprep.mubr.bf16.mxu0 0
    %2394 = vmatmul.mubr.bf16.gmra.mxu0 %v41
    %v2395 = vpop.f32.mrf.mxu0
    %v2396 = vadd.f32 %v429, %v2395
    %v2397 = vpop.f32.mrf.mxu0
    %v2398 = vadd.f32 %v433, %v2397
    %v2399 = vpop.f32.mrf.mxu0
    %v2400 = vpop.f32.mrf.mxu0
    %2401 = vdwg.mxu0
    %v2402 = vpack.c.bf16 %v1781, %v1781
    %v2403 = vpack.c.bf16 %v1783, %v1783
    %v2404 = vpack.c.bf16 %v1822, %v1822
    %v2405 = vpack.c.bf16 %v1824, %v1824
    %v2406 = vpack.c.bf16 %v1863, %v1863
    %v2407 = vpack.c.bf16 %v1865, %v1865
    %v2408 = vpack.c.bf16 %v1904, %v1904
    %v2409 = vpack.c.bf16 %v1906, %v1906
    %v2410 = vpack.c.bf16 %v1945, %v1945
    %v2411 = vpack.c.bf16 %v1947, %v1947
    %v2412 = vpack.c.bf16 %v1986, %v1986
    %v2413 = vpack.c.bf16 %v1988, %v1988
    %v2414 = vpack.c.bf16 %v2027, %v2027
    %v2415 = vpack.c.bf16 %v2029, %v2029
    %v2416 = vpack.c.bf16 %v2068, %v2068
    %v2417 = vpack.c.bf16 %v2070, %v2070
    %v2418 = vpack.c.bf16 %v2109, %v2109
    %v2419 = vpack.c.bf16 %v2111, %v2111
    %v2420 = vpack.c.bf16 %v2150, %v2150
    %v2421 = vpack.c.bf16 %v2152, %v2152
    %v2422 = vpack.c.bf16 %v2191, %v2191
    %v2423 = vpack.c.bf16 %v2193, %v2193
    %v2424 = vpack.c.bf16 %v2232, %v2232
    %v2425 = vpack.c.bf16 %v2234, %v2234
    %v2426 = vpack.c.bf16 %v2273, %v2273
    %v2427 = vpack.c.bf16 %v2275, %v2275
    %v2428 = vpack.c.bf16 %v2314, %v2314
    %v2429 = vpack.c.bf16 %v2316, %v2316
    %v2430 = vpack.c.bf16 %v2355, %v2355
    %v2431 = vpack.c.bf16 %v2357, %v2357
    %v2432 = vpack.c.bf16 %v2396, %v2396
    %v2433 = vpack.c.bf16 %v2398, %v2398
    %v2466 = vunpack.c.l.b16 %v2402
    %v2467 = vunpack.c.l.b16 %v2403
    %v2468 = vunpack.c.l.b16 %v2404
    %v2469 = vunpack.c.l.b16 %v2405
    %v2470 = vunpack.c.l.b16 %v2406
    %v2471 = vunpack.c.l.b16 %v2407
    %v2472 = vunpack.c.l.b16 %v2408
    %v2473 = vunpack.c.l.b16 %v2409
    %v2474 = vunpack.c.l.b16 %v2410
    %v2475 = vunpack.c.l.b16 %v2411
    %v2476 = vunpack.c.l.b16 %v2412
    %v2477 = vunpack.c.l.b16 %v2413
    %v2478 = vunpack.c.l.b16 %v2414
    %v2479 = vunpack.c.l.b16 %v2415
    %v2480 = vunpack.c.l.b16 %v2416
    %v2481 = vunpack.c.l.b16 %v2417
    %v2482 = vunpack.c.l.b16 %v2418
    %v2483 = vunpack.c.l.b16 %v2419
    %v2484 = vunpack.c.l.b16 %v2420
    %v2485 = vunpack.c.l.b16 %v2421
    %v2486 = vunpack.c.l.b16 %v2422
    %v2487 = vunpack.c.l.b16 %v2423
    %v2488 = vunpack.c.l.b16 %v2424
    %v2489 = vunpack.c.l.b16 %v2425
    %v2490 = vunpack.c.l.b16 %v2426
    %v2491 = vunpack.c.l.b16 %v2427
    %v2492 = vunpack.c.l.b16 %v2428
    %v2493 = vunpack.c.l.b16 %v2429
    %v2494 = vunpack.c.l.b16 %v2430
    %v2495 = vunpack.c.l.b16 %v2431
    %v2496 = vunpack.c.l.b16 %v2432
    %v2497 = vunpack.c.l.b16 %v2433
    %v2498 = vpack.c.b16 %v2467, %v2466
    %v2499 = vpack.c.b16 %v2469, %v2468
    %v2500 = vpack.c.b16 %v2471, %v2470
    %v2501 = vpack.c.b16 %v2473, %v2472
    %v2502 = vpack.c.b16 %v2475, %v2474
    %v2503 = vpack.c.b16 %v2477, %v2476
    %v2504 = vpack.c.b16 %v2479, %v2478
    %v2505 = vpack.c.b16 %v2481, %v2480
    %v2506 = vpack.c.b16 %v2483, %v2482
    %v2507 = vpack.c.b16 %v2485, %v2484
    %v2508 = vpack.c.b16 %v2487, %v2486
    %v2509 = vpack.c.b16 %v2489, %v2488
    %v2510 = vpack.c.b16 %v2491, %v2490
    %v2511 = vpack.c.b16 %v2493, %v2492
    %v2512 = vpack.c.b16 %v2495, %v2494
    %v2513 = vpack.c.b16 %v2497, %v2496
    %2530 = vst [vmem:[%s3] sm:$0xff] %v2498
    %2531 = vst [vmem:[%s3 + $0x8] sm:$0xff] %v2499
    %2532 = vst [vmem:[%s3 + $0x10] sm:$0xff] %v2500
    %2533 = vst [vmem:[%s3 + $0x18] sm:$0xff] %v2501
    %2534 = vst [vmem:[%s3 + $0x20] sm:$0xff] %v2502
    %2535 = vst [vmem:[%s3 + $0x28] sm:$0xff] %v2503
    %2536 = vst [vmem:[%s3 + $0x30] sm:$0xff] %v2504
    %2537 = vst [vmem:[%s3 + $0x38] sm:$0xff] %v2505
    %2538 = vst [vmem:[%s3 + $0x40] sm:$0xff] %v2506
    %2539 = vst [vmem:[%s3 + $0x48] sm:$0xff] %v2507
    %2540 = vst [vmem:[%s3 + $0x50] sm:$0xff] %v2508
    %2541 = vst [vmem:[%s3 + $0x58] sm:$0xff] %v2509
    %2542 = vst [vmem:[%s3 + $0x60] sm:$0xff] %v2510
    %2543 = vst [vmem:[%s3 + $0x68] sm:$0xff] %v2511
    %2544 = vst [vmem:[%s3 + $0x70] sm:$0xff] %v2512
    %2545 = vst [vmem:[%s3 + $0x78] sm:$0xff] %v2513
    // Predicated region
    $region22: #{vae_decoder_forward.4} parent=1 // pred_check
      _
    $region23: #{vae_decoder_forward.4} parent=1 // pred_check_branch
      %2547 = sbr.rel (0) target = $region25
    $region24: #{vae_decoder_forward.4} parent=1 // pred_region
      _
    $region25: #{vae_decoder_forward.4} parent=1 // pred_fallthru
      _
    // Predicated region
    $region26: #{vae_decoder_forward.4} parent=1 // pred_check
      _
    $region27: #{vae_decoder_forward.4} parent=1 // pred_check_branch
      %2549 = sbr.rel (0) target = $region29
    $region28: #{vae_decoder_forward.4} parent=1 // pred_region
      _
    $region29: #{vae_decoder_forward.4} parent=1 // pred_fallthru
      _
    %2550 = vsyncpa [#allocation3], 1
    %2551 = vsyncpa [#allocation5], 1

// kernel: vae_decoder_forward.7
$region0: #{vae_decoder_forward.7}
  #allocation0 [shape = 'u32[]', space=smem, size = 0x4, offset = 0x4, fixed_abs, tag = 'smem constant byte address 0x4 - core index']
  #allocation1 [shape = 'u32[144,128]{1,0:T(1,128)}', space=vmem, size = 0x12000, scoped, tag = 'internal scratch']
  #allocation2 [shape = 'f32[1,1]{1,0:T(1,128)S(1)}', space=vmem, size = 0x200, scoped, tag = 'scoped memory for vae_decoder_forward.7']
  %s0 = inlined_call_operand.vmem [shape: bf16[4,512,512], index: 0, kind: input, shape index: {}]
  %s1 = inlined_call_operand.vmem [shape: f32[4,1,512], index: 1, kind: input, shape index: {}]
  %s2 = inlined_call_operand.<no memory space> [shape: f32[1,1], index: 2, kind: input, shape index: {}]
  %s3 = inlined_call_operand.vmem [shape: f32[4,512,1], index: 3, kind: output, shape index: {}]
  %s4 = sld [smem:[#allocation0]]
  $region45: #{vae_decoder_forward.7} parent=0
    _
  %s6 = ssub.s32 1, %s4
  %s7 = scalar_select 0, %s6, %s4
  %v8 = vstv %s2
  %9 = vst [vmem:[#allocation2] sm:$0x1] %v8
  loop: start=0, step=1, limit=6
  $region2: #{vae_decoder_forward.7} parent=0 // loop_pre_header
    _
  $region3: #{vae_decoder_forward.7} parent=0 // loop_header
    %s11 = sphi 0, %s15
    %p12 = scmp.ge.s32.totalorder %s11, 6
    %s21 = sphi 0, %s23
    %s24 = sphi 0, %s21
    %s25 = sphi 0, %s24
    %s41 = sphi 0, %s25
    %s47 = sphi 0, %s49
    %s50 = sphi 0, %s47
    %s51 = sphi 0, %s50
    %s67 = sphi 0, %s51
    %s71 = sphi 0, %s71
    %s73 = sphi 0, %s71
    %s74 = sphi 0, %s73
    %s88 = sphi 0, %s74
    %s94 = sphi 0, %s96
    %s97 = sphi 0, %s94
    %s98 = sphi 0, %s97
    %s114 = sphi 0, %s98
  $region4: #{vae_decoder_forward.7} parent=0 // loop_header_branch
    %14 = sbr.rel (%p12) target = $region8
  $region5: #{vae_decoder_forward.7} parent=0 // loop_body
    %s16 = ssub.s32 %s11, 1
    %s17 = ssub.s32 %s11, 2
    %s18 = sadd.s32 %s11, 1
    %s19 = ssub.s32 %s11, %s18
    %p20 = scmp.eq.s32.totalorder %s19, 0
    %s22 = sadd.s32 %s21, 1
    %s23 = scalar_select %p20, %s21, %s22
    %p26 = pneg %p20
    %p27 = scmp.eq.s32.totalorder %s11, 3
    %p28 = por %p26, %p27
    %p29 = scmp.ne.s32.totalorder %s21, %s24
    %p30 = scmp.eq.s32.totalorder %s11, 0
    %p31 = por %p29, %p30
    %p32 = scmp.ne.s32.totalorder %s21, %s24
    %p33 = scmp.eq.s32.totalorder %s16, 3
    %p34 = por %p32, %p33
    %p35 = scmp.ne.s32.totalorder %s24, %s25
    %p36 = scmp.eq.s32.totalorder %s16, 0
    %p37 = por %p35, %p36
    %p38 = scmp.ne.s32.totalorder %s24, %s25
    %p39 = scmp.eq.s32.totalorder %s17, 3
    %p40 = por %p38, %p39
    %p42 = scmp.ne.s32.totalorder %s25, %s41
    %p43 = scmp.eq.s32.totalorder %s17, 0
    %p44 = por %p42, %p43
    %s45 = ssub.s32 %s11, %s18
    %p46 = scmp.eq.s32.totalorder %s45, 0
    %s48 = sadd.s32 %s47, 1
    %s49 = scalar_select %p46, %s47, %s48
    %p52 = pneg %p46
    %p53 = scmp.eq.s32.totalorder %s11, 3
    %p54 = por %p52, %p53
    %p55 = scmp.ne.s32.totalorder %s47, %s50
    %p56 = scmp.eq.s32.totalorder %s11, 0
    %p57 = por %p55, %p56
    %p58 = scmp.ne.s32.totalorder %s47, %s50
    %p59 = scmp.eq.s32.totalorder %s16, 3
    %p60 = por %p58, %p59
    %p61 = scmp.ne.s32.totalorder %s50, %s51
    %p62 = scmp.eq.s32.totalorder %s16, 0
    %p63 = por %p61, %p62
    %p64 = scmp.ne.s32.totalorder %s50, %s51
    %p65 = scmp.eq.s32.totalorder %s17, 3
    %p66 = por %p64, %p65
    %p68 = scmp.ne.s32.totalorder %s51, %s67
    %p69 = scmp.eq.s32.totalorder %s17, 0
    %p70 = por %p68, %p69
    %s72 = sadd.s32 %s71, 1
    %p75 = scmp.eq.s32.totalorder %s11, 3
    %p76 = scmp.ne.s32.totalorder %s71, %s73
    %p77 = scmp.eq.s32.totalorder %s11, 0
    %p78 = por %p76, %p77
    %p79 = scmp.ne.s32.totalorder %s71, %s73
    %p80 = scmp.eq.s32.totalorder %s16, 3
    %p81 = por %p79, %p80
    %p82 = scmp.ne.s32.totalorder %s73, %s74
    %p83 = scmp.eq.s32.totalorder %s16, 0
    %p84 = por %p82, %p83
    %p85 = scmp.ne.s32.totalorder %s73, %s74
    %p86 = scmp.eq.s32.totalorder %s17, 3
    %p87 = por %p85, %p86
    %p89 = scmp.ne.s32.totalorder %s74, %s88
    %p90 = scmp.eq.s32.totalorder %s17, 0
    %p91 = por %p89, %p90
    %s92 = ssub.s32 %s11, %s18
    %p93 = scmp.eq.s32.totalorder %s92, 0
    %s95 = sadd.s32 %s94, 1
    %s96 = scalar_select %p93, %s94, %s95
    %p99 = pneg %p93
    %p100 = scmp.eq.s32.totalorder %s11, 3
    %p101 = por %p99, %p100
    %p102 = scmp.ne.s32.totalorder %s94, %s97
    %p103 = scmp.eq.s32.totalorder %s11, 0
    %p104 = por %p102, %p103
    %p105 = scmp.ne.s32.totalorder %s94, %s97
    %p106 = scmp.eq.s32.totalorder %s16, 3
    %p107 = por %p105, %p106
    %p108 = scmp.ne.s32.totalorder %s97, %s98
    %p109 = scmp.eq.s32.totalorder %s16, 0
    %p110 = por %p108, %p109
    %p111 = scmp.ne.s32.totalorder %s97, %s98
    %p112 = scmp.eq.s32.totalorder %s17, 3
    %p113 = por %p111, %p112
    %p115 = scmp.ne.s32.totalorder %s98, %s114
    %p116 = scmp.eq.s32.totalorder %s17, 0
    %p117 = por %p115, %p116
    %p118 = scmp.le.s32.totalorder 1, %s11
    %p119 = scmp.lt.s32.totalorder %s11, 5
    %p120 = pnand %p118, %p119
    %p121 = pneg %p120
    // Predicated region
    $region9: #{vae_decoder_forward.7} parent=5 // pred_check
      _
    $region10: #{vae_decoder_forward.7} parent=5 // pred_check_branch
      %123 = sbr.rel (%p120) target = $region12
    $region11: #{vae_decoder_forward.7} parent=5 // pred_region
      %s124 = ssub.s32 %s11, 1
      // Predicated region
      $region13: #{vae_decoder_forward.7} parent=11 // pred_check
        %p125 = pneg %p84
      $region14: #{vae_decoder_forward.7} parent=11 // pred_check_branch
        %127 = sbr.rel (%p125) target = $region16
      $region15: #{vae_decoder_forward.7} parent=11 // pred_region
        _
      $region16: #{vae_decoder_forward.7} parent=11 // pred_fallthru
        _
    $region12: #{vae_decoder_forward.7} parent=5 // pred_fallthru
      _
    %p128 = scmp.lt.s32.totalorder %s11, 4
    // Predicated region
    $region17: #{vae_decoder_forward.7} parent=5 // pred_check
      %p129 = pneg %p128
    $region18: #{vae_decoder_forward.7} parent=5 // pred_check_branch
      %131 = sbr.rel (%p129) target = $region20
    $region19: #{vae_decoder_forward.7} parent=5 // pred_region
      // Predicated region
      $region21: #{vae_decoder_forward.7} parent=19 // pred_check
        %p132 = pneg %p31
      $region22: #{vae_decoder_forward.7} parent=19 // pred_check_branch
        %134 = sbr.rel (%p132) target = $region24
      $region23: #{vae_decoder_forward.7} parent=19 // pred_region
        %p135 = scmp.lt.s32.totalorder %s11, 3
        %s136 = scalar_select %p135, %s11, 3
        %s137 = smul.addr %s136, 256
        %s138 = smul.addr %s137, 4
        %s139 = scalar_lea.vmem %s0, %s138
      $region24: #{vae_decoder_forward.7} parent=19 // pred_fallthru
        _
      // Predicated region
      $region25: #{vae_decoder_forward.7} parent=19 // pred_check
        %p140 = pneg %p57
      $region26: #{vae_decoder_forward.7} parent=19 // pred_check_branch
        %142 = sbr.rel (%p140) target = $region28
      $region27: #{vae_decoder_forward.7} parent=19 // pred_region
        %p143 = scmp.lt.s32.totalorder %s11, 3
        %s144 = scalar_select %p143, %s11, 3
        %s145 = smul.addr %s144, 4
        %s146 = scalar_lea.vmem %s1, %s145
      $region28: #{vae_decoder_forward.7} parent=19 // pred_fallthru
        _
    $region20: #{vae_decoder_forward.7} parent=5 // pred_fallthru
      _
    %p147 = scmp.le.s32.totalorder 1, %s11
    %p148 = scmp.lt.s32.totalorder %s11, 5
    %p149 = pnand %p147, %p148
    %p150 = pneg %p149
    // Predicated region
    $region29: #{vae_decoder_forward.7} parent=5 // pred_check
      _
    $region30: #{vae_decoder_forward.7} parent=5 // pred_check_branch
      %152 = sbr.rel (%p149) target = $region32
    $region31: #{vae_decoder_forward.7} parent=5 // pred_region
      %s153 = ssub.s32 %s11, 1
      %p154 = scmp.lt.s32.totalorder %s16, 3
      %s155 = scalar_select %p154, %s16, 3
      %s156 = smul.addr %s155, 256
      %s157 = smul.addr %s156, 4
      %s158 = scalar_lea.vmem %s0, %s157
      %p159 = pneg %p37
      %p160 = pneg %p34
      %p161 = scmp.lt.s32.totalorder %s16, 3
      %s162 = scalar_select %p161, %s16, 3
      %s163 = smul.addr %s162, 4
      %s164 = scalar_lea.vmem %s1, %s163
      %p165 = pneg %p63
      %p166 = pneg %p60
      %p167 = pneg %p84
      %p168 = pneg %p81
      %p169 = pneg %p110
      %p170 = pneg %p107
      %p171 = scmp.lt.s32.totalorder %s16, 3
      %s172 = scalar_select %p171, %s16, 3
      %s173 = smul.addr %s172, 64
      %s174 = smul.addr %s173, 8
      %s175 = scalar_lea.vmem %s3, %s174
      %p176 = scmp.lt.s32.totalorder %s16, 3
      %s177 = scalar_select %p176, %s16, 3
      %s178 = smul.addr %s177, 256
      %s179 = smul.addr %s178, 4
      %s180 = scalar_lea.vmem %s0, %s179
      %p181 = scmp.lt.s32.totalorder %s16, 3
      %s182 = scalar_select %p181, %s16, 3
      %s183 = smul.addr %s182, 4
      %s184 = scalar_lea.vmem %s1, %s183
      %p185 = scmp.lt.s32.totalorder %s16, 3
      %s186 = scalar_select %p185, %s16, 3
      %s187 = smul.addr %s186, 64
      %s188 = smul.addr %s187, 8
      %s189 = scalar_lea.vmem %s3, %s188
      %v190 = vld [vmem:[%s180] sm:$0xff]
      %v191 = vld [vmem:[%s180 + $0x8] sm:$0xff]
      %v192 = vld [vmem:[%s180 + $0x10] sm:$0xff]
      %v193 = vld [vmem:[%s180 + $0x18] sm:$0xff]
      %v194 = vld [vmem:[%s180 + $0x20] sm:$0xff]
      %v195 = vld [vmem:[%s180 + $0x28] sm:$0xff]
      %v196 = vld [vmem:[%s180 + $0x30] sm:$0xff]
      %v197 = vld [vmem:[%s180 + $0x38] sm:$0xff]
      %v198 = vld [vmem:[%s180 + $0x40] sm:$0xff]
      %v199 = vld [vmem:[%s180 + $0x48] sm:$0xff]
      %v200 = vld [vmem:[%s180 + $0x50] sm:$0xff]
      %v201 = vld [vmem:[%s180 + $0x58] sm:$0xff]
      %v202 = vld [vmem:[%s180 + $0x60] sm:$0xff]
      %v203 = vld [vmem:[%s180 + $0x68] sm:$0xff]
      %v204 = vld [vmem:[%s180 + $0x70] sm:$0xff]
      %v205 = vld [vmem:[%s180 + $0x78] sm:$0xff]
      %v206 = vld [vmem:[%s180 + $0x80] sm:$0xff]
      %v207 = vld [vmem:[%s180 + $0x88] sm:$0xff]
      %v208 = vld [vmem:[%s180 + $0x90] sm:$0xff]
      %v209 = vld [vmem:[%s180 + $0x98] sm:$0xff]
      %v210 = vld [vmem:[%s180 + $0xa0] sm:$0xff]
      %v211 = vld [vmem:[%s180 + $0xa8] sm:$0xff]
      %v212 = vld [vmem:[%s180 + $0xb0] sm:$0xff]
      %v213 = vld [vmem:[%s180 + $0xb8] sm:$0xff]
      %v214 = vld [vmem:[%s180 + $0xc0] sm:$0xff]
      %v215 = vld [vmem:[%s180 + $0xc8] sm:$0xff]
      %v216 = vld [vmem:[%s180 + $0xd0] sm:$0xff]
      %v217 = vld [vmem:[%s180 + $0xd8] sm:$0xff]
      %v218 = vld [vmem:[%s180 + $0xe0] sm:$0xff]
      %v219 = vld [vmem:[%s180 + $0xe8] sm:$0xff]
      %v220 = vld [vmem:[%s180 + $0xf0] sm:$0xff]
      %v221 = vld [vmem:[%s180 + $0xf8] sm:$0xff]
      %v222 = vld [vmem:[%s180 + $0x100] sm:$0xff]
      %v223 = vld [vmem:[%s180 + $0x108] sm:$0xff]
      %v224 = vld [vmem:[%s180 + $0x110] sm:$0xff]
      %v225 = vld [vmem:[%s180 + $0x118] sm:$0xff]
      %v226 = vld [vmem:[%s180 + $0x120] sm:$0xff]
      %v227 = vld [vmem:[%s180 + $0x128] sm:$0xff]
      %v228 = vld [vmem:[%s180 + $0x130] sm:$0xff]
      %v229 = vld [vmem:[%s180 + $0x138] sm:$0xff]
      %v230 = vld [vmem:[%s180 + $0x140] sm:$0xff]
      %v231 = vld [vmem:[%s180 + $0x148] sm:$0xff]
      %v232 = vld [vmem:[%s180 + $0x150] sm:$0xff]
      %v233 = vld [vmem:[%s180 + $0x158] sm:$0xff]
      %v234 = vld [vmem:[%s180 + $0x160] sm:$0xff]
      %v235 = vld [vmem:[%s180 + $0x168] sm:$0xff]
      %v236 = vld [vmem:[%s180 + $0x170] sm:$0xff]
      %v237 = vld [vmem:[%s180 + $0x178] sm:$0xff]
      %v238 = vld [vmem:[%s180 + $0x180] sm:$0xff]
      %v239 = vld [vmem:[%s180 + $0x188] sm:$0xff]
      %v240 = vld [vmem:[%s180 + $0x190] sm:$0xff]
      %v241 = vld [vmem:[%s180 + $0x198] sm:$0xff]
      %v242 = vld [vmem:[%s180 + $0x1a0] sm:$0xff]
      %v243 = vld [vmem:[%s180 + $0x1a8] sm:$0xff]
      %v244 = vld [vmem:[%s180 + $0x1b0] sm:$0xff]
      %v245 = vld [vmem:[%s180 + $0x1b8] sm:$0xff]
      %v246 = vld [vmem:[%s180 + $0x1c0] sm:$0xff]
      %v247 = vld [vmem:[%s180 + $0x1c8] sm:$0xff]
      %v248 = vld [vmem:[%s180 + $0x1d0] sm:$0xff]
      %v249 = vld [vmem:[%s180 + $0x1d8] sm:$0xff]
      %v250 = vld [vmem:[%s180 + $0x1e0] sm:$0xff]
      %v251 = vld [vmem:[%s180 + $0x1e8] sm:$0xff]
      %v252 = vld [vmem:[%s180 + $0x1f0] sm:$0xff]
      %v253 = vld [vmem:[%s180 + $0x1f8] sm:$0xff]
      %v254 = vld [vmem:[%s180 + $0x200] sm:$0xff]
      %v255 = vld [vmem:[%s180 + $0x208] sm:$0xff]
      %v256 = vld [vmem:[%s180 + $0x210] sm:$0xff]
      %v257 = vld [vmem:[%s180 + $0x218] sm:$0xff]
      %v258 = vld [vmem:[%s180 + $0x220] sm:$0xff]
      %v259 = vld [vmem:[%s180 + $0x228] sm:$0xff]
      %v260 = vld [vmem:[%s180 + $0x230] sm:$0xff]
      %v261 = vld [vmem:[%s180 + $0x238] sm:$0xff]
      %v262 = vld [vmem:[%s180 + $0x240] sm:$0xff]
      %v263 = vld [vmem:[%s180 + $0x248] sm:$0xff]
      %v264 = vld [vmem:[%s180 + $0x250] sm:$0xff]
      %v265 = vld [vmem:[%s180 + $0x258] sm:$0xff]
      %v266 = vld [vmem:[%s180 + $0x260] sm:$0xff]
      %v267 = vld [vmem:[%s180 + $0x268] sm:$0xff]
      %v268 = vld [vmem:[%s180 + $0x270] sm:$0xff]
      %v269 = vld [vmem:[%s180 + $0x278] sm:$0xff]
      %v270 = vld [vmem:[%s180 + $0x280] sm:$0xff]
      %v271 = vld [vmem:[%s180 + $0x288] sm:$0xff]
      %v272 = vld [vmem:[%s180 + $0x290] sm:$0xff]
      %v273 = vld [vmem:[%s180 + $0x298] sm:$0xff]
      %v274 = vld [vmem:[%s180 + $0x2a0] sm:$0xff]
      %v275 = vld [vmem:[%s180 + $0x2a8] sm:$0xff]
      %v276 = vld [vmem:[%s180 + $0x2b0] sm:$0xff]
      %v277 = vld [vmem:[%s180 + $0x2b8] sm:$0xff]
      %v278 = vld [vmem:[%s180 + $0x2c0] sm:$0xff]
      %v279 = vld [vmem:[%s180 + $0x2c8] sm:$0xff]
      %v280 = vld [vmem:[%s180 + $0x2d0] sm:$0xff]
      %v281 = vld [vmem:[%s180 + $0x2d8] sm:$0xff]
      %v282 = vld [vmem:[%s180 + $0x2e0] sm:$0xff]
      %v283 = vld [vmem:[%s180 + $0x2e8] sm:$0xff]
      %v284 = vld [vmem:[%s180 + $0x2f0] sm:$0xff]
      %v285 = vld [vmem:[%s180 + $0x2f8] sm:$0xff]
      %v286 = vld [vmem:[%s180 + $0x300] sm:$0xff]
      %v287 = vld [vmem:[%s180 + $0x308] sm:$0xff]
      %v288 = vld [vmem:[%s180 + $0x310] sm:$0xff]
      %v289 = vld [vmem:[%s180 + $0x318] sm:$0xff]
      %v290 = vld [vmem:[%s180 + $0x320] sm:$0xff]
      %v291 = vld [vmem:[%s180 + $0x328] sm:$0xff]
      %v292 = vld [vmem:[%s180 + $0x330] sm:$0xff]
      %v293 = vld [vmem:[%s180 + $0x338] sm:$0xff]
      %v294 = vld [vmem:[%s180 + $0x340] sm:$0xff]
      %v295 = vld [vmem:[%s180 + $0x348] sm:$0xff]
      %v296 = vld [vmem:[%s180 + $0x350] sm:$0xff]
      %v297 = vld [vmem:[%s180 + $0x358] sm:$0xff]
      %v298 = vld [vmem:[%s180 + $0x360] sm:$0xff]
      %v299 = vld [vmem:[%s180 + $0x368] sm:$0xff]
      %v300 = vld [vmem:[%s180 + $0x370] sm:$0xff]
      %v301 = vld [vmem:[%s180 + $0x378] sm:$0xff]
      %v302 = vld [vmem:[%s180 + $0x380] sm:$0xff]
      %v303 = vld [vmem:[%s180 + $0x388] sm:$0xff]
      %v304 = vld [vmem:[%s180 + $0x390] sm:$0xff]
      %v305 = vld [vmem:[%s180 + $0x398] sm:$0xff]
      %v306 = vld [vmem:[%s180 + $0x3a0] sm:$0xff]
      %v307 = vld [vmem:[%s180 + $0x3a8] sm:$0xff]
      %v308 = vld [vmem:[%s180 + $0x3b0] sm:$0xff]
      %v309 = vld [vmem:[%s180 + $0x3b8] sm:$0xff]
      %v310 = vld [vmem:[%s180 + $0x3c0] sm:$0xff]
      %v311 = vld [vmem:[%s180 + $0x3c8] sm:$0xff]
      %v312 = vld [vmem:[%s180 + $0x3d0] sm:$0xff]
      %v313 = vld [vmem:[%s180 + $0x3d8] sm:$0xff]
      %v314 = vld [vmem:[%s180 + $0x3e0] sm:$0xff]
      %v315 = vld [vmem:[%s180 + $0x3e8] sm:$0xff]
      %v316 = vld [vmem:[%s180 + $0x3f0] sm:$0xff]
      %v317 = vld [vmem:[%s180 + $0x3f8] sm:$0xff]
      %v318 = vunpack.c.l.bf16 %v190
      %v319 = vunpack.c.h.bf16 %v190
      %v320 = vunpack.c.l.bf16 %v191
      %v321 = vunpack.c.h.bf16 %v191
      %v322 = vunpack.c.l.bf16 %v192
      %v323 = vunpack.c.h.bf16 %v192
      %v324 = vunpack.c.l.bf16 %v193
      %v325 = vunpack.c.h.bf16 %v193
      %v326 = vunpack.c.l.bf16 %v194
      %v327 = vunpack.c.h.bf16 %v194
      %v328 = vunpack.c.l.bf16 %v195
      %v329 = vunpack.c.h.bf16 %v195
      %v330 = vunpack.c.l.bf16 %v196
      %v331 = vunpack.c.h.bf16 %v196
      %v332 = vunpack.c.l.bf16 %v197
      %v333 = vunpack.c.h.bf16 %v197
      %v334 = vunpack.c.l.bf16 %v198
      %v335 = vunpack.c.h.bf16 %v198
      %v336 = vunpack.c.l.bf16 %v199
      %v337 = vunpack.c.h.bf16 %v199
      %v338 = vunpack.c.l.bf16 %v200
      %v339 = vunpack.c.h.bf16 %v200
      %v340 = vunpack.c.l.bf16 %v201
      %v341 = vunpack.c.h.bf16 %v201
      %v342 = vunpack.c.l.bf16 %v202
      %v343 = vunpack.c.h.bf16 %v202
      %v344 = vunpack.c.l.bf16 %v203
      %v345 = vunpack.c.h.bf16 %v203
      %v346 = vunpack.c.l.bf16 %v204
      %v347 = vunpack.c.h.bf16 %v204
      %v348 = vunpack.c.l.bf16 %v205
      %v349 = vunpack.c.h.bf16 %v205
      %v350 = vunpack.c.l.bf16 %v206
      %v351 = vunpack.c.h.bf16 %v206
      %v352 = vunpack.c.l.bf16 %v207
      %v353 = vunpack.c.h.bf16 %v207
      %v354 = vunpack.c.l.bf16 %v208
      %v355 = vunpack.c.h.bf16 %v208
      %v356 = vunpack.c.l.bf16 %v209
      %v357 = vunpack.c.h.bf16 %v209
      %v358 = vunpack.c.l.bf16 %v210
      %v359 = vunpack.c.h.bf16 %v210
      %v360 = vunpack.c.l.bf16 %v211
      %v361 = vunpack.c.h.bf16 %v211
      %v362 = vunpack.c.l.bf16 %v212
      %v363 = vunpack.c.h.bf16 %v212
      %v364 = vunpack.c.l.bf16 %v213
      %v365 = vunpack.c.h.bf16 %v213
      %v366 = vunpack.c.l.bf16 %v214
      %v367 = vunpack.c.h.bf16 %v214
      %v368 = vunpack.c.l.bf16 %v215
      %v369 = vunpack.c.h.bf16 %v215
      %v370 = vunpack.c.l.bf16 %v216
      %v371 = vunpack.c.h.bf16 %v216
      %v372 = vunpack.c.l.bf16 %v217
      %v373 = vunpack.c.h.bf16 %v217
      %v374 = vunpack.c.l.bf16 %v218
      %v375 = vunpack.c.h.bf16 %v218
      %v376 = vunpack.c.l.bf16 %v219
      %v377 = vunpack.c.h.bf16 %v219
      %v378 = vunpack.c.l.bf16 %v220
      %v379 = vunpack.c.h.bf16 %v220
      %v380 = vunpack.c.l.bf16 %v221
      %v381 = vunpack.c.h.bf16 %v221
      %v382 = vunpack.c.l.bf16 %v222
      %v383 = vunpack.c.h.bf16 %v222
      %v384 = vunpack.c.l.bf16 %v223
      %v385 = vunpack.c.h.bf16 %v223
      %v386 = vunpack.c.l.bf16 %v224
      %v387 = vunpack.c.h.bf16 %v224
      %v388 = vunpack.c.l.bf16 %v225
      %v389 = vunpack.c.h.bf16 %v225
      %v390 = vunpack.c.l.bf16 %v226
      %v391 = vunpack.c.h.bf16 %v226
      %v392 = vunpack.c.l.bf16 %v227
      %v393 = vunpack.c.h.bf16 %v227
      %v394 = vunpack.c.l.bf16 %v228
      %v395 = vunpack.c.h.bf16 %v228
      %v396 = vunpack.c.l.bf16 %v229
      %v397 = vunpack.c.h.bf16 %v229
      %v398 = vunpack.c.l.bf16 %v230
      %v399 = vunpack.c.h.bf16 %v230
      %v400 = vunpack.c.l.bf16 %v231
      %v401 = vunpack.c.h.bf16 %v231
      %v402 = vunpack.c.l.bf16 %v232
      %v403 = vunpack.c.h.bf16 %v232
      %v404 = vunpack.c.l.bf16 %v233
      %v405 = vunpack.c.h.bf16 %v233
      %v406 = vunpack.c.l.bf16 %v234
      %v407 = vunpack.c.h.bf16 %v234
      %v408 = vunpack.c.l.bf16 %v235
      %v409 = vunpack.c.h.bf16 %v235
      %v410 = vunpack.c.l.bf16 %v236
      %v411 = vunpack.c.h.bf16 %v236
      %v412 = vunpack.c.l.bf16 %v237
      %v413 = vunpack.c.h.bf16 %v237
      %v414 = vunpack.c.l.bf16 %v238
      %v415 = vunpack.c.h.bf16 %v238
      %v416 = vunpack.c.l.bf16 %v239
      %v417 = vunpack.c.h.bf16 %v239
      %v418 = vunpack.c.l.bf16 %v240
      %v419 = vunpack.c.h.bf16 %v240
      %v420 = vunpack.c.l.bf16 %v241
      %v421 = vunpack.c.h.bf16 %v241
      %v422 = vunpack.c.l.bf16 %v242
      %v423 = vunpack.c.h.bf16 %v242
      %v424 = vunpack.c.l.bf16 %v243
      %v425 = vunpack.c.h.bf16 %v243
      %v426 = vunpack.c.l.bf16 %v244
      %v427 = vunpack.c.h.bf16 %v244
      %v428 = vunpack.c.l.bf16 %v245
      %v429 = vunpack.c.h.bf16 %v245
      %v430 = vunpack.c.l.bf16 %v246
      %v431 = vunpack.c.h.bf16 %v246
      %v432 = vunpack.c.l.bf16 %v247
      %v433 = vunpack.c.h.bf16 %v247
      %v434 = vunpack.c.l.bf16 %v248
      %v435 = vunpack.c.h.bf16 %v248
      %v436 = vunpack.c.l.bf16 %v249
      %v437 = vunpack.c.h.bf16 %v249
      %v438 = vunpack.c.l.bf16 %v250
      %v439 = vunpack.c.h.bf16 %v250
      %v440 = vunpack.c.l.bf16 %v251
      %v441 = vunpack.c.h.bf16 %v251
      %v442 = vunpack.c.l.bf16 %v252
      %v443 = vunpack.c.h.bf16 %v252
      %v444 = vunpack.c.l.bf16 %v253
      %v445 = vunpack.c.h.bf16 %v253
      %v446 = vunpack.c.l.bf16 %v254
      %v447 = vunpack.c.h.bf16 %v254
      %v448 = vunpack.c.l.bf16 %v255
      %v449 = vunpack.c.h.bf16 %v255
      %v450 = vunpack.c.l.bf16 %v256
      %v451 = vunpack.c.h.bf16 %v256
      %v452 = vunpack.c.l.bf16 %v257
      %v453 = vunpack.c.h.bf16 %v257
      %v454 = vunpack.c.l.bf16 %v258
      %v455 = vunpack.c.h.bf16 %v258
      %v456 = vunpack.c.l.bf16 %v259
      %v457 = vunpack.c.h.bf16 %v259
      %v458 = vunpack.c.l.bf16 %v260
      %v459 = vunpack.c.h.bf16 %v260
      %v460 = vunpack.c.l.bf16 %v261
      %v461 = vunpack.c.h.bf16 %v261
      %v462 = vunpack.c.l.bf16 %v262
      %v463 = vunpack.c.h.bf16 %v262
      %v464 = vunpack.c.l.bf16 %v263
      %v465 = vunpack.c.h.bf16 %v263
      %v466 = vunpack.c.l.bf16 %v264
      %v467 = vunpack.c.h.bf16 %v264
      %v468 = vunpack.c.l.bf16 %v265
      %v469 = vunpack.c.h.bf16 %v265
      %v470 = vunpack.c.l.bf16 %v266
      %v471 = vunpack.c.h.bf16 %v266
      %v472 = vunpack.c.l.bf16 %v267
      %v473 = vunpack.c.h.bf16 %v267
      %v474 = vunpack.c.l.bf16 %v268
      %v475 = vunpack.c.h.bf16 %v268
      %v476 = vunpack.c.l.bf16 %v269
      %v477 = vunpack.c.h.bf16 %v269
      %v478 = vunpack.c.l.bf16 %v270
      %v479 = vunpack.c.h.bf16 %v270
      %v480 = vunpack.c.l.bf16 %v271
      %v481 = vunpack.c.h.bf16 %v271
      %v482 = vunpack.c.l.bf16 %v272
      %v483 = vunpack.c.h.bf16 %v272
      %v484 = vunpack.c.l.bf16 %v273
      %v485 = vunpack.c.h.bf16 %v273
      %v486 = vunpack.c.l.bf16 %v274
      %v487 = vunpack.c.h.bf16 %v274
      %v488 = vunpack.c.l.bf16 %v275
      %v489 = vunpack.c.h.bf16 %v275
      %v490 = vunpack.c.l.bf16 %v276
      %v491 = vunpack.c.h.bf16 %v276
      %v492 = vunpack.c.l.bf16 %v277
      %v493 = vunpack.c.h.bf16 %v277
      %v494 = vunpack.c.l.bf16 %v278
      %v495 = vunpack.c.h.bf16 %v278
      %v496 = vunpack.c.l.bf16 %v279
      %v497 = vunpack.c.h.bf16 %v279
      %v498 = vunpack.c.l.bf16 %v280
      %v499 = vunpack.c.h.bf16 %v280
      %v500 = vunpack.c.l.bf16 %v281
      %v501 = vunpack.c.h.bf16 %v281
      %v502 = vunpack.c.l.bf16 %v282
      %v503 = vunpack.c.h.bf16 %v282
      %v504 = vunpack.c.l.bf16 %v283
      %v505 = vunpack.c.h.bf16 %v283
      %v506 = vunpack.c.l.bf16 %v284
      %v507 = vunpack.c.h.bf16 %v284
      %v508 = vunpack.c.l.bf16 %v285
      %v509 = vunpack.c.h.bf16 %v285
      %v510 = vunpack.c.l.bf16 %v286
      %v511 = vunpack.c.h.bf16 %v286
      %v512 = vunpack.c.l.bf16 %v287
      %v513 = vunpack.c.h.bf16 %v287
      %v514 = vunpack.c.l.bf16 %v288
      %v515 = vunpack.c.h.bf16 %v288
      %v516 = vunpack.c.l.bf16 %v289
      %v517 = vunpack.c.h.bf16 %v289
      %v518 = vunpack.c.l.bf16 %v290
      %v519 = vunpack.c.h.bf16 %v290
      %v520 = vunpack.c.l.bf16 %v291
      %v521 = vunpack.c.h.bf16 %v291
      %v522 = vunpack.c.l.bf16 %v292
      %v523 = vunpack.c.h.bf16 %v292
      %v524 = vunpack.c.l.bf16 %v293
      %v525 = vunpack.c.h.bf16 %v293
      %v526 = vunpack.c.l.bf16 %v294
      %v527 = vunpack.c.h.bf16 %v294
      %v528 = vunpack.c.l.bf16 %v295
      %v529 = vunpack.c.h.bf16 %v295
      %v530 = vunpack.c.l.bf16 %v296
      %v531 = vunpack.c.h.bf16 %v296
      %v532 = vunpack.c.l.bf16 %v297
      %v533 = vunpack.c.h.bf16 %v297
      %v534 = vunpack.c.l.bf16 %v298
      %v535 = vunpack.c.h.bf16 %v298
      %v536 = vunpack.c.l.bf16 %v299
      %v537 = vunpack.c.h.bf16 %v299
      %v538 = vunpack.c.l.bf16 %v300
      %v539 = vunpack.c.h.bf16 %v300
      %v540 = vunpack.c.l.bf16 %v301
      %v541 = vunpack.c.h.bf16 %v301
      %v542 = vunpack.c.l.bf16 %v302
      %v543 = vunpack.c.h.bf16 %v302
      %v544 = vunpack.c.l.bf16 %v303
      %v545 = vunpack.c.h.bf16 %v303
      %v546 = vunpack.c.l.bf16 %v304
      %v547 = vunpack.c.h.bf16 %v304
      %v548 = vunpack.c.l.bf16 %v305
      %v549 = vunpack.c.h.bf16 %v305
      %v550 = vunpack.c.l.bf16 %v306
      %v551 = vunpack.c.h.bf16 %v306
      %v552 = vunpack.c.l.bf16 %v307
      %v553 = vunpack.c.h.bf16 %v307
      %v554 = vunpack.c.l.bf16 %v308
      %v555 = vunpack.c.h.bf16 %v308
      %v556 = vunpack.c.l.bf16 %v309
      %v557 = vunpack.c.h.bf16 %v309
      %v558 = vunpack.c.l.bf16 %v310
      %v559 = vunpack.c.h.bf16 %v310
      %v560 = vunpack.c.l.bf16 %v311
      %v561 = vunpack.c.h.bf16 %v311
      %v562 = vunpack.c.l.bf16 %v312
      %v563 = vunpack.c.h.bf16 %v312
      %v564 = vunpack.c.l.bf16 %v313
      %v565 = vunpack.c.h.bf16 %v313
      %v566 = vunpack.c.l.bf16 %v314
      %v567 = vunpack.c.h.bf16 %v314
      %v568 = vunpack.c.l.bf16 %v315
      %v569 = vunpack.c.h.bf16 %v315
      %v570 = vunpack.c.l.bf16 %v316
      %v571 = vunpack.c.h.bf16 %v316
      %v572 = vunpack.c.l.bf16 %v317
      %v573 = vunpack.c.h.bf16 %v317
      %v574 = vld [vmem:[%s184] sm:$0xf]
      %v576 = vlaneseq
      %v577 = vshrl.u32 %v576, 7
      %v578 = vsub.s32 0, %v577
      %v579 = vrot.slane %v574, %v578
      %v580 = vlaneseq
      %v581 = vshrl.u32 %v580, 7
      %v582 = vsub.s32 1, %v581
      %v583 = vrot.slane %v574, %v582
      %v584 = vlaneseq
      %v585 = vshrl.u32 %v584, 7
      %v586 = vsub.s32 2, %v585
      %v587 = vrot.slane %v574, %v586
      %v588 = vlaneseq
      %v589 = vshrl.u32 %v588, 7
      %v590 = vsub.s32 3, %v589
      %v591 = vrot.slane %v574, %v590
      %v596 = vmul.f32 %v318, %v579
      %v597 = vmul.f32 %v319, %v583
      %v598 = vmul.f32 %v320, %v587
      %v599 = vmul.f32 %v321, %v591
      %v600 = vmul.f32 %v322, %v579
      %v601 = vmul.f32 %v323, %v583
      %v602 = vmul.f32 %v324, %v587
      %v603 = vmul.f32 %v325, %v591
      %v604 = vmul.f32 %v326, %v579
      %v605 = vmul.f32 %v327, %v583
      %v606 = vmul.f32 %v328, %v587
      %v607 = vmul.f32 %v329, %v591
      %v608 = vmul.f32 %v330, %v579
      %v609 = vmul.f32 %v331, %v583
      %v610 = vmul.f32 %v332, %v587
      %v611 = vmul.f32 %v333, %v591
      %v612 = vmul.f32 %v334, %v579
      %v613 = vmul.f32 %v335, %v583
      %v614 = vmul.f32 %v336, %v587
      %v615 = vmul.f32 %v337, %v591
      %v616 = vmul.f32 %v338, %v579
      %v617 = vmul.f32 %v339, %v583
      %v618 = vmul.f32 %v340, %v587
      %v619 = vmul.f32 %v341, %v591
      %v620 = vmul.f32 %v342, %v579
      %v621 = vmul.f32 %v343, %v583
      %v622 = vmul.f32 %v344, %v587
      %v623 = vmul.f32 %v345, %v591
      %v624 = vmul.f32 %v346, %v579
      %v625 = vmul.f32 %v347, %v583
      %v626 = vmul.f32 %v348, %v587
      %v627 = vmul.f32 %v349, %v591
      %v628 = vmul.f32 %v350, %v579
      %v629 = vmul.f32 %v351, %v583
      %v630 = vmul.f32 %v352, %v587
      %v631 = vmul.f32 %v353, %v591
      %v632 = vmul.f32 %v354, %v579
      %v633 = vmul.f32 %v355, %v583
      %v634 = vmul.f32 %v356, %v587
      %v635 = vmul.f32 %v357, %v591
      %v636 = vmul.f32 %v358, %v579
      %v637 = vmul.f32 %v359, %v583
      %v638 = vmul.f32 %v360, %v587
      %v639 = vmul.f32 %v361, %v591
      %v640 = vmul.f32 %v362, %v579
      %v641 = vmul.f32 %v363, %v583
      %v642 = vmul.f32 %v364, %v587
      %v643 = vmul.f32 %v365, %v591
      %v644 = vmul.f32 %v366, %v579
      %v645 = vmul.f32 %v367, %v583
      %v646 = vmul.f32 %v368, %v587
      %v647 = vmul.f32 %v369, %v591
      %v648 = vmul.f32 %v370, %v579
      %v649 = vmul.f32 %v371, %v583
      %v650 = vmul.f32 %v372, %v587
      %v651 = vmul.f32 %v373, %v591
      %v652 = vmul.f32 %v374, %v579
      %v653 = vmul.f32 %v375, %v583
      %v654 = vmul.f32 %v376, %v587
      %v655 = vmul.f32 %v377, %v591
      %v656 = vmul.f32 %v378, %v579
      %v657 = vmul.f32 %v379, %v583
      %v658 = vmul.f32 %v380, %v587
      %v659 = vmul.f32 %v381, %v591
      %v660 = vmul.f32 %v382, %v579
      %v661 = vmul.f32 %v383, %v583
      %v662 = vmul.f32 %v384, %v587
      %v663 = vmul.f32 %v385, %v591
      %v664 = vmul.f32 %v386, %v579
      %v665 = vmul.f32 %v387, %v583
      %v666 = vmul.f32 %v388, %v587
      %v667 = vmul.f32 %v389, %v591
      %v668 = vmul.f32 %v390, %v579
      %v669 = vmul.f32 %v391, %v583
      %v670 = vmul.f32 %v392, %v587
      %v671 = vmul.f32 %v393, %v591
      %v672 = vmul.f32 %v394, %v579
      %v673 = vmul.f32 %v395, %v583
      %v674 = vmul.f32 %v396, %v587
      %v675 = vmul.f32 %v397, %v591
      %v676 = vmul.f32 %v398, %v579
      %v677 = vmul.f32 %v399, %v583
      %v678 = vmul.f32 %v400, %v587
      %v679 = vmul.f32 %v401, %v591
      %v680 = vmul.f32 %v402, %v579
      %v681 = vmul.f32 %v403, %v583
      %v682 = vmul.f32 %v404, %v587
      %v683 = vmul.f32 %v405, %v591
      %v684 = vmul.f32 %v406, %v579
      %v685 = vmul.f32 %v407, %v583
      %v686 = vmul.f32 %v408, %v587
      %v687 = vmul.f32 %v409, %v591
      %v688 = vmul.f32 %v410, %v579
      %v689 = vmul.f32 %v411, %v583
      %v690 = vmul.f32 %v412, %v587
      %v691 = vmul.f32 %v413, %v591
      %v692 = vmul.f32 %v414, %v579
      %v693 = vmul.f32 %v415, %v583
      %v694 = vmul.f32 %v416, %v587
      %v695 = vmul.f32 %v417, %v591
      %v696 = vmul.f32 %v418, %v579
      %v697 = vmul.f32 %v419, %v583
      %v698 = vmul.f32 %v420, %v587
      %v699 = vmul.f32 %v421, %v591
      %v700 = vmul.f32 %v422, %v579
      %v701 = vmul.f32 %v423, %v583
      %v702 = vmul.f32 %v424, %v587
      %v703 = vmul.f32 %v425, %v591
      %v704 = vmul.f32 %v426, %v579
      %v705 = vmul.f32 %v427, %v583
      %v706 = vmul.f32 %v428, %v587
      %v707 = vmul.f32 %v429, %v591
      %v708 = vmul.f32 %v430, %v579
      %v709 = vmul.f32 %v431, %v583
      %v710 = vmul.f32 %v432, %v587
      %v711 = vmul.f32 %v433, %v591
      %v712 = vmul.f32 %v434, %v579
      %v713 = vmul.f32 %v435, %v583
      %v714 = vmul.f32 %v436, %v587
      %v715 = vmul.f32 %v437, %v591
      %v716 = vmul.f32 %v438, %v579
      %v717 = vmul.f32 %v439, %v583
      %v718 = vmul.f32 %v440, %v587
      %v719 = vmul.f32 %v441, %v591
      %v720 = vmul.f32 %v442, %v579
      %v721 = vmul.f32 %v443, %v583
      %v722 = vmul.f32 %v444, %v587
      %v723 = vmul.f32 %v445, %v591
      %v724 = vmul.f32 %v446, %v579
      %v725 = vmul.f32 %v447, %v583
      %v726 = vmul.f32 %v448, %v587
      %v727 = vmul.f32 %v449, %v591
      %v728 = vmul.f32 %v450, %v579
      %v729 = vmul.f32 %v451, %v583
      %v730 = vmul.f32 %v452, %v587
      %v731 = vmul.f32 %v453, %v591
      %v732 = vmul.f32 %v454, %v579
      %v733 = vmul.f32 %v455, %v583
      %v734 = vmul.f32 %v456, %v587
      %v735 = vmul.f32 %v457, %v591
      %v736 = vmul.f32 %v458, %v579
      %v737 = vmul.f32 %v459, %v583
      %v738 = vmul.f32 %v460, %v587
      %v739 = vmul.f32 %v461, %v591
      %v740 = vmul.f32 %v462, %v579
      %v741 = vmul.f32 %v463, %v583
      %v742 = vmul.f32 %v464, %v587
      %v743 = vmul.f32 %v465, %v591
      %v744 = vmul.f32 %v466, %v579
      %v745 = vmul.f32 %v467, %v583
      %v746 = vmul.f32 %v468, %v587
      %v747 = vmul.f32 %v469, %v591
      %v748 = vmul.f32 %v470, %v579
      %v749 = vmul.f32 %v471, %v583
      %v750 = vmul.f32 %v472, %v587
      %v751 = vmul.f32 %v473, %v591
      %v752 = vmul.f32 %v474, %v579
      %v753 = vmul.f32 %v475, %v583
      %v754 = vmul.f32 %v476, %v587
      %v755 = vmul.f32 %v477, %v591
      %v756 = vmul.f32 %v478, %v579
      %v757 = vmul.f32 %v479, %v583
      %v758 = vmul.f32 %v480, %v587
      %v759 = vmul.f32 %v481, %v591
      %v760 = vmul.f32 %v482, %v579
      %v761 = vmul.f32 %v483, %v583
      %v762 = vmul.f32 %v484, %v587
      %v763 = vmul.f32 %v485, %v591
      %v764 = vmul.f32 %v486, %v579
      %v765 = vmul.f32 %v487, %v583
      %v766 = vmul.f32 %v488, %v587
      %v767 = vmul.f32 %v489, %v591
      %v768 = vmul.f32 %v490, %v579
      %v769 = vmul.f32 %v491, %v583
      %v770 = vmul.f32 %v492, %v587
      %v771 = vmul.f32 %v493, %v591
      %v772 = vmul.f32 %v494, %v579
      %v773 = vmul.f32 %v495, %v583
      %v774 = vmul.f32 %v496, %v587
      %v775 = vmul.f32 %v497, %v591
      %v776 = vmul.f32 %v498, %v579
      %v777 = vmul.f32 %v499, %v583
      %v778 = vmul.f32 %v500, %v587
      %v779 = vmul.f32 %v501, %v591
      %v780 = vmul.f32 %v502, %v579
      %v781 = vmul.f32 %v503, %v583
      %v782 = vmul.f32 %v504, %v587
      %v783 = vmul.f32 %v505, %v591
      %v784 = vmul.f32 %v506, %v579
      %v785 = vmul.f32 %v507, %v583
      %v786 = vmul.f32 %v508, %v587
      %v787 = vmul.f32 %v509, %v591
      %v788 = vmul.f32 %v510, %v579
      %v789 = vmul.f32 %v511, %v583
      %v790 = vmul.f32 %v512, %v587
      %v791 = vmul.f32 %v513, %v591
      %v792 = vmul.f32 %v514, %v579
      %v793 = vmul.f32 %v515, %v583
      %v794 = vmul.f32 %v516, %v587
      %v795 = vmul.f32 %v517, %v591
      %v796 = vmul.f32 %v518, %v579
      %v797 = vmul.f32 %v519, %v583
      %v798 = vmul.f32 %v520, %v587
      %v799 = vmul.f32 %v521, %v591
      %v800 = vmul.f32 %v522, %v579
      %v801 = vmul.f32 %v523, %v583
      %v802 = vmul.f32 %v524, %v587
      %v803 = vmul.f32 %v525, %v591
      %v804 = vmul.f32 %v526, %v579
      %v805 = vmul.f32 %v527, %v583
      %v806 = vmul.f32 %v528, %v587
      %v807 = vmul.f32 %v529, %v591
      %v808 = vmul.f32 %v530, %v579
      %v809 = vmul.f32 %v531, %v583
      %v810 = vmul.f32 %v532, %v587
      %v811 = vmul.f32 %v533, %v591
      %v812 = vmul.f32 %v534, %v579
      %v813 = vmul.f32 %v535, %v583
      %v814 = vmul.f32 %v536, %v587
      %v815 = vmul.f32 %v537, %v591
      %v816 = vmul.f32 %v538, %v579
      %v817 = vmul.f32 %v539, %v583
      %v818 = vmul.f32 %v540, %v587
      %v819 = vmul.f32 %v541, %v591
      %v820 = vmul.f32 %v542, %v579
      %v821 = vmul.f32 %v543, %v583
      %v822 = vmul.f32 %v544, %v587
      %v823 = vmul.f32 %v545, %v591
      %v824 = vmul.f32 %v546, %v579
      %v825 = vmul.f32 %v547, %v583
      %v826 = vmul.f32 %v548, %v587
      %v827 = vmul.f32 %v549, %v591
      %v828 = vmul.f32 %v550, %v579
      %v829 = vmul.f32 %v551, %v583
      %v830 = vmul.f32 %v552, %v587
      %v831 = vmul.f32 %v553, %v591
      %v832 = vmul.f32 %v554, %v579
      %v833 = vmul.f32 %v555, %v583
      %v834 = vmul.f32 %v556, %v587
      %v835 = vmul.f32 %v557, %v591
      %v836 = vmul.f32 %v558, %v579
      %v837 = vmul.f32 %v559, %v583
      %v838 = vmul.f32 %v560, %v587
      %v839 = vmul.f32 %v561, %v591
      %v840 = vmul.f32 %v562, %v579
      %v841 = vmul.f32 %v563, %v583
      %v842 = vmul.f32 %v564, %v587
      %v843 = vmul.f32 %v565, %v591
      %v844 = vmul.f32 %v566, %v579
      %v845 = vmul.f32 %v567, %v583
      %v846 = vmul.f32 %v568, %v587
      %v847 = vmul.f32 %v569, %v591
      %v848 = vmul.f32 %v570, %v579
      %v849 = vmul.f32 %v571, %v583
      %v850 = vmul.f32 %v572, %v587
      %v851 = vmul.f32 %v573, %v591
      %v852 = vadd.f32 %v596, %v597
      %v853 = vadd.f32 %v852, %v598
      %v854 = vadd.f32 %v853, %v599
      %855 = vadd.xlane.f32.xlu0 %v854
      %v856 = vpop.xlane.xlu0 %855
      %v857 = vadd.f32 %v600, %v601
      %v858 = vadd.f32 %v857, %v602
      %v859 = vadd.f32 %v858, %v603
      %860 = vadd.xlane.f32.xlu0 %v859
      %v861 = vpop.xlane.xlu0 %860
      %v862 = vadd.f32 %v604, %v605
      %v863 = vadd.f32 %v862, %v606
      %v864 = vadd.f32 %v863, %v607
      %865 = vadd.xlane.f32.xlu0 %v864
      %v866 = vpop.xlane.xlu0 %865
      %v867 = vadd.f32 %v608, %v609
      %v868 = vadd.f32 %v867, %v610
      %v869 = vadd.f32 %v868, %v611
      %870 = vadd.xlane.f32.xlu0 %v869
      %v871 = vpop.xlane.xlu0 %870
      %v872 = vadd.f32 %v612, %v613
      %v873 = vadd.f32 %v872, %v614
      %v874 = vadd.f32 %v873, %v615
      %875 = vadd.xlane.f32.xlu0 %v874
      %v876 = vpop.xlane.xlu0 %875
      %v877 = vadd.f32 %v616, %v617
      %v878 = vadd.f32 %v877, %v618
      %v879 = vadd.f32 %v878, %v619
      %880 = vadd.xlane.f32.xlu0 %v879
      %v881 = vpop.xlane.xlu0 %880
      %v882 = vadd.f32 %v620, %v621
      %v883 = vadd.f32 %v882, %v622
      %v884 = vadd.f32 %v883, %v623
      %885 = vadd.xlane.f32.xlu0 %v884
      %v886 = vpop.xlane.xlu0 %885
      %v887 = vadd.f32 %v624, %v625
      %v888 = vadd.f32 %v887, %v626
      %v889 = vadd.f32 %v888, %v627
      %890 = vadd.xlane.f32.xlu0 %v889
      %v891 = vpop.xlane.xlu0 %890
      %v892 = vadd.f32 %v628, %v629
      %v893 = vadd.f32 %v892, %v630
      %v894 = vadd.f32 %v893, %v631
      %895 = vadd.xlane.f32.xlu0 %v894
      %v896 = vpop.xlane.xlu0 %895
      %v897 = vadd.f32 %v632, %v633
      %v898 = vadd.f32 %v897, %v634
      %v899 = vadd.f32 %v898, %v635
      %900 = vadd.xlane.f32.xlu0 %v899
      %v901 = vpop.xlane.xlu0 %900
      %v902 = vadd.f32 %v636, %v637
      %v903 = vadd.f32 %v902, %v638
      %v904 = vadd.f32 %v903, %v639
      %905 = vadd.xlane.f32.xlu0 %v904
      %v906 = vpop.xlane.xlu0 %905
      %v907 = vadd.f32 %v640, %v641
      %v908 = vadd.f32 %v907, %v642
      %v909 = vadd.f32 %v908, %v643
      %910 = vadd.xlane.f32.xlu0 %v909
      %v911 = vpop.xlane.xlu0 %910
      %v912 = vadd.f32 %v644, %v645
      %v913 = vadd.f32 %v912, %v646
      %v914 = vadd.f32 %v913, %v647
      %915 = vadd.xlane.f32.xlu0 %v914
      %v916 = vpop.xlane.xlu0 %915
      %v917 = vadd.f32 %v648, %v649
      %v918 = vadd.f32 %v917, %v650
      %v919 = vadd.f32 %v918, %v651
      %920 = vadd.xlane.f32.xlu0 %v919
      %v921 = vpop.xlane.xlu0 %920
      %v922 = vadd.f32 %v652, %v653
      %v923 = vadd.f32 %v922, %v654
      %v924 = vadd.f32 %v923, %v655
      %925 = vadd.xlane.f32.xlu0 %v924
      %v926 = vpop.xlane.xlu0 %925
      %v927 = vadd.f32 %v656, %v657
      %v928 = vadd.f32 %v927, %v658
      %v929 = vadd.f32 %v928, %v659
      %930 = vadd.xlane.f32.xlu0 %v929
      %v931 = vpop.xlane.xlu0 %930
      %v932 = vadd.f32 %v660, %v661
      %v933 = vadd.f32 %v932, %v662
      %v934 = vadd.f32 %v933, %v663
      %935 = vadd.xlane.f32.xlu0 %v934
      %v936 = vpop.xlane.xlu0 %935
      %v937 = vadd.f32 %v664, %v665
      %v938 = vadd.f32 %v937, %v666
      %v939 = vadd.f32 %v938, %v667
      %940 = vadd.xlane.f32.xlu0 %v939
      %v941 = vpop.xlane.xlu0 %940
      %v942 = vadd.f32 %v668, %v669
      %v943 = vadd.f32 %v942, %v670
      %v944 = vadd.f32 %v943, %v671
      %945 = vadd.xlane.f32.xlu0 %v944
      %v946 = vpop.xlane.xlu0 %945
      %v947 = vadd.f32 %v672, %v673
      %v948 = vadd.f32 %v947, %v674
      %v949 = vadd.f32 %v948, %v675
      %950 = vadd.xlane.f32.xlu0 %v949
      %v951 = vpop.xlane.xlu0 %950
      %v952 = vadd.f32 %v676, %v677
      %v953 = vadd.f32 %v952, %v678
      %v954 = vadd.f32 %v953, %v679
      %955 = vadd.xlane.f32.xlu0 %v954
      %v956 = vpop.xlane.xlu0 %955
      %v957 = vadd.f32 %v680, %v681
      %v958 = vadd.f32 %v957, %v682
      %v959 = vadd.f32 %v958, %v683
      %960 = vadd.xlane.f32.xlu0 %v959
      %v961 = vpop.xlane.xlu0 %960
      %v962 = vadd.f32 %v684, %v685
      %v963 = vadd.f32 %v962, %v686
      %v964 = vadd.f32 %v963, %v687
      %965 = vadd.xlane.f32.xlu0 %v964
      %v966 = vpop.xlane.xlu0 %965
      %v967 = vadd.f32 %v688, %v689
      %v968 = vadd.f32 %v967, %v690
      %v969 = vadd.f32 %v968, %v691
      %970 = vadd.xlane.f32.xlu0 %v969
      %v971 = vpop.xlane.xlu0 %970
      %v972 = vadd.f32 %v692, %v693
      %v973 = vadd.f32 %v972, %v694
      %v974 = vadd.f32 %v973, %v695
      %975 = vadd.xlane.f32.xlu0 %v974
      %v976 = vpop.xlane.xlu0 %975
      %v977 = vadd.f32 %v696, %v697
      %v978 = vadd.f32 %v977, %v698
      %v979 = vadd.f32 %v978, %v699
      %980 = vadd.xlane.f32.xlu0 %v979
      %v981 = vpop.xlane.xlu0 %980
      %v982 = vadd.f32 %v700, %v701
      %v983 = vadd.f32 %v982, %v702
      %v984 = vadd.f32 %v983, %v703
      %985 = vadd.xlane.f32.xlu0 %v984
      %v986 = vpop.xlane.xlu0 %985
      %v987 = vadd.f32 %v704, %v705
      %v988 = vadd.f32 %v987, %v706
      %v989 = vadd.f32 %v988, %v707
      %990 = vadd.xlane.f32.xlu0 %v989
      %v991 = vpop.xlane.xlu0 %990
      %v992 = vadd.f32 %v708, %v709
      %v993 = vadd.f32 %v992, %v710
      %v994 = vadd.f32 %v993, %v711
      %995 = vadd.xlane.f32.xlu0 %v994
      %v996 = vpop.xlane.xlu0 %995
      %v997 = vadd.f32 %v712, %v713
      %v998 = vadd.f32 %v997, %v714
      %v999 = vadd.f32 %v998, %v715
      %1000 = vadd.xlane.f32.xlu0 %v999
      %v1001 = vpop.xlane.xlu0 %1000
      %v1002 = vadd.f32 %v716, %v717
      %v1003 = vadd.f32 %v1002, %v718
      %v1004 = vadd.f32 %v1003, %v719
      %1005 = vadd.xlane.f32.xlu0 %v1004
      %v1006 = vpop.xlane.xlu0 %1005
      %v1007 = vadd.f32 %v720, %v721
      %v1008 = vadd.f32 %v1007, %v722
      %v1009 = vadd.f32 %v1008, %v723
      %1010 = vadd.xlane.f32.xlu0 %v1009
      %v1011 = vpop.xlane.xlu0 %1010
      %v1012 = vadd.f32 %v724, %v725
      %v1013 = vadd.f32 %v1012, %v726
      %v1014 = vadd.f32 %v1013, %v727
      %1015 = vadd.xlane.f32.xlu0 %v1014
      %v1016 = vpop.xlane.xlu0 %1015
      %v1017 = vadd.f32 %v728, %v729
      %v1018 = vadd.f32 %v1017, %v730
      %v1019 = vadd.f32 %v1018, %v731
      %1020 = vadd.xlane.f32.xlu0 %v1019
      %v1021 = vpop.xlane.xlu0 %1020
      %v1022 = vadd.f32 %v732, %v733
      %v1023 = vadd.f32 %v1022, %v734
      %v1024 = vadd.f32 %v1023, %v735
      %1025 = vadd.xlane.f32.xlu0 %v1024
      %v1026 = vpop.xlane.xlu0 %1025
      %v1027 = vadd.f32 %v736, %v737
      %v1028 = vadd.f32 %v1027, %v738
      %v1029 = vadd.f32 %v1028, %v739
      %1030 = vadd.xlane.f32.xlu0 %v1029
      %v1031 = vpop.xlane.xlu0 %1030
      %v1032 = vadd.f32 %v740, %v741
      %v1033 = vadd.f32 %v1032, %v742
      %v1034 = vadd.f32 %v1033, %v743
      %1035 = vadd.xlane.f32.xlu0 %v1034
      %v1036 = vpop.xlane.xlu0 %1035
      %v1037 = vadd.f32 %v744, %v745
      %v1038 = vadd.f32 %v1037, %v746
      %v1039 = vadd.f32 %v1038, %v747
      %1040 = vadd.xlane.f32.xlu0 %v1039
      %v1041 = vpop.xlane.xlu0 %1040
      %v1042 = vadd.f32 %v748, %v749
      %v1043 = vadd.f32 %v1042, %v750
      %v1044 = vadd.f32 %v1043, %v751
      %1045 = vadd.xlane.f32.xlu0 %v1044
      %v1046 = vpop.xlane.xlu0 %1045
      %v1047 = vadd.f32 %v752, %v753
      %v1048 = vadd.f32 %v1047, %v754
      %v1049 = vadd.f32 %v1048, %v755
      %1050 = vadd.xlane.f32.xlu0 %v1049
      %v1051 = vpop.xlane.xlu0 %1050
      %v1052 = vadd.f32 %v756, %v757
      %v1053 = vadd.f32 %v1052, %v758
      %v1054 = vadd.f32 %v1053, %v759
      %1055 = vadd.xlane.f32.xlu0 %v1054
      %v1056 = vpop.xlane.xlu0 %1055
      %v1057 = vadd.f32 %v760, %v761
      %v1058 = vadd.f32 %v1057, %v762
      %v1059 = vadd.f32 %v1058, %v763
      %1060 = vadd.xlane.f32.xlu0 %v1059
      %v1061 = vpop.xlane.xlu0 %1060
      %v1062 = vadd.f32 %v764, %v765
      %v1063 = vadd.f32 %v1062, %v766
      %v1064 = vadd.f32 %v1063, %v767
      %1065 = vadd.xlane.f32.xlu0 %v1064
      %v1066 = vpop.xlane.xlu0 %1065
      %v1067 = vadd.f32 %v768, %v769
      %v1068 = vadd.f32 %v1067, %v770
      %v1069 = vadd.f32 %v1068, %v771
      %1070 = vadd.xlane.f32.xlu0 %v1069
      %v1071 = vpop.xlane.xlu0 %1070
      %v1072 = vadd.f32 %v772, %v773
      %v1073 = vadd.f32 %v1072, %v774
      %v1074 = vadd.f32 %v1073, %v775
      %1075 = vadd.xlane.f32.xlu0 %v1074
      %v1076 = vpop.xlane.xlu0 %1075
      %v1077 = vadd.f32 %v776, %v777
      %v1078 = vadd.f32 %v1077, %v778
      %v1079 = vadd.f32 %v1078, %v779
      %1080 = vadd.xlane.f32.xlu0 %v1079
      %v1081 = vpop.xlane.xlu0 %1080
      %v1082 = vadd.f32 %v780, %v781
      %v1083 = vadd.f32 %v1082, %v782
      %v1084 = vadd.f32 %v1083, %v783
      %1085 = vadd.xlane.f32.xlu0 %v1084
      %v1086 = vpop.xlane.xlu0 %1085
      %v1087 = vadd.f32 %v784, %v785
      %v1088 = vadd.f32 %v1087, %v786
      %v1089 = vadd.f32 %v1088, %v787
      %1090 = vadd.xlane.f32.xlu0 %v1089
      %v1091 = vpop.xlane.xlu0 %1090
      %v1092 = vadd.f32 %v788, %v789
      %v1093 = vadd.f32 %v1092, %v790
      %v1094 = vadd.f32 %v1093, %v791
      %1095 = vadd.xlane.f32.xlu0 %v1094
      %v1096 = vpop.xlane.xlu0 %1095
      %v1097 = vadd.f32 %v792, %v793
      %v1098 = vadd.f32 %v1097, %v794
      %v1099 = vadd.f32 %v1098, %v795
      %1100 = vadd.xlane.f32.xlu0 %v1099
      %v1101 = vpop.xlane.xlu0 %1100
      %v1102 = vadd.f32 %v796, %v797
      %v1103 = vadd.f32 %v1102, %v798
      %v1104 = vadd.f32 %v1103, %v799
      %1105 = vadd.xlane.f32.xlu0 %v1104
      %v1106 = vpop.xlane.xlu0 %1105
      %v1107 = vadd.f32 %v800, %v801
      %v1108 = vadd.f32 %v1107, %v802
      %v1109 = vadd.f32 %v1108, %v803
      %1110 = vadd.xlane.f32.xlu0 %v1109
      %v1111 = vpop.xlane.xlu0 %1110
      %v1112 = vadd.f32 %v804, %v805
      %v1113 = vadd.f32 %v1112, %v806
      %v1114 = vadd.f32 %v1113, %v807
      %1115 = vadd.xlane.f32.xlu0 %v1114
      %v1116 = vpop.xlane.xlu0 %1115
      %v1117 = vadd.f32 %v808, %v809
      %v1118 = vadd.f32 %v1117, %v810
      %v1119 = vadd.f32 %v1118, %v811
      %1120 = vadd.xlane.f32.xlu0 %v1119
      %v1121 = vpop.xlane.xlu0 %1120
      %v1122 = vadd.f32 %v812, %v813
      %v1123 = vadd.f32 %v1122, %v814
      %v1124 = vadd.f32 %v1123, %v815
      %1125 = vadd.xlane.f32.xlu0 %v1124
      %v1126 = vpop.xlane.xlu0 %1125
      %v1127 = vadd.f32 %v816, %v817
      %v1128 = vadd.f32 %v1127, %v818
      %v1129 = vadd.f32 %v1128, %v819
      %1130 = vadd.xlane.f32.xlu0 %v1129
      %v1131 = vpop.xlane.xlu0 %1130
      %v1132 = vadd.f32 %v820, %v821
      %v1133 = vadd.f32 %v1132, %v822
      %v1134 = vadd.f32 %v1133, %v823
      %1135 = vadd.xlane.f32.xlu0 %v1134
      %v1136 = vpop.xlane.xlu0 %1135
      %v1137 = vadd.f32 %v824, %v825
      %v1138 = vadd.f32 %v1137, %v826
      %v1139 = vadd.f32 %v1138, %v827
      %1140 = vadd.xlane.f32.xlu0 %v1139
      %v1141 = vpop.xlane.xlu0 %1140
      %v1142 = vadd.f32 %v828, %v829
      %v1143 = vadd.f32 %v1142, %v830
      %v1144 = vadd.f32 %v1143, %v831
      %1145 = vadd.xlane.f32.xlu0 %v1144
      %v1146 = vpop.xlane.xlu0 %1145
      %v1147 = vadd.f32 %v832, %v833
      %v1148 = vadd.f32 %v1147, %v834
      %v1149 = vadd.f32 %v1148, %v835
      %1150 = vadd.xlane.f32.xlu0 %v1149
      %v1151 = vpop.xlane.xlu0 %1150
      %v1152 = vadd.f32 %v836, %v837
      %v1153 = vadd.f32 %v1152, %v838
      %v1154 = vadd.f32 %v1153, %v839
      %1155 = vadd.xlane.f32.xlu0 %v1154
      %v1156 = vpop.xlane.xlu0 %1155
      %v1157 = vadd.f32 %v840, %v841
      %v1158 = vadd.f32 %v1157, %v842
      %v1159 = vadd.f32 %v1158, %v843
      %1160 = vadd.xlane.f32.xlu0 %v1159
      %v1161 = vpop.xlane.xlu0 %1160
      %v1162 = vadd.f32 %v844, %v845
      %v1163 = vadd.f32 %v1162, %v846
      %v1164 = vadd.f32 %v1163, %v847
      %1165 = vadd.xlane.f32.xlu0 %v1164
      %v1166 = vpop.xlane.xlu0 %1165
      %v1167 = vadd.f32 %v848, %v849
      %v1168 = vadd.f32 %v1167, %v850
      %v1169 = vadd.f32 %v1168, %v851
      %1170 = vadd.xlane.f32.xlu0 %v1169
      %v1171 = vpop.xlane.xlu0 %1170
      %v1172 = vld [vmem:[#allocation2] sm:$0x1]
      %v1174 = vlaneseq
      %v1175 = vshrl.u32 %v1174, 7
      %v1176 = vsub.s32 0, %v1175
      %v1177 = vrot.slane %v1172, %v1176
      %v1179 = vadd.f32 %v856, %v1177
      %v1180 = vadd.f32 %v861, %v1177
      %v1181 = vadd.f32 %v866, %v1177
      %v1182 = vadd.f32 %v871, %v1177
      %v1183 = vadd.f32 %v876, %v1177
      %v1184 = vadd.f32 %v881, %v1177
      %v1185 = vadd.f32 %v886, %v1177
      %v1186 = vadd.f32 %v891, %v1177
      %v1187 = vadd.f32 %v896, %v1177
      %v1188 = vadd.f32 %v901, %v1177
      %v1189 = vadd.f32 %v906, %v1177
      %v1190 = vadd.f32 %v911, %v1177
      %v1191 = vadd.f32 %v916, %v1177
      %v1192 = vadd.f32 %v921, %v1177
      %v1193 = vadd.f32 %v926, %v1177
      %v1194 = vadd.f32 %v931, %v1177
      %v1195 = vadd.f32 %v936, %v1177
      %v1196 = vadd.f32 %v941, %v1177
      %v1197 = vadd.f32 %v946, %v1177
      %v1198 = vadd.f32 %v951, %v1177
      %v1199 = vadd.f32 %v956, %v1177
      %v1200 = vadd.f32 %v961, %v1177
      %v1201 = vadd.f32 %v966, %v1177
      %v1202 = vadd.f32 %v971, %v1177
      %v1203 = vadd.f32 %v976, %v1177
      %v1204 = vadd.f32 %v981, %v1177
      %v1205 = vadd.f32 %v986, %v1177
      %v1206 = vadd.f32 %v991, %v1177
      %v1207 = vadd.f32 %v996, %v1177
      %v1208 = vadd.f32 %v1001, %v1177
      %v1209 = vadd.f32 %v1006, %v1177
      %v1210 = vadd.f32 %v1011, %v1177
      %v1211 = vadd.f32 %v1016, %v1177
      %v1212 = vadd.f32 %v1021, %v1177
      %v1213 = vadd.f32 %v1026, %v1177
      %v1214 = vadd.f32 %v1031, %v1177
      %v1215 = vadd.f32 %v1036, %v1177
      %v1216 = vadd.f32 %v1041, %v1177
      %v1217 = vadd.f32 %v1046, %v1177
      %v1218 = vadd.f32 %v1051, %v1177
      %v1219 = vadd.f32 %v1056, %v1177
      %v1220 = vadd.f32 %v1061, %v1177
      %v1221 = vadd.f32 %v1066, %v1177
      %v1222 = vadd.f32 %v1071, %v1177
      %v1223 = vadd.f32 %v1076, %v1177
      %v1224 = vadd.f32 %v1081, %v1177
      %v1225 = vadd.f32 %v1086, %v1177
      %v1226 = vadd.f32 %v1091, %v1177
      %v1227 = vadd.f32 %v1096, %v1177
      %v1228 = vadd.f32 %v1101, %v1177
      %v1229 = vadd.f32 %v1106, %v1177
      %v1230 = vadd.f32 %v1111, %v1177
      %v1231 = vadd.f32 %v1116, %v1177
      %v1232 = vadd.f32 %v1121, %v1177
      %v1233 = vadd.f32 %v1126, %v1177
      %v1234 = vadd.f32 %v1131, %v1177
      %v1235 = vadd.f32 %v1136, %v1177
      %v1236 = vadd.f32 %v1141, %v1177
      %v1237 = vadd.f32 %v1146, %v1177
      %v1238 = vadd.f32 %v1151, %v1177
      %v1239 = vadd.f32 %v1156, %v1177
      %v1240 = vadd.f32 %v1161, %v1177
      %v1241 = vadd.f32 %v1166, %v1177
      %v1242 = vadd.f32 %v1171, %v1177
      %v1243 = vtanh.pop %v1179
      %v1244 = vtanh.pop %v1180
      %v1245 = vtanh.pop %v1181
      %v1246 = vtanh.pop %v1182
      %v1247 = vtanh.pop %v1183
      %v1248 = vtanh.pop %v1184
      %v1249 = vtanh.pop %v1185
      %v1250 = vtanh.pop %v1186
      %v1251 = vtanh.pop %v1187
      %v1252 = vtanh.pop %v1188
      %v1253 = vtanh.pop %v1189
      %v1254 = vtanh.pop %v1190
      %v1255 = vtanh.pop %v1191
      %v1256 = vtanh.pop %v1192
      %v1257 = vtanh.pop %v1193
      %v1258 = vtanh.pop %v1194
      %v1259 = vtanh.pop %v1195
      %v1260 = vtanh.pop %v1196
      %v1261 = vtanh.pop %v1197
      %v1262 = vtanh.pop %v1198
      %v1263 = vtanh.pop %v1199
      %v1264 = vtanh.pop %v1200
      %v1265 = vtanh.pop %v1201
      %v1266 = vtanh.pop %v1202
      %v1267 = vtanh.pop %v1203
      %v1268 = vtanh.pop %v1204
      %v1269 = vtanh.pop %v1205
      %v1270 = vtanh.pop %v1206
      %v1271 = vtanh.pop %v1207
      %v1272 = vtanh.pop %v1208
      %v1273 = vtanh.pop %v1209
      %v1274 = vtanh.pop %v1210
      %v1275 = vtanh.pop %v1211
      %v1276 = vtanh.pop %v1212
      %v1277 = vtanh.pop %v1213
      %v1278 = vtanh.pop %v1214
      %v1279 = vtanh.pop %v1215
      %v1280 = vtanh.pop %v1216
      %v1281 = vtanh.pop %v1217
      %v1282 = vtanh.pop %v1218
      %v1283 = vtanh.pop %v1219
      %v1284 = vtanh.pop %v1220
      %v1285 = vtanh.pop %v1221
      %v1286 = vtanh.pop %v1222
      %v1287 = vtanh.pop %v1223
      %v1288 = vtanh.pop %v1224
      %v1289 = vtanh.pop %v1225
      %v1290 = vtanh.pop %v1226
      %v1291 = vtanh.pop %v1227
      %v1292 = vtanh.pop %v1228
      %v1293 = vtanh.pop %v1229
      %v1294 = vtanh.pop %v1230
      %v1295 = vtanh.pop %v1231
      %v1296 = vtanh.pop %v1232
      %v1297 = vtanh.pop %v1233
      %v1298 = vtanh.pop %v1234
      %v1299 = vtanh.pop %v1235
      %v1300 = vtanh.pop %v1236
      %v1301 = vtanh.pop %v1237
      %v1302 = vtanh.pop %v1238
      %v1303 = vtanh.pop %v1239
      %v1304 = vtanh.pop %v1240
      %v1305 = vtanh.pop %v1241
      %v1306 = vtanh.pop %v1242
      %vm1307 = vcmask 7168
      %1308 = vst.msk [vmem:[%s189] sm:$0xff] %vm1307, %v1243
      %1309 = vst.msk [vmem:[%s189 + $0x8] sm:$0xff] %vm1307, %v1244
      %1310 = vst.msk [vmem:[%s189 + $0x10] sm:$0xff] %vm1307, %v1245
      %1311 = vst.msk [vmem:[%s189 + $0x18] sm:$0xff] %vm1307, %v1246
      %1312 = vst.msk [vmem:[%s189 + $0x20] sm:$0xff] %vm1307, %v1247
      %1313 = vst.msk [vmem:[%s189 + $0x28] sm:$0xff] %vm1307, %v1248
      %1314 = vst.msk [vmem:[%s189 + $0x30] sm:$0xff] %vm1307, %v1249
      %1315 = vst.msk [vmem:[%s189 + $0x38] sm:$0xff] %vm1307, %v1250
      %1316 = vst.msk [vmem:[%s189 + $0x40] sm:$0xff] %vm1307, %v1251
      %1317 = vst.msk [vmem:[%s189 + $0x48] sm:$0xff] %vm1307, %v1252
      %1318 = vst.msk [vmem:[%s189 + $0x50] sm:$0xff] %vm1307, %v1253
      %1319 = vst.msk [vmem:[%s189 + $0x58] sm:$0xff] %vm1307, %v1254
      %1320 = vst.msk [vmem:[%s189 + $0x60] sm:$0xff] %vm1307, %v1255
      %1321 = vst.msk [vmem:[%s189 + $0x68] sm:$0xff] %vm1307, %v1256
      %1322 = vst.msk [vmem:[%s189 + $0x70] sm:$0xff] %vm1307, %v1257
      %1323 = vst.msk [vmem:[%s189 + $0x78] sm:$0xff] %vm1307, %v1258
      %1324 = vst.msk [vmem:[%s189 + $0x80] sm:$0xff] %vm1307, %v1259
      %1325 = vst.msk [vmem:[%s189 + $0x88] sm:$0xff] %vm1307, %v1260
      %1326 = vst.msk [vmem:[%s189 + $0x90] sm:$0xff] %vm1307, %v1261
      %1327 = vst.msk [vmem:[%s189 + $0x98] sm:$0xff] %vm1307, %v1262
      %1328 = vst.msk [vmem:[%s189 + $0xa0] sm:$0xff] %vm1307, %v1263
      %1329 = vst.msk [vmem:[%s189 + $0xa8] sm:$0xff] %vm1307, %v1264
      %1330 = vst.msk [vmem:[%s189 + $0xb0] sm:$0xff] %vm1307, %v1265
      %1331 = vst.msk [vmem:[%s189 + $0xb8] sm:$0xff] %vm1307, %v1266
      %1332 = vst.msk [vmem:[%s189 + $0xc0] sm:$0xff] %vm1307, %v1267
      %1333 = vst.msk [vmem:[%s189 + $0xc8] sm:$0xff] %vm1307, %v1268
      %1334 = vst.msk [vmem:[%s189 + $0xd0] sm:$0xff] %vm1307, %v1269
      %1335 = vst.msk [vmem:[%s189 + $0xd8] sm:$0xff] %vm1307, %v1270
      %1336 = vst.msk [vmem:[%s189 + $0xe0] sm:$0xff] %vm1307, %v1271
      %1337 = vst.msk [vmem:[%s189 + $0xe8] sm:$0xff] %vm1307, %v1272
      %1338 = vst.msk [vmem:[%s189 + $0xf0] sm:$0xff] %vm1307, %v1273
      %1339 = vst.msk [vmem:[%s189 + $0xf8] sm:$0xff] %vm1307, %v1274
      %1340 = vst.msk [vmem:[%s189 + $0x100] sm:$0xff] %vm1307, %v1275
      %1341 = vst.msk [vmem:[%s189 + $0x108] sm:$0xff] %vm1307, %v1276
      %1342 = vst.msk [vmem:[%s189 + $0x110] sm:$0xff] %vm1307, %v1277
      %1343 = vst.msk [vmem:[%s189 + $0x118] sm:$0xff] %vm1307, %v1278
      %1344 = vst.msk [vmem:[%s189 + $0x120] sm:$0xff] %vm1307, %v1279
      %1345 = vst.msk [vmem:[%s189 + $0x128] sm:$0xff] %vm1307, %v1280
      %1346 = vst.msk [vmem:[%s189 + $0x130] sm:$0xff] %vm1307, %v1281
      %1347 = vst.msk [vmem:[%s189 + $0x138] sm:$0xff] %vm1307, %v1282
      %1348 = vst.msk [vmem:[%s189 + $0x140] sm:$0xff] %vm1307, %v1283
      %1349 = vst.msk [vmem:[%s189 + $0x148] sm:$0xff] %vm1307, %v1284
      %1350 = vst.msk [vmem:[%s189 + $0x150] sm:$0xff] %vm1307, %v1285
      %1351 = vst.msk [vmem:[%s189 + $0x158] sm:$0xff] %vm1307, %v1286
      %1352 = vst.msk [vmem:[%s189 + $0x160] sm:$0xff] %vm1307, %v1287
      %1353 = vst.msk [vmem:[%s189 + $0x168] sm:$0xff] %vm1307, %v1288
      %1354 = vst.msk [vmem:[%s189 + $0x170] sm:$0xff] %vm1307, %v1289
      %1355 = vst.msk [vmem:[%s189 + $0x178] sm:$0xff] %vm1307, %v1290
      %1356 = vst.msk [vmem:[%s189 + $0x180] sm:$0xff] %vm1307, %v1291
      %1357 = vst.msk [vmem:[%s189 + $0x188] sm:$0xff] %vm1307, %v1292
      %1358 = vst.msk [vmem:[%s189 + $0x190] sm:$0xff] %vm1307, %v1293
      %1359 = vst.msk [vmem:[%s189 + $0x198] sm:$0xff] %vm1307, %v1294
      %1360 = vst.msk [vmem:[%s189 + $0x1a0] sm:$0xff] %vm1307, %v1295
      %1361 = vst.msk [vmem:[%s189 + $0x1a8] sm:$0xff] %vm1307, %v1296
      %1362 = vst.msk [vmem:[%s189 + $0x1b0] sm:$0xff] %vm1307, %v1297
      %1363 = vst.msk [vmem:[%s189 + $0x1b8] sm:$0xff] %vm1307, %v1298
      %1364 = vst.msk [vmem:[%s189 + $0x1c0] sm:$0xff] %vm1307, %v1299
      %1365 = vst.msk [vmem:[%s189 + $0x1c8] sm:$0xff] %vm1307, %v1300
      %1366 = vst.msk [vmem:[%s189 + $0x1d0] sm:$0xff] %vm1307, %v1301
      %1367 = vst.msk [vmem:[%s189 + $0x1d8] sm:$0xff] %vm1307, %v1302
      %1368 = vst.msk [vmem:[%s189 + $0x1e0] sm:$0xff] %vm1307, %v1303
      %1369 = vst.msk [vmem:[%s189 + $0x1e8] sm:$0xff] %vm1307, %v1304
      %1370 = vst.msk [vmem:[%s189 + $0x1f0] sm:$0xff] %vm1307, %v1305
      %1371 = vst.msk [vmem:[%s189 + $0x1f8] sm:$0xff] %vm1307, %v1306
      %p1372 = scmp.lt.s32.totalorder %s16, 3
      %s1373 = scalar_select %p1372, %s16, 3
      %s1374 = smul.addr %s1373, 64
      %s1375 = smul.addr %s1374, 8
      %s1376 = scalar_lea.vmem %s3, %s1375
      // Predicated region
      $region33: #{vae_decoder_forward.7} parent=31 // pred_check
        %p1377 = pneg %p107
      $region34: #{vae_decoder_forward.7} parent=31 // pred_check_branch
        %1379 = sbr.rel (%p1377) target = $region36
      $region35: #{vae_decoder_forward.7} parent=31 // pred_region
        _
      $region36: #{vae_decoder_forward.7} parent=31 // pred_fallthru
        _
    $region32: #{vae_decoder_forward.7} parent=5 // pred_fallthru
      _
    %p1380 = scmp.le.s32.totalorder 2, %s11
    // Predicated region
    $region37: #{vae_decoder_forward.7} parent=5 // pred_check
      %p1381 = pneg %p1380
    $region38: #{vae_decoder_forward.7} parent=5 // pred_check_branch
      %1383 = sbr.rel (%p1381) target = $region40
    $region39: #{vae_decoder_forward.7} parent=5 // pred_region
      %s1384 = ssub.s32 %s11, 2
      // Predicated region
      $region41: #{vae_decoder_forward.7} parent=39 // pred_check
        %p1385 = pneg %p113
      $region42: #{vae_decoder_forward.7} parent=39 // pred_check_branch
        %1387 = sbr.rel (%p1385) target = $region44
      $region43: #{vae_decoder_forward.7} parent=39 // pred_region
        %p1388 = scmp.lt.s32.totalorder %s17, 3
        %s1389 = scalar_select %p1388, %s17, 3
        %s1390 = smul.addr %s1389, 64
        %s1391 = smul.addr %s1390, 8
        %s1392 = scalar_lea.vmem %s3, %s1391
      $region44: #{vae_decoder_forward.7} parent=39 // pred_fallthru
        _
    $region40: #{vae_decoder_forward.7} parent=5 // pred_fallthru
      _
  $region6: #{vae_decoder_forward.7} parent=0 // loop_footer
    %s15 = sadd.s32 1, %s11
  $region7: #{vae_decoder_forward.7} parent=0 // loop_footer_branch
    %10 = sbr.rel target = $region3
  $region8: #{vae_decoder_forward.7} parent=0 // loop_exit
    _

</llo_original>
